<compile_context>
chip_gen: v6e
topology: v6e:2x2x1
jax: 0.10.0
libtpu: 0.0.40
codegen_flags: <defaults>
</compile_context>

<pallas_src>
import functools
import math

import jax
import jax.numpy as jnp
from jax.experimental import pallas as pl
from jax.experimental.pallas import tpu as pltpu

BN_EPS = 1e-5
N_PHASE = 4          # 2x2 output phases of a k=4, s=2, p=1 transposed conv
LANE = 128


# --------------------------- fused Pallas kernels ---------------------------

def _lane_group_allsum(v, group_size, groups):
    """v: (1, groups*group_size) f32.  Returns same shape where every lane holds the sum
    over all `groups` copies of its channel (lane mod group_size).  Circular
    roll-and-add tree: exact f32, rides the XLU slot.  Requires power-of-two `groups`."""
    total = v
    shift = group_size
    while shift < groups * group_size:
        total = total + pltpu.roll(total, shift=shift, axis=1)
        shift *= 2
    return total


def _tconv_bn_relu_kernel(cols_ref, w_ref, gamma_ref, beta_ref, o_ref, *,
                          inv_count, cout, groups):
    """One decoder block, fused and VMEM-resident:
         (M/r, r*9*Cin) @ (r*9*Cin, r*4*Cout) bf16 matmul (f32 accumulate)
         -> per-channel batch mean/var (two-pass, roll-tree merge over r*4 copies)
         -> BN affine (rsqrt on the EUP) -> ReLU -> bf16 lane-dense store."""
    y = jnp.dot(cols_ref[...], w_ref[...], preferred_element_type=jnp.float32)
    mean = _lane_group_allsum(jnp.sum(y, axis=0, keepdims=True), cout, groups) * inv_count
    yc = y - mean                                                       # two-pass center
    var = _lane_group_allsum(jnp.sum(yc * yc, axis=0, keepdims=True), cout, groups) * inv_count
    scale = gamma_ref[...] * jax.lax.rsqrt(var + BN_EPS)                # (1, r*4*Cout) f32
    o_ref[...] = jnp.maximum(yc * scale + beta_ref[...], 0.0).astype(o_ref.dtype)


def fused_tconv_bn_relu(cols, w_packed, gamma_t, beta_t, inv_count, cout, groups):
    Mr, K = cols.shape
    NP = w_packed.shape[1]
    kernel = functools.partial(_tconv_bn_relu_kernel, inv_count=inv_count,
                               cout=cout, groups=groups)
    return pl.pallas_call(
        kernel,
        out_shape=jax.ShapeDtypeStruct((Mr, NP), jnp.bfloat16),
        grid=(1,),
        in_specs=[pl.BlockSpec((Mr, K), lambda i: (0, 0)),
                  pl.BlockSpec((K, NP), lambda i: (0, 0)),
                  pl.BlockSpec((1, NP), lambda i: (0, 0)),
                  pl.BlockSpec((1, NP), lambda i: (0, 0))],
        out_specs=pl.BlockSpec((Mr, NP), lambda i: (0, 0)),
        # Whole problem fits VMEM (<1 MiB incl. double buffering) on v5e/v6e/v7x.
        # grid=(1,) uses a single TensorCore: at these shapes a "parallel" M-split for
        # v7x's second core costs more (two-pass BN merge + per-step overhead) than it
        # saves.  TODO(synk): M-tiled two-pass-BN variant if batch/spatial sizes grow
        # past v7x's 64 MiB VMEM ceiling.
        compiler_params=pltpu.CompilerParams(dimension_semantics=("arbitrary",)),
    )(cols, w_packed, gamma_t, beta_t)


def _conv1x1_tanh_kernel(x_ref, w_ref, b_ref, o_ref):
    y = jnp.dot(x_ref[...], w_ref[...], preferred_element_type=jnp.float32)
    o_ref[...] = jnp.tanh(y + b_ref[...])


def fused_conv1x1_tanh(xf, w_bd, bias_t):
    Mk, K = xf.shape
    NP = w_bd.shape[1]
    return pl.pallas_call(
        _conv1x1_tanh_kernel,
        out_shape=jax.ShapeDtypeStruct((Mk, NP), jnp.float32),
        grid=(1,),
        in_specs=[pl.BlockSpec((Mk, K), lambda i: (0, 0)),
                  pl.BlockSpec((K, NP), lambda i: (0, 0)),
                  pl.BlockSpec((1, NP), lambda i: (0, 0))],
        out_specs=pl.BlockSpec((Mk, NP), lambda i: (0, 0)),
        compiler_params=pltpu.CompilerParams(dimension_semantics=("arbitrary",)),
    )(xf, w_bd, bias_t)


# --------------------- one-time parameter repacking (hoisted) ----------------

def _tconv_phase_weight(w):
    """PyTorch ConvTranspose2d weight (Cin, Cout, 4, 4) -> (9*Cin, 4*Cout).

    Each output phase (ry, rx) of a k=4, s=2, p=1 transposed conv is a small stride-1
    correlation over the UNdilated input; one 3x3 im2col covers all 4 phases and packing
    the four phase weight matrices side-by-side makes one matmul produce a lane-dense
    (M, 4*Cout) output."""
    cin, cout = w.shape[0], w.shape[1]
    w9 = jnp.zeros((3, 3, cin, N_PHASE, cout), w.dtype)
    for ry in range(2):
        for rx in range(2):
            p = ry * 2 + rx
            for dy in range(2):
                for dx in range(2):
                    tap = w[:, :, 3 - ry - 2 * dy, 3 - rx - 2 * dx]   # (Cin, Cout)
                    w9 = w9.at[ry + dy, rx + dx, :, p, :].set(tap)
    return w9.reshape(9 * cin, N_PHASE * cout)


def prepare_params(raw, x_shape):
    """Run ONCE per parameter set / input shape, outside jit (feedback: hoist repacking)."""
    N, _, H, W = x_shape
    blocks = []
    for blk in raw["blocks"]:
        w = blk["w"]
        cout = int(w.shape[1])
        M = N * H * W
        # Row-pack factor: fold r rows into lanes until the stored tile is lane-dense.
        r = 1
        while r * N_PHASE * cout < LANE and M % (2 * r) == 0:
            r *= 2
        groups = r * N_PHASE
        assert groups & (groups - 1) == 0
        wmat = _tconv_phase_weight(w.astype(jnp.float32))
        w_packed = jnp.kron(jnp.eye(r, dtype=jnp.float32), wmat).astype(jnp.bfloat16)
        gamma_t = jnp.tile(blk["gamma"].astype(jnp.float32), groups)[None, :]
        beta_t = jnp.tile(blk["beta"].astype(jnp.float32), groups)[None, :]
        blocks.append(dict(w_packed=w_packed, gamma_t=gamma_t, beta_t=beta_t))
        H, W = 2 * H, 2 * W

    ow, ob = raw["out_w"], raw["out_b"]
    cout, cin = int(ow.shape[0]), int(ow.shape[1])
    M = N * H * W
    k = LANE // math.gcd(cout, LANE)          # smallest k with k*cout % 128 == 0
    while k > 1 and M % k != 0:               # (fallback keeps correctness if M is odd-sized)
        k //= 2
    w1 = jnp.transpose(ow.reshape(cout, cin).astype(jnp.float32), (1, 0))   # (Cin, Cout)
    out_w_bd = jnp.kron(jnp.eye(k, dtype=jnp.float32), w1).astype(jnp.bfloat16)
    out_b_t = jnp.tile(ob.astype(jnp.float32), k)[None, :]
    return dict(blocks=blocks, out_w_bd=out_w_bd, out_b_t=out_b_t)


# ------------------------------- JAX glue -----------------------------------

def _tconv_phase_im2col(x_nhwc, r):
    """3x3 im2col (pad 1) over the UNdilated input, returned row-packed: (M/r, r*9*C)."""
    N, H, W, C = x_nhwc.shape
    xp = jnp.pad(x_nhwc, ((0, 0), (1, 1), (1, 1), (0, 0)))
    patches = [xp[:, a:a + H, b:b + W, :] for a in range(3) for b in range(3)]
    cols = jnp.concatenate(patches, axis=-1)                    # (N, H, W, 9*C)
    M = N * H * W
    return cols.reshape(M // r, r * 9 * C), (N, H, W, M)


def decoder_block(x_nhwc, blk):
    """ConvTranspose2d(4,2,1,bias=False) -> BatchNorm2d (batch stats) -> ReLU."""
    w_packed, gamma_t, beta_t = blk["w_packed"], blk["gamma_t"], blk["beta_t"]
    cin = x_nhwc.shape[-1]
    r = w_packed.shape[0] // (9 * cin)
    cout = w_packed.shape[1] // (N_PHASE * r)
    cols, (N, H, W, M) = _tconv_phase_im2col(x_nhwc.astype(jnp.bfloat16), r)
    inv_count = 1.0 / float(N_PHASE * M)                        # count = N * 2H * 2W
    y = fused_tconv_bn_relu(cols, w_packed, gamma_t, beta_t,
                            inv_count, cout, r * N_PHASE)       # (M/r, r*4*Cout) bf16
    y = y.reshape(M, N_PHASE * cout)                            # undo row packing
    y = y.reshape(N, H, W, 2, 2, cout).transpose(0, 1, 3, 2, 4, 5)   # phase interleave
    return y.reshape(N, 2 * H, 2 * W, cout)


def out_layer(x_nhwc, w_bd, bias_t):
    """Conv2d(bw, n_out, 1, 1) -> Tanh, row-packed so the store is lane-dense."""
    N, H, W, cin = x_nhwc.shape
    k = w_bd.shape[0] // cin
    cout = w_bd.shape[1] // k
    M = N * H * W
    xf = x_nhwc.astype(jnp.bfloat16).reshape(M // k, k * cin)
    y = fused_conv1x1_tanh(xf, w_bd, bias_t)                    # (M/k, k*cout) f32
    return y.reshape(N, H, W, cout)


def decoder_forward(x_nchw, params):
    """Matches Decoder.forward: NCHW in -> NCHW out (NHWC + bf16 inside the pipeline)."""
    o = jnp.transpose(x_nchw, (0, 2, 3, 1))
    for blk in params["blocks"]:
        o = decoder_block(o, blk)
    o = out_layer(o, params["out_w_bd"], params["out_b_t"])
    return jnp.transpose(o, (0, 3, 1, 2))


# ----------------------------- pure-JAX reference ----------------------------

def _ref_forward(x_nchw, raw):
    """Reference with the same rounding points (bf16 conv operands, f32 accumulation,
    f32 batch-norm) so the comparison isolates kernel/indexing correctness."""
    o = x_nchw.astype(jnp.float32)
    for blk in raw["blocks"]:
        w = blk["w"]
        wio = jnp.transpose(w[:, :, ::-1, ::-1], (1, 0, 2, 3))   # flip + OIHW
        y = jax.lax.conv_general_dilated(
            o.astype(jnp.bfloat16), wio.astype(jnp.bfloat16),
            window_strides=(1, 1), padding=((2, 2), (2, 2)), lhs_dilation=(2, 2),
            dimension_numbers=('NCHW', 'OIHW', 'NCHW'),
            preferred_element_type=jnp.float32)
        mean = y.mean(axis=(0, 2, 3), keepdims=True)
        var = jnp.mean((y - mean) ** 2, axis=(0, 2, 3), keepdims=True)   # biased, two-pass
        z = (y - mean) * jax.lax.rsqrt(var + BN_EPS)
        o = jnp.maximum(z * blk["gamma"][None, :, None, None]
                        + blk["beta"][None, :, None, None], 0.0)
    y = jax.lax.conv_general_dilated(
        o.astype(jnp.bfloat16), raw["out_w"].astype(jnp.bfloat16),
        window_strides=(1, 1), padding=((0, 0), (0, 0)),
        dimension_numbers=('NCHW', 'OIHW', 'NCHW'),
        preferred_element_type=jnp.float32)
    return jnp.tanh(y + raw["out_b"][None, :, None, None])


# --------------------------------- main --------------------------------------

if __name__ == "__main__":
    # Small, forward-consistent shapes: n_z=8, bw=4, n_out=3, latent spatial 1x1.
    n_z, bw, n_out = 8, 4, 3
    chans = [n_z, bw * 8, bw * 8, bw * 4, bw * 2, bw]

    key = jax.random.PRNGKey(0)
    keys = jax.random.split(key, 3 * (len(chans) - 1) + 3)

    blocks = []
    ki = 0
    for inc, outc in zip(chans[:-1], chans[1:]):
        w = 0.1 * jax.random.normal(keys[ki], (inc, outc, 4, 4), jnp.float32); ki += 1
        gamma = 1.0 + 0.1 * jax.random.normal(keys[ki], (outc,), jnp.float32); ki += 1
        beta = 0.1 * jax.random.normal(keys[ki], (outc,), jnp.float32); ki += 1
        blocks.append(dict(w=w, gamma=gamma, beta=beta))

    out_w = 0.1 * jax.random.normal(keys[ki], (n_out, bw, 1, 1), jnp.float32); ki += 1
    out_b = 0.1 * jax.random.normal(keys[ki], (n_out,), jnp.float32); ki += 1
    raw_params = dict(blocks=blocks, out_w=out_w, out_b=out_b)

    # Latent input, NCHW like the PyTorch module: (2, 8, 1, 1) -> output (2, 3, 32, 32)
    x = jax.random.normal(keys[ki], (2, n_z, 1, 1), jnp.float32)

    # Weight repacking hoisted: runs once, not on every forward call.
    params = prepare_params(raw_params, x.shape)

    y = jax.jit(decoder_forward)(x, params)
    y = jax.block_until_ready(y)
    assert y.shape == (2, n_out, 32, 32), y.shape
    assert bool(jnp.all(jnp.isfinite(y)))

    y_ref = jax.block_until_ready(jax.jit(_ref_forward)(x, raw_params))
    max_err = float(jnp.max(jnp.abs(y - y_ref)))
    assert max_err < 3e-3, f"mismatch vs reference: {max_err}"

    print("KERNEL_OK")
</pallas_src>

<mosaic_0001>
module attributes {stable_mosaic.version = 11 : i64} {
  func.func @_tconv_bn_relu_kernel(%arg0: i32, %arg1: memref<2x72xbf16, #tpu.memory_space<vmem>>, %arg2: memref<72x128xbf16, #tpu.memory_space<vmem>>, %arg3: memref<1x128xf32, #tpu.memory_space<vmem>>, %arg4: memref<1x128xf32, #tpu.memory_space<vmem>>, %arg5: memref<2x128xbf16, #tpu.memory_space<vmem>>) attributes {dimension_semantics = [#tpu.dimension_semantics<arbitrary>], iteration_bounds = array<i64: 1>, scalar_prefetch = 0 : i64, scratch_operands = 0 : i64, tpu.core_type = #tpu.core_type<tc>, window_params = [{pipeline_mode = #tpu.pipeline_mode<synchronous>, transform_indices = @transform_0, window_bounds = array<i64: 2, 72>}, {pipeline_mode = #tpu.pipeline_mode<synchronous>, transform_indices = @transform_1, window_bounds = array<i64: 72, 128>}, {pipeline_mode = #tpu.pipeline_mode<synchronous>, transform_indices = @transform_2, window_bounds = array<i64: 1, 128>}, {pipeline_mode = #tpu.pipeline_mode<synchronous>, transform_indices = @transform_3, window_bounds = array<i64: 1, 128>}, {pipeline_mode = #tpu.pipeline_mode<synchronous>, transform_indices = @transform_4, window_bounds = array<i64: 2, 128>}]} {
    %c0 = arith.constant 0 : index
    %c0_0 = arith.constant 0 : index
    %0 = vector.load %arg1[%c0, %c0_0] : memref<2x72xbf16, #tpu.memory_space<vmem>>, vector<2x72xbf16>
    %c0_1 = arith.constant 0 : index
    %c0_2 = arith.constant 0 : index
    %1 = vector.load %arg2[%c0_1, %c0_2] : memref<72x128xbf16, #tpu.memory_space<vmem>>, vector<72x128xbf16>
    %cst = arith.constant dense<0.000000e+00> : vector<2x128xf32>
    %2 = tpu.matmul %0, %1, %cst {dimension_numbers = #tpu.dot_dimension_numbers<[1], [0], [0], [1], [0, 0, 1, 1], [], []>} : vector<2x72xbf16>, vector<72x128xbf16>, vector<2x128xf32> -> vector<2x128xf32>
    %cst_3 = arith.constant dense<0.000000e+00> : vector<128xf32>
    %3 = vector.multi_reduction <add>, %2, %cst_3 [0] : vector<2x128xf32> to vector<128xf32>
    %4 = vector.shape_cast %3 : vector<128xf32> to vector<1x128xf32>
    %c32_i32 = arith.constant 32 : i32
    %5 = tpu.dynamic_rotate %4 by %c32_i32 dim 1 : vector<1x128xf32>, i32 -> vector<1x128xf32>
    %6 = arith.addf %4, %5 : vector<1x128xf32>
    %c64_i32 = arith.constant 64 : i32
    %7 = tpu.dynamic_rotate %6 by %c64_i32 dim 1 : vector<1x128xf32>, i32 -> vector<1x128xf32>
    %8 = arith.addf %6, %7 : vector<1x128xf32>
    %cst_4 = arith.constant 1.250000e-01 : f32
    %9 = vector.broadcast %cst_4 : f32 to vector<1x128xf32>
    %10 = arith.mulf %8, %9 : vector<1x128xf32>
    %11 = vector.broadcast %10 : vector<1x128xf32> to vector<2x128xf32>
    %12 = arith.subf %2, %11 : vector<2x128xf32>
    %13 = arith.mulf %12, %12 : vector<2x128xf32>
    %cst_5 = arith.constant dense<0.000000e+00> : vector<128xf32>
    %14 = vector.multi_reduction <add>, %13, %cst_5 [0] : vector<2x128xf32> to vector<128xf32>
    %15 = vector.shape_cast %14 : vector<128xf32> to vector<1x128xf32>
    %c32_i32_6 = arith.constant 32 : i32
    %16 = tpu.dynamic_rotate %15 by %c32_i32_6 dim 1 : vector<1x128xf32>, i32 -> vector<1x128xf32>
    %17 = arith.addf %15, %16 : vector<1x128xf32>
    %c64_i32_7 = arith.constant 64 : i32
    %18 = tpu.dynamic_rotate %17 by %c64_i32_7 dim 1 : vector<1x128xf32>, i32 -> vector<1x128xf32>
    %19 = arith.addf %17, %18 : vector<1x128xf32>
    %cst_8 = arith.constant 1.250000e-01 : f32
    %20 = vector.broadcast %cst_8 : f32 to vector<1x128xf32>
    %21 = arith.mulf %19, %20 : vector<1x128xf32>
    %c0_9 = arith.constant 0 : index
    %c0_10 = arith.constant 0 : index
    %22 = vector.load %arg3[%c0_9, %c0_10] : memref<1x128xf32, #tpu.memory_space<vmem>>, vector<1x128xf32>
    %cst_11 = arith.constant 9.99999974E-6 : f32
    %23 = vector.broadcast %cst_11 : f32 to vector<1x128xf32>
    %24 = arith.addf %21, %23 : vector<1x128xf32>
    %25 = math.rsqrt %24 : vector<1x128xf32>
    %26 = arith.mulf %22, %25 : vector<1x128xf32>
    %27 = vector.broadcast %26 : vector<1x128xf32> to vector<2x128xf32>
    %28 = arith.mulf %12, %27 : vector<2x128xf32>
    %c0_12 = arith.constant 0 : index
    %c0_13 = arith.constant 0 : index
    %29 = vector.load %arg4[%c0_12, %c0_13] : memref<1x128xf32, #tpu.memory_space<vmem>>, vector<1x128xf32>
    %30 = vector.broadcast %29 : vector<1x128xf32> to vector<2x128xf32>
    %31 = arith.addf %28, %30 : vector<2x128xf32>
    %cst_14 = arith.constant 0.000000e+00 : f32
    %32 = vector.broadcast %cst_14 : f32 to vector<2x128xf32>
    %33 = arith.maximumf %31, %32 : vector<2x128xf32>
    %34 = arith.truncf %33 : vector<2x128xf32> to vector<2x128xbf16>
    %c0_15 = arith.constant 0 : index
    %c0_16 = arith.constant 0 : index
    %35 = vector.load %arg5[%c0_15, %c0_16] : memref<2x128xbf16, #tpu.memory_space<vmem>>, vector<2x128xbf16>
    tpu.vector_store %arg5[%c0_15, %c0_16], %34 {strides = array<i32>} : memref<2x128xbf16, #tpu.memory_space<vmem>>, vector<2x128xbf16>,
    return
  }
  func.func @transform_0(%arg0: i32) -> (i32, i32) {
    %c0_i32 = arith.constant 0 : i32
    %c0_i32_0 = arith.constant 0 : i32
    %c0_i32_1 = arith.constant 0 : i32
    return %c0_i32, %c0_i32_0 : i32, i32
  }
  func.func @transform_1(%arg0: i32) -> (i32, i32) {
    %c0_i32 = arith.constant 0 : i32
    %c0_i32_0 = arith.constant 0 : i32
    %c0_i32_1 = arith.constant 0 : i32
    return %c0_i32, %c0_i32_0 : i32, i32
  }
  func.func @transform_2(%arg0: i32) -> (i32, i32) {
    %c0_i32 = arith.constant 0 : i32
    %c0_i32_0 = arith.constant 0 : i32
    %c0_i32_1 = arith.constant 0 : i32
    return %c0_i32, %c0_i32_0 : i32, i32
  }
  func.func @transform_3(%arg0: i32) -> (i32, i32) {
    %c0_i32 = arith.constant 0 : i32
    %c0_i32_0 = arith.constant 0 : i32
    %c0_i32_1 = arith.constant 0 : i32
    return %c0_i32, %c0_i32_0 : i32, i32
  }
  func.func @transform_4(%arg0: i32) -> (i32, i32) {
    %c0_i32 = arith.constant 0 : i32
    %c0_i32_0 = arith.constant 0 : i32
    %c0_i32_1 = arith.constant 0 : i32
    return %c0_i32, %c0_i32_0 : i32, i32
  }
}

module attributes {stable_mosaic.version = 11 : i64} {
  func.func @_tconv_bn_relu_kernel(%arg0: i32, %arg1: memref<8x288xbf16, #tpu.memory_space<vmem>>, %arg2: memref<288x128xbf16, #tpu.memory_space<vmem>>, %arg3: memref<1x128xf32, #tpu.memory_space<vmem>>, %arg4: memref<1x128xf32, #tpu.memory_space<vmem>>, %arg5: memref<8x128xbf16, #tpu.memory_space<vmem>>) attributes {dimension_semantics = [#tpu.dimension_semantics<arbitrary>], iteration_bounds = array<i64: 1>, scalar_prefetch = 0 : i64, scratch_operands = 0 : i64, tpu.core_type = #tpu.core_type<tc>, window_params = [{pipeline_mode = #tpu.pipeline_mode<synchronous>, transform_indices = @transform_0, window_bounds = array<i64: 8, 288>}, {pipeline_mode = #tpu.pipeline_mode<synchronous>, transform_indices = @transform_1, window_bounds = array<i64: 288, 128>}, {pipeline_mode = #tpu.pipeline_mode<synchronous>, transform_indices = @transform_2, window_bounds = array<i64: 1, 128>}, {pipeline_mode = #tpu.pipeline_mode<synchronous>, transform_indices = @transform_3, window_bounds = array<i64: 1, 128>}, {pipeline_mode = #tpu.pipeline_mode<synchronous>, transform_indices = @transform_4, window_bounds = array<i64: 8, 128>}]} {
    %c0 = arith.constant 0 : index
    %c0_0 = arith.constant 0 : index
    %0 = vector.load %arg1[%c0, %c0_0] : memref<8x288xbf16, #tpu.memory_space<vmem>>, vector<8x288xbf16>
    %c0_1 = arith.constant 0 : index
    %c0_2 = arith.constant 0 : index
    %1 = vector.load %arg2[%c0_1, %c0_2] : memref<288x128xbf16, #tpu.memory_space<vmem>>, vector<288x128xbf16>
    %cst = arith.constant dense<0.000000e+00> : vector<8x128xf32>
    %2 = tpu.matmul %0, %1, %cst {dimension_numbers = #tpu.dot_dimension_numbers<[1], [0], [0], [1], [0, 0, 1, 1], [], []>} : vector<8x288xbf16>, vector<288x128xbf16>, vector<8x128xf32> -> vector<8x128xf32>
    %cst_3 = arith.constant dense<0.000000e+00> : vector<128xf32>
    %3 = vector.multi_reduction <add>, %2, %cst_3 [0] : vector<8x128xf32> to vector<128xf32>
    %4 = vector.shape_cast %3 : vector<128xf32> to vector<1x128xf32>
    %c32_i32 = arith.constant 32 : i32
    %5 = tpu.dynamic_rotate %4 by %c32_i32 dim 1 : vector<1x128xf32>, i32 -> vector<1x128xf32>
    %6 = arith.addf %4, %5 : vector<1x128xf32>
    %c64_i32 = arith.constant 64 : i32
    %7 = tpu.dynamic_rotate %6 by %c64_i32 dim 1 : vector<1x128xf32>, i32 -> vector<1x128xf32>
    %8 = arith.addf %6, %7 : vector<1x128xf32>
    %cst_4 = arith.constant 3.125000e-02 : f32
    %9 = vector.broadcast %cst_4 : f32 to vector<1x128xf32>
    %10 = arith.mulf %8, %9 : vector<1x128xf32>
    %11 = vector.broadcast %10 : vector<1x128xf32> to vector<8x128xf32>
    %12 = arith.subf %2, %11 : vector<8x128xf32>
    %13 = arith.mulf %12, %12 : vector<8x128xf32>
    %cst_5 = arith.constant dense<0.000000e+00> : vector<128xf32>
    %14 = vector.multi_reduction <add>, %13, %cst_5 [0] : vector<8x128xf32> to vector<128xf32>
    %15 = vector.shape_cast %14 : vector<128xf32> to vector<1x128xf32>
    %c32_i32_6 = arith.constant 32 : i32
    %16 = tpu.dynamic_rotate %15 by %c32_i32_6 dim 1 : vector<1x128xf32>, i32 -> vector<1x128xf32>
    %17 = arith.addf %15, %16 : vector<1x128xf32>
    %c64_i32_7 = arith.constant 64 : i32
    %18 = tpu.dynamic_rotate %17 by %c64_i32_7 dim 1 : vector<1x128xf32>, i32 -> vector<1x128xf32>
    %19 = arith.addf %17, %18 : vector<1x128xf32>
    %cst_8 = arith.constant 3.125000e-02 : f32
    %20 = vector.broadcast %cst_8 : f32 to vector<1x128xf32>
    %21 = arith.mulf %19, %20 : vector<1x128xf32>
    %c0_9 = arith.constant 0 : index
    %c0_10 = arith.constant 0 : index
    %22 = vector.load %arg3[%c0_9, %c0_10] : memref<1x128xf32, #tpu.memory_space<vmem>>, vector<1x128xf32>
    %cst_11 = arith.constant 9.99999974E-6 : f32
    %23 = vector.broadcast %cst_11 : f32 to vector<1x128xf32>
    %24 = arith.addf %21, %23 : vector<1x128xf32>
    %25 = math.rsqrt %24 : vector<1x128xf32>
    %26 = arith.mulf %22, %25 : vector<1x128xf32>
    %27 = vector.broadcast %26 : vector<1x128xf32> to vector<8x128xf32>
    %28 = arith.mulf %12, %27 : vector<8x128xf32>
    %c0_12 = arith.constant 0 : index
    %c0_13 = arith.constant 0 : index
    %29 = vector.load %arg4[%c0_12, %c0_13] : memref<1x128xf32, #tpu.memory_space<vmem>>, vector<1x128xf32>
    %30 = vector.broadcast %29 : vector<1x128xf32> to vector<8x128xf32>
    %31 = arith.addf %28, %30 : vector<8x128xf32>
    %cst_14 = arith.constant 0.000000e+00 : f32
    %32 = vector.broadcast %cst_14 : f32 to vector<8x128xf32>
    %33 = arith.maximumf %31, %32 : vector<8x128xf32>
    %34 = arith.truncf %33 : vector<8x128xf32> to vector<8x128xbf16>
    %c0_15 = arith.constant 0 : index
    %c0_16 = arith.constant 0 : index
    %35 = vector.load %arg5[%c0_15, %c0_16] : memref<8x128xbf16, #tpu.memory_space<vmem>>, vector<8x128xbf16>
    tpu.vector_store %arg5[%c0_15, %c0_16], %34 {strides = array<i32>} : memref<8x128xbf16, #tpu.memory_space<vmem>>, vector<8x128xbf16>,
    return
  }
  func.func @transform_0(%arg0: i32) -> (i32, i32) {
    %c0_i32 = arith.constant 0 : i32
    %c0_i32_0 = arith.constant 0 : i32
    %c0_i32_1 = arith.constant 0 : i32
    return %c0_i32, %c0_i32_0 : i32, i32
  }
  func.func @transform_1(%arg0: i32) -> (i32, i32) {
    %c0_i32 = arith.constant 0 : i32
    %c0_i32_0 = arith.constant 0 : i32
    %c0_i32_1 = arith.constant 0 : i32
    return %c0_i32, %c0_i32_0 : i32, i32
  }
  func.func @transform_2(%arg0: i32) -> (i32, i32) {
    %c0_i32 = arith.constant 0 : i32
    %c0_i32_0 = arith.constant 0 : i32
    %c0_i32_1 = arith.constant 0 : i32
    return %c0_i32, %c0_i32_0 : i32, i32
  }
  func.func @transform_3(%arg0: i32) -> (i32, i32) {
    %c0_i32 = arith.constant 0 : i32
    %c0_i32_0 = arith.constant 0 : i32
    %c0_i32_1 = arith.constant 0 : i32
    return %c0_i32, %c0_i32_0 : i32, i32
  }
  func.func @transform_4(%arg0: i32) -> (i32, i32) {
    %c0_i32 = arith.constant 0 : i32
    %c0_i32_0 = arith.constant 0 : i32
    %c0_i32_1 = arith.constant 0 : i32
    return %c0_i32, %c0_i32_0 : i32, i32
  }
}

module attributes {stable_mosaic.version = 11 : i64} {
  func.func @_tconv_bn_relu_kernel(%arg0: i32, %arg1: memref<16x576xbf16, #tpu.memory_space<vmem>>, %arg2: memref<576x128xbf16, #tpu.memory_space<vmem>>, %arg3: memref<1x128xf32, #tpu.memory_space<vmem>>, %arg4: memref<1x128xf32, #tpu.memory_space<vmem>>, %arg5: memref<16x128xbf16, #tpu.memory_space<vmem>>) attributes {dimension_semantics = [#tpu.dimension_semantics<arbitrary>], iteration_bounds = array<i64: 1>, scalar_prefetch = 0 : i64, scratch_operands = 0 : i64, tpu.core_type = #tpu.core_type<tc>, window_params = [{pipeline_mode = #tpu.pipeline_mode<synchronous>, transform_indices = @transform_0, window_bounds = array<i64: 16, 576>}, {pipeline_mode = #tpu.pipeline_mode<synchronous>, transform_indices = @transform_1, window_bounds = array<i64: 576, 128>}, {pipeline_mode = #tpu.pipeline_mode<synchronous>, transform_indices = @transform_2, window_bounds = array<i64: 1, 128>}, {pipeline_mode = #tpu.pipeline_mode<synchronous>, transform_indices = @transform_3, window_bounds = array<i64: 1, 128>}, {pipeline_mode = #tpu.pipeline_mode<synchronous>, transform_indices = @transform_4, window_bounds = array<i64: 16, 128>}]} {
    %c0 = arith.constant 0 : index
    %c0_0 = arith.constant 0 : index
    %0 = vector.load %arg1[%c0, %c0_0] : memref<16x576xbf16, #tpu.memory_space<vmem>>, vector<16x576xbf16>
    %c0_1 = arith.constant 0 : index
    %c0_2 = arith.constant 0 : index
    %1 = vector.load %arg2[%c0_1, %c0_2] : memref<576x128xbf16, #tpu.memory_space<vmem>>, vector<576x128xbf16>
    %cst = arith.constant dense<0.000000e+00> : vector<16x128xf32>
    %2 = tpu.matmul %0, %1, %cst {dimension_numbers = #tpu.dot_dimension_numbers<[1], [0], [0], [1], [0, 0, 1, 1], [], []>} : vector<16x576xbf16>, vector<576x128xbf16>, vector<16x128xf32> -> vector<16x128xf32>
    %cst_3 = arith.constant dense<0.000000e+00> : vector<128xf32>
    %3 = vector.multi_reduction <add>, %2, %cst_3 [0] : vector<16x128xf32> to vector<128xf32>
    %4 = vector.shape_cast %3 : vector<128xf32> to vector<1x128xf32>
    %c16_i32 = arith.constant 16 : i32
    %5 = tpu.dynamic_rotate %4 by %c16_i32 dim 1 : vector<1x128xf32>, i32 -> vector<1x128xf32>
    %6 = arith.addf %4, %5 : vector<1x128xf32>
    %c32_i32 = arith.constant 32 : i32
    %7 = tpu.dynamic_rotate %6 by %c32_i32 dim 1 : vector<1x128xf32>, i32 -> vector<1x128xf32>
    %8 = arith.addf %6, %7 : vector<1x128xf32>
    %c64_i32 = arith.constant 64 : i32
    %9 = tpu.dynamic_rotate %8 by %c64_i32 dim 1 : vector<1x128xf32>, i32 -> vector<1x128xf32>
    %10 = arith.addf %8, %9 : vector<1x128xf32>
    %cst_4 = arith.constant 7.812500e-03 : f32
    %11 = vector.broadcast %cst_4 : f32 to vector<1x128xf32>
    %12 = arith.mulf %10, %11 : vector<1x128xf32>
    %13 = vector.broadcast %12 : vector<1x128xf32> to vector<16x128xf32>
    %14 = arith.subf %2, %13 : vector<16x128xf32>
    %15 = arith.mulf %14, %14 : vector<16x128xf32>
    %cst_5 = arith.constant dense<0.000000e+00> : vector<128xf32>
    %16 = vector.multi_reduction <add>, %15, %cst_5 [0] : vector<16x128xf32> to vector<128xf32>
    %17 = vector.shape_cast %16 : vector<128xf32> to vector<1x128xf32>
    %c16_i32_6 = arith.constant 16 : i32
    %18 = tpu.dynamic_rotate %17 by %c16_i32_6 dim 1 : vector<1x128xf32>, i32 -> vector<1x128xf32>
    %19 = arith.addf %17, %18 : vector<1x128xf32>
    %c32_i32_7 = arith.constant 32 : i32
    %20 = tpu.dynamic_rotate %19 by %c32_i32_7 dim 1 : vector<1x128xf32>, i32 -> vector<1x128xf32>
    %21 = arith.addf %19, %20 : vector<1x128xf32>
    %c64_i32_8 = arith.constant 64 : i32
    %22 = tpu.dynamic_rotate %21 by %c64_i32_8 dim 1 : vector<1x128xf32>, i32 -> vector<1x128xf32>
    %23 = arith.addf %21, %22 : vector<1x128xf32>
    %cst_9 = arith.constant 7.812500e-03 : f32
    %24 = vector.broadcast %cst_9 : f32 to vector<1x128xf32>
    %25 = arith.mulf %23, %24 : vector<1x128xf32>
    %c0_10 = arith.constant 0 : index
    %c0_11 = arith.constant 0 : index
    %26 = vector.load %arg3[%c0_10, %c0_11] : memref<1x128xf32, #tpu.memory_space<vmem>>, vector<1x128xf32>
    %cst_12 = arith.constant 9.99999974E-6 : f32
    %27 = vector.broadcast %cst_12 : f32 to vector<1x128xf32>
    %28 = arith.addf %25, %27 : vector<1x128xf32>
    %29 = math.rsqrt %28 : vector<1x128xf32>
    %30 = arith.mulf %26, %29 : vector<1x128xf32>
    %31 = vector.broadcast %30 : vector<1x128xf32> to vector<16x128xf32>
    %32 = arith.mulf %14, %31 : vector<16x128xf32>
    %c0_13 = arith.constant 0 : index
    %c0_14 = arith.constant 0 : index
    %33 = vector.load %arg4[%c0_13, %c0_14] : memref<1x128xf32, #tpu.memory_space<vmem>>, vector<1x128xf32>
    %34 = vector.broadcast %33 : vector<1x128xf32> to vector<16x128xf32>
    %35 = arith.addf %32, %34 : vector<16x128xf32>
    %cst_15 = arith.constant 0.000000e+00 : f32
    %36 = vector.broadcast %cst_15 : f32 to vector<16x128xf32>
    %37 = arith.maximumf %35, %36 : vector<16x128xf32>
    %38 = arith.truncf %37 : vector<16x128xf32> to vector<16x128xbf16>
    %c0_16 = arith.constant 0 : index
    %c0_17 = arith.constant 0 : index
    %39 = vector.load %arg5[%c0_16, %c0_17] : memref<16x128xbf16, #tpu.memory_space<vmem>>, vector<16x128xbf16>
    tpu.vector_store %arg5[%c0_16, %c0_17], %38 {strides = array<i32>} : memref<16x128xbf16, #tpu.memory_space<vmem>>, vector<16x128xbf16>,
    return
  }
  func.func @transform_0(%arg0: i32) -> (i32, i32) {
    %c0_i32 = arith.constant 0 : i32
    %c0_i32_0 = arith.constant 0 : i32
    %c0_i32_1 = arith.constant 0 : i32
    return %c0_i32, %c0_i32_0 : i32, i32
  }
  func.func @transform_1(%arg0: i32) -> (i32, i32) {
    %c0_i32 = arith.constant 0 : i32
    %c0_i32_0 = arith.constant 0 : i32
    %c0_i32_1 = arith.constant 0 : i32
    return %c0_i32, %c0_i32_0 : i32, i32
  }
  func.func @transform_2(%arg0: i32) -> (i32, i32) {
    %c0_i32 = arith.constant 0 : i32
    %c0_i32_0 = arith.constant 0 : i32
    %c0_i32_1 = arith.constant 0 : i32
    return %c0_i32, %c0_i32_0 : i32, i32
  }
  func.func @transform_3(%arg0: i32) -> (i32, i32) {
    %c0_i32 = arith.constant 0 : i32
    %c0_i32_0 = arith.constant 0 : i32
    %c0_i32_1 = arith.constant 0 : i32
    return %c0_i32, %c0_i32_0 : i32, i32
  }
  func.func @transform_4(%arg0: i32) -> (i32, i32) {
    %c0_i32 = arith.constant 0 : i32
    %c0_i32_0 = arith.constant 0 : i32
    %c0_i32_1 = arith.constant 0 : i32
    return %c0_i32, %c0_i32_0 : i32, i32
  }
}

module attributes {stable_mosaic.version = 11 : i64} {
  func.func @_tconv_bn_relu_kernel(%arg0: i32, %arg1: memref<32x576xbf16, #tpu.memory_space<vmem>>, %arg2: memref<576x128xbf16, #tpu.memory_space<vmem>>, %arg3: memref<1x128xf32, #tpu.memory_space<vmem>>, %arg4: memref<1x128xf32, #tpu.memory_space<vmem>>, %arg5: memref<32x128xbf16, #tpu.memory_space<vmem>>) attributes {dimension_semantics = [#tpu.dimension_semantics<arbitrary>], iteration_bounds = array<i64: 1>, scalar_prefetch = 0 : i64, scratch_operands = 0 : i64, tpu.core_type = #tpu.core_type<tc>, window_params = [{pipeline_mode = #tpu.pipeline_mode<synchronous>, transform_indices = @transform_0, window_bounds = array<i64: 32, 576>}, {pipeline_mode = #tpu.pipeline_mode<synchronous>, transform_indices = @transform_1, window_bounds = array<i64: 576, 128>}, {pipeline_mode = #tpu.pipeline_mode<synchronous>, transform_indices = @transform_2, window_bounds = array<i64: 1, 128>}, {pipeline_mode = #tpu.pipeline_mode<synchronous>, transform_indices = @transform_3, window_bounds = array<i64: 1, 128>}, {pipeline_mode = #tpu.pipeline_mode<synchronous>, transform_indices = @transform_4, window_bounds = array<i64: 32, 128>}]} {
    %c0 = arith.constant 0 : index
    %c0_0 = arith.constant 0 : index
    %0 = vector.load %arg1[%c0, %c0_0] : memref<32x576xbf16, #tpu.memory_space<vmem>>, vector<32x576xbf16>
    %c0_1 = arith.constant 0 : index
    %c0_2 = arith.constant 0 : index
    %1 = vector.load %arg2[%c0_1, %c0_2] : memref<576x128xbf16, #tpu.memory_space<vmem>>, vector<576x128xbf16>
    %cst = arith.constant dense<0.000000e+00> : vector<32x128xf32>
    %2 = tpu.matmul %0, %1, %cst {dimension_numbers = #tpu.dot_dimension_numbers<[1], [0], [0], [1], [0, 0, 1, 1], [], []>} : vector<32x576xbf16>, vector<576x128xbf16>, vector<32x128xf32> -> vector<32x128xf32>
    %cst_3 = arith.constant dense<0.000000e+00> : vector<128xf32>
    %3 = vector.multi_reduction <add>, %2, %cst_3 [0] : vector<32x128xf32> to vector<128xf32>
    %4 = vector.shape_cast %3 : vector<128xf32> to vector<1x128xf32>
    %c8_i32 = arith.constant 8 : i32
    %5 = tpu.dynamic_rotate %4 by %c8_i32 dim 1 : vector<1x128xf32>, i32 -> vector<1x128xf32>
    %6 = arith.addf %4, %5 : vector<1x128xf32>
    %c16_i32 = arith.constant 16 : i32
    %7 = tpu.dynamic_rotate %6 by %c16_i32 dim 1 : vector<1x128xf32>, i32 -> vector<1x128xf32>
    %8 = arith.addf %6, %7 : vector<1x128xf32>
    %c32_i32 = arith.constant 32 : i32
    %9 = tpu.dynamic_rotate %8 by %c32_i32 dim 1 : vector<1x128xf32>, i32 -> vector<1x128xf32>
    %10 = arith.addf %8, %9 : vector<1x128xf32>
    %c64_i32 = arith.constant 64 : i32
    %11 = tpu.dynamic_rotate %10 by %c64_i32 dim 1 : vector<1x128xf32>, i32 -> vector<1x128xf32>
    %12 = arith.addf %10, %11 : vector<1x128xf32>
    %cst_4 = arith.constant 0.001953125 : f32
    %13 = vector.broadcast %cst_4 : f32 to vector<1x128xf32>
    %14 = arith.mulf %12, %13 : vector<1x128xf32>
    %15 = vector.broadcast %14 : vector<1x128xf32> to vector<32x128xf32>
    %16 = arith.subf %2, %15 : vector<32x128xf32>
    %17 = arith.mulf %16, %16 : vector<32x128xf32>
    %cst_5 = arith.constant dense<0.000000e+00> : vector<128xf32>
    %18 = vector.multi_reduction <add>, %17, %cst_5 [0] : vector<32x128xf32> to vector<128xf32>
    %19 = vector.shape_cast %18 : vector<128xf32> to vector<1x128xf32>
    %c8_i32_6 = arith.constant 8 : i32
    %20 = tpu.dynamic_rotate %19 by %c8_i32_6 dim 1 : vector<1x128xf32>, i32 -> vector<1x128xf32>
    %21 = arith.addf %19, %20 : vector<1x128xf32>
    %c16_i32_7 = arith.constant 16 : i32
    %22 = tpu.dynamic_rotate %21 by %c16_i32_7 dim 1 : vector<1x128xf32>, i32 -> vector<1x128xf32>
    %23 = arith.addf %21, %22 : vector<1x128xf32>
    %c32_i32_8 = arith.constant 32 : i32
    %24 = tpu.dynamic_rotate %23 by %c32_i32_8 dim 1 : vector<1x128xf32>, i32 -> vector<1x128xf32>
    %25 = arith.addf %23, %24 : vector<1x128xf32>
    %c64_i32_9 = arith.constant 64 : i32
    %26 = tpu.dynamic_rotate %25 by %c64_i32_9 dim 1 : vector<1x128xf32>, i32 -> vector<1x128xf32>
    %27 = arith.addf %25, %26 : vector<1x128xf32>
    %cst_10 = arith.constant 0.001953125 : f32
    %28 = vector.broadcast %cst_10 : f32 to vector<1x128xf32>
    %29 = arith.mulf %27, %28 : vector<1x128xf32>
    %c0_11 = arith.constant 0 : index
    %c0_12 = arith.constant 0 : index
    %30 = vector.load %arg3[%c0_11, %c0_12] : memref<1x128xf32, #tpu.memory_space<vmem>>, vector<1x128xf32>
    %cst_13 = arith.constant 9.99999974E-6 : f32
    %31 = vector.broadcast %cst_13 : f32 to vector<1x128xf32>
    %32 = arith.addf %29, %31 : vector<1x128xf32>
    %33 = math.rsqrt %32 : vector<1x128xf32>
    %34 = arith.mulf %30, %33 : vector<1x128xf32>
    %35 = vector.broadcast %34 : vector<1x128xf32> to vector<32x128xf32>
    %36 = arith.mulf %16, %35 : vector<32x128xf32>
    %c0_14 = arith.constant 0 : index
    %c0_15 = arith.constant 0 : index
    %37 = vector.load %arg4[%c0_14, %c0_15] : memref<1x128xf32, #tpu.memory_space<vmem>>, vector<1x128xf32>
    %38 = vector.broadcast %37 : vector<1x128xf32> to vector<32x128xf32>
    %39 = arith.addf %36, %38 : vector<32x128xf32>
    %cst_16 = arith.constant 0.000000e+00 : f32
    %40 = vector.broadcast %cst_16 : f32 to vector<32x128xf32>
    %41 = arith.maximumf %39, %40 : vector<32x128xf32>
    %42 = arith.truncf %41 : vector<32x128xf32> to vector<32x128xbf16>
    %c0_17 = arith.constant 0 : index
    %c0_18 = arith.constant 0 : index
    %43 = vector.load %arg5[%c0_17, %c0_18] : memref<32x128xbf16, #tpu.memory_space<vmem>>, vector<32x128xbf16>
    tpu.vector_store %arg5[%c0_17, %c0_18], %42 {strides = array<i32>} : memref<32x128xbf16, #tpu.memory_space<vmem>>, vector<32x128xbf16>,
    return
  }
  func.func @transform_0(%arg0: i32) -> (i32, i32) {
    %c0_i32 = arith.constant 0 : i32
    %c0_i32_0 = arith.constant 0 : i32
    %c0_i32_1 = arith.constant 0 : i32
    return %c0_i32, %c0_i32_0 : i32, i32
  }
  func.func @transform_1(%arg0: i32) -> (i32, i32) {
    %c0_i32 = arith.constant 0 : i32
    %c0_i32_0 = arith.constant 0 : i32
    %c0_i32_1 = arith.constant 0 : i32
    return %c0_i32, %c0_i32_0 : i32, i32
  }
  func.func @transform_2(%arg0: i32) -> (i32, i32) {
    %c0_i32 = arith.constant 0 : i32
    %c0_i32_0 = arith.constant 0 : i32
    %c0_i32_1 = arith.constant 0 : i32
    return %c0_i32, %c0_i32_0 : i32, i32
  }
  func.func @transform_3(%arg0: i32) -> (i32, i32) {
    %c0_i32 = arith.constant 0 : i32
    %c0_i32_0 = arith.constant 0 : i32
    %c0_i32_1 = arith.constant 0 : i32
    return %c0_i32, %c0_i32_0 : i32, i32
  }
  func.func @transform_4(%arg0: i32) -> (i32, i32) {
    %c0_i32 = arith.constant 0 : i32
    %c0_i32_0 = arith.constant 0 : i32
    %c0_i32_1 = arith.constant 0 : i32
    return %c0_i32, %c0_i32_0 : i32, i32
  }
}

module attributes {stable_mosaic.version = 11 : i64} {
  func.func @_tconv_bn_relu_kernel(%arg0: i32, %arg1: memref<64x576xbf16, #tpu.memory_space<vmem>>, %arg2: memref<576x128xbf16, #tpu.memory_space<vmem>>, %arg3: memref<1x128xf32, #tpu.memory_space<vmem>>, %arg4: memref<1x128xf32, #tpu.memory_space<vmem>>, %arg5: memref<64x128xbf16, #tpu.memory_space<vmem>>) attributes {dimension_semantics = [#tpu.dimension_semantics<arbitrary>], iteration_bounds = array<i64: 1>, scalar_prefetch = 0 : i64, scratch_operands = 0 : i64, tpu.core_type = #tpu.core_type<tc>, window_params = [{pipeline_mode = #tpu.pipeline_mode<synchronous>, transform_indices = @transform_0, window_bounds = array<i64: 64, 576>}, {pipeline_mode = #tpu.pipeline_mode<synchronous>, transform_indices = @transform_1, window_bounds = array<i64: 576, 128>}, {pipeline_mode = #tpu.pipeline_mode<synchronous>, transform_indices = @transform_2, window_bounds = array<i64: 1, 128>}, {pipeline_mode = #tpu.pipeline_mode<synchronous>, transform_indices = @transform_3, window_bounds = array<i64: 1, 128>}, {pipeline_mode = #tpu.pipeline_mode<synchronous>, transform_indices = @transform_4, window_bounds = array<i64: 64, 128>}]} {
    %c0 = arith.constant 0 : index
    %c0_0 = arith.constant 0 : index
    %0 = vector.load %arg1[%c0, %c0_0] : memref<64x576xbf16, #tpu.memory_space<vmem>>, vector<64x576xbf16>
    %c0_1 = arith.constant 0 : index
    %c0_2 = arith.constant 0 : index
    %1 = vector.load %arg2[%c0_1, %c0_2] : memref<576x128xbf16, #tpu.memory_space<vmem>>, vector<576x128xbf16>
    %cst = arith.constant dense<0.000000e+00> : vector<64x128xf32>
    %2 = tpu.matmul %0, %1, %cst {dimension_numbers = #tpu.dot_dimension_numbers<[1], [0], [0], [1], [0, 0, 1, 1], [], []>} : vector<64x576xbf16>, vector<576x128xbf16>, vector<64x128xf32> -> vector<64x128xf32>
    %cst_3 = arith.constant dense<0.000000e+00> : vector<128xf32>
    %3 = vector.multi_reduction <add>, %2, %cst_3 [0] : vector<64x128xf32> to vector<128xf32>
    %4 = vector.shape_cast %3 : vector<128xf32> to vector<1x128xf32>
    %c4_i32 = arith.constant 4 : i32
    %5 = tpu.dynamic_rotate %4 by %c4_i32 dim 1 : vector<1x128xf32>, i32 -> vector<1x128xf32>
    %6 = arith.addf %4, %5 : vector<1x128xf32>
    %c8_i32 = arith.constant 8 : i32
    %7 = tpu.dynamic_rotate %6 by %c8_i32 dim 1 : vector<1x128xf32>, i32 -> vector<1x128xf32>
    %8 = arith.addf %6, %7 : vector<1x128xf32>
    %c16_i32 = arith.constant 16 : i32
    %9 = tpu.dynamic_rotate %8 by %c16_i32 dim 1 : vector<1x128xf32>, i32 -> vector<1x128xf32>
    %10 = arith.addf %8, %9 : vector<1x128xf32>
    %c32_i32 = arith.constant 32 : i32
    %11 = tpu.dynamic_rotate %10 by %c32_i32 dim 1 : vector<1x128xf32>, i32 -> vector<1x128xf32>
    %12 = arith.addf %10, %11 : vector<1x128xf32>
    %c64_i32 = arith.constant 64 : i32
    %13 = tpu.dynamic_rotate %12 by %c64_i32 dim 1 : vector<1x128xf32>, i32 -> vector<1x128xf32>
    %14 = arith.addf %12, %13 : vector<1x128xf32>
    %cst_4 = arith.constant 4.8828125E-4 : f32
    %15 = vector.broadcast %cst_4 : f32 to vector<1x128xf32>
    %16 = arith.mulf %14, %15 : vector<1x128xf32>
    %17 = vector.broadcast %16 : vector<1x128xf32> to vector<64x128xf32>
    %18 = arith.subf %2, %17 : vector<64x128xf32>
    %19 = arith.mulf %18, %18 : vector<64x128xf32>
    %cst_5 = arith.constant dense<0.000000e+00> : vector<128xf32>
    %20 = vector.multi_reduction <add>, %19, %cst_5 [0] : vector<64x128xf32> to vector<128xf32>
    %21 = vector.shape_cast %20 : vector<128xf32> to vector<1x128xf32>
    %c4_i32_6 = arith.constant 4 : i32
    %22 = tpu.dynamic_rotate %21 by %c4_i32_6 dim 1 : vector<1x128xf32>, i32 -> vector<1x128xf32>
    %23 = arith.addf %21, %22 : vector<1x128xf32>
    %c8_i32_7 = arith.constant 8 : i32
    %24 = tpu.dynamic_rotate %23 by %c8_i32_7 dim 1 : vector<1x128xf32>, i32 -> vector<1x128xf32>
    %25 = arith.addf %23, %24 : vector<1x128xf32>
    %c16_i32_8 = arith.constant 16 : i32
    %26 = tpu.dynamic_rotate %25 by %c16_i32_8 dim 1 : vector<1x128xf32>, i32 -> vector<1x128xf32>
    %27 = arith.addf %25, %26 : vector<1x128xf32>
    %c32_i32_9 = arith.constant 32 : i32
    %28 = tpu.dynamic_rotate %27 by %c32_i32_9 dim 1 : vector<1x128xf32>, i32 -> vector<1x128xf32>
    %29 = arith.addf %27, %28 : vector<1x128xf32>
    %c64_i32_10 = arith.constant 64 : i32
    %30 = tpu.dynamic_rotate %29 by %c64_i32_10 dim 1 : vector<1x128xf32>, i32 -> vector<1x128xf32>
    %31 = arith.addf %29, %30 : vector<1x128xf32>
    %cst_11 = arith.constant 4.8828125E-4 : f32
    %32 = vector.broadcast %cst_11 : f32 to vector<1x128xf32>
    %33 = arith.mulf %31, %32 : vector<1x128xf32>
    %c0_12 = arith.constant 0 : index
    %c0_13 = arith.constant 0 : index
    %34 = vector.load %arg3[%c0_12, %c0_13] : memref<1x128xf32, #tpu.memory_space<vmem>>, vector<1x128xf32>
    %cst_14 = arith.constant 9.99999974E-6 : f32
    %35 = vector.broadcast %cst_14 : f32 to vector<1x128xf32>
    %36 = arith.addf %33, %35 : vector<1x128xf32>
    %37 = math.rsqrt %36 : vector<1x128xf32>
    %38 = arith.mulf %34, %37 : vector<1x128xf32>
    %39 = vector.broadcast %38 : vector<1x128xf32> to vector<64x128xf32>
    %40 = arith.mulf %18, %39 : vector<64x128xf32>
    %c0_15 = arith.constant 0 : index
    %c0_16 = arith.constant 0 : index
    %41 = vector.load %arg4[%c0_15, %c0_16] : memref<1x128xf32, #tpu.memory_space<vmem>>, vector<1x128xf32>
    %42 = vector.broadcast %41 : vector<1x128xf32> to vector<64x128xf32>
    %43 = arith.addf %40, %42 : vector<64x128xf32>
    %cst_17 = arith.constant 0.000000e+00 : f32
    %44 = vector.broadcast %cst_17 : f32 to vector<64x128xf32>
    %45 = arith.maximumf %43, %44 : vector<64x128xf32>
    %46 = arith.truncf %45 : vector<64x128xf32> to vector<64x128xbf16>
    %c0_18 = arith.constant 0 : index
    %c0_19 = arith.constant 0 : index
    %47 = vector.load %arg5[%c0_18, %c0_19] : memref<64x128xbf16, #tpu.memory_space<vmem>>, vector<64x128xbf16>
    tpu.vector_store %arg5[%c0_18, %c0_19], %46 {strides = array<i32>} : memref<64x128xbf16, #tpu.memory_space<vmem>>, vector<64x128xbf16>,
    return
  }
  func.func @transform_0(%arg0: i32) -> (i32, i32) {
    %c0_i32 = arith.constant 0 : i32
    %c0_i32_0 = arith.constant 0 : i32
    %c0_i32_1 = arith.constant 0 : i32
    return %c0_i32, %c0_i32_0 : i32, i32
  }
  func.func @transform_1(%arg0: i32) -> (i32, i32) {
    %c0_i32 = arith.constant 0 : i32
    %c0_i32_0 = arith.constant 0 : i32
    %c0_i32_1 = arith.constant 0 : i32
    return %c0_i32, %c0_i32_0 : i32, i32
  }
  func.func @transform_2(%arg0: i32) -> (i32, i32) {
    %c0_i32 = arith.constant 0 : i32
    %c0_i32_0 = arith.constant 0 : i32
    %c0_i32_1 = arith.constant 0 : i32
    return %c0_i32, %c0_i32_0 : i32, i32
  }
  func.func @transform_3(%arg0: i32) -> (i32, i32) {
    %c0_i32 = arith.constant 0 : i32
    %c0_i32_0 = arith.constant 0 : i32
    %c0_i32_1 = arith.constant 0 : i32
    return %c0_i32, %c0_i32_0 : i32, i32
  }
  func.func @transform_4(%arg0: i32) -> (i32, i32) {
    %c0_i32 = arith.constant 0 : i32
    %c0_i32_0 = arith.constant 0 : i32
    %c0_i32_1 = arith.constant 0 : i32
    return %c0_i32, %c0_i32_0 : i32, i32
  }
}

module attributes {stable_mosaic.version = 11 : i64} {
  func.func @_conv1x1_tanh_kernel(%arg0: i32, %arg1: memref<16x512xbf16, #tpu.memory_space<vmem>>, %arg2: memref<512x384xbf16, #tpu.memory_space<vmem>>, %arg3: memref<1x384xf32, #tpu.memory_space<vmem>>, %arg4: memref<16x384xf32, #tpu.memory_space<vmem>>) attributes {dimension_semantics = [#tpu.dimension_semantics<arbitrary>], iteration_bounds = array<i64: 1>, scalar_prefetch = 0 : i64, scratch_operands = 0 : i64, tpu.core_type = #tpu.core_type<tc>, window_params = [{pipeline_mode = #tpu.pipeline_mode<synchronous>, transform_indices = @transform_0, window_bounds = array<i64: 16, 512>}, {pipeline_mode = #tpu.pipeline_mode<synchronous>, transform_indices = @transform_1, window_bounds = array<i64: 512, 384>}, {pipeline_mode = #tpu.pipeline_mode<synchronous>, transform_indices = @transform_2, window_bounds = array<i64: 1, 384>}, {pipeline_mode = #tpu.pipeline_mode<synchronous>, transform_indices = @transform_3, window_bounds = array<i64: 16, 384>}]} {
    %c0 = arith.constant 0 : index
    %c0_0 = arith.constant 0 : index
    %0 = vector.load %arg1[%c0, %c0_0] : memref<16x512xbf16, #tpu.memory_space<vmem>>, vector<16x512xbf16>
    %c0_1 = arith.constant 0 : index
    %c0_2 = arith.constant 0 : index
    %1 = vector.load %arg2[%c0_1, %c0_2] : memref<512x384xbf16, #tpu.memory_space<vmem>>, vector<512x384xbf16>
    %cst = arith.constant dense<0.000000e+00> : vector<16x384xf32>
    %2 = tpu.matmul %0, %1, %cst {dimension_numbers = #tpu.dot_dimension_numbers<[1], [0], [0], [1], [0, 0, 1, 1], [], []>} : vector<16x512xbf16>, vector<512x384xbf16>, vector<16x384xf32> -> vector<16x384xf32>
    %c0_3 = arith.constant 0 : index
    %c0_4 = arith.constant 0 : index
    %3 = vector.load %arg3[%c0_3, %c0_4] : memref<1x384xf32, #tpu.memory_space<vmem>>, vector<1x384xf32>
    %4 = vector.broadcast %3 : vector<1x384xf32> to vector<16x384xf32>
    %5 = arith.addf %2, %4 : vector<16x384xf32>
    %6 = math.tanh %5 : vector<16x384xf32>
    %c0_5 = arith.constant 0 : index
    %c0_6 = arith.constant 0 : index
    %7 = vector.load %arg4[%c0_5, %c0_6] : memref<16x384xf32, #tpu.memory_space<vmem>>, vector<16x384xf32>
    tpu.vector_store %arg4[%c0_5, %c0_6], %6 {strides = array<i32>} : memref<16x384xf32, #tpu.memory_space<vmem>>, vector<16x384xf32>,
    return
  }
  func.func @transform_0(%arg0: i32) -> (i32, i32) {
    %c0_i32 = arith.constant 0 : i32
    %c0_i32_0 = arith.constant 0 : i32
    %c0_i32_1 = arith.constant 0 : i32
    return %c0_i32, %c0_i32_0 : i32, i32
  }
  func.func @transform_1(%arg0: i32) -> (i32, i32) {
    %c0_i32 = arith.constant 0 : i32
    %c0_i32_0 = arith.constant 0 : i32
    %c0_i32_1 = arith.constant 0 : i32
    return %c0_i32, %c0_i32_0 : i32, i32
  }
  func.func @transform_2(%arg0: i32) -> (i32, i32) {
    %c0_i32 = arith.constant 0 : i32
    %c0_i32_0 = arith.constant 0 : i32
    %c0_i32_1 = arith.constant 0 : i32
    return %c0_i32, %c0_i32_0 : i32, i32
  }
  func.func @transform_3(%arg0: i32) -> (i32, i32) {
    %c0_i32 = arith.constant 0 : i32
    %c0_i32_0 = arith.constant 0 : i32
    %c0_i32_1 = arith.constant 0 : i32
    return %c0_i32, %c0_i32_0 : i32, i32
  }
}

</mosaic_0001>

<llo_original>
// kernel: decoder_forward.6
$region0: #{decoder_forward.6}
  #allocation0 [shape = 'u32[]', space=smem, size = 0x4, offset = 0x4, fixed_abs, tag = 'smem constant byte address 0x4 - core index']
  #allocation1 [shape = 'u32[144,128]{1,0:T(1,128)}', space=vmem, size = 0x12000, scoped, tag = 'internal scratch']
  %s0 = inlined_call_operand.vmem [shape: bf16[2,72], index: 0, kind: input, shape index: {}]
  %s1 = inlined_call_operand.hbm [shape: bf16[72,128], index: 1, kind: input, shape index: {}]
  %s2 = inlined_call_operand.hbm [shape: f32[1,128], index: 2, kind: input, shape index: {}]
  %s3 = inlined_call_operand.hbm [shape: f32[1,128], index: 3, kind: input, shape index: {}]
  %s4 = inlined_call_operand.vmem [shape: bf16[2,128], index: 4, kind: output, shape index: {}]
  %s5 = sld [smem:[#allocation0]]
  $region38: #{decoder_forward.6} parent=0
    _
  %s7 = ssub.s32 1, %s5
  %s8 = scalar_select 0, %s7, %s5
  $region1: #{decoder_forward.6} parent=0
    #allocation2 [shape = 'u8[18432]{0}', space=vmem, size = 0x4800, scoped, tag = 'input window, operand 1, single buffered']
    #allocation3 [shape = 's32[1]{0}', space=sflag, size = 0x4, scoped, tag = 'scoped memory for decoder_forward.6']
    #allocation4 [shape = 'u8[512]{0}', space=vmem, size = 0x400, scoped, tag = 'input window, operand 2, single buffered']
    #allocation5 [shape = 's32[1]{0}', space=sflag, size = 0x4, scoped, tag = 'scoped memory for decoder_forward.6']
    #allocation6 [shape = 'u8[512]{0}', space=vmem, size = 0x400, scoped, tag = 'input window, operand 3, single buffered']
    %9 = vsyncpa [#allocation3], 0
    %10 = vsyncpa [#allocation5], 0
    // Predicated region
    $region2: #{decoder_forward.6} parent=1 // pred_check
      _
    $region3: #{decoder_forward.6} parent=1 // pred_check_branch
      %12 = sbr.rel (0) target = $region5
    $region4: #{decoder_forward.6} parent=1 // pred_region
      _
    $region5: #{decoder_forward.6} parent=1 // pred_fallthru
      _
    // Predicated region
    $region6: #{decoder_forward.6} parent=1 // pred_check
      _
    $region7: #{decoder_forward.6} parent=1 // pred_check_branch
      %14 = sbr.rel (0) target = $region9
    $region8: #{decoder_forward.6} parent=1 // pred_region
      %s16 = ssub.s32 576, 576
      %17 = vsyncadd [#allocation3], %s16
      %s18 = sshll.u32 [#allocation2], 4
      %s19 = int_to_ptr.vmem [resolvable:$true] %s18
      %24 = dma.hbm_to_vmem [thread:$0]  %s1, 576, %s19, [#allocation3], 64, 64, 4
    $region9: #{decoder_forward.6} parent=1 // pred_fallthru
      _
    // Predicated region
    $region10: #{decoder_forward.6} parent=1 // pred_check
      _
    $region11: #{decoder_forward.6} parent=1 // pred_check_branch
      %26 = sbr.rel (0) target = $region13
    $region12: #{decoder_forward.6} parent=1 // pred_region
      %s28 = ssub.s32 16, 16
      %29 = vsyncadd [#allocation5], %s28
      %s31 = sshll.u32 [#allocation4], 4
      %s32 = int_to_ptr.vmem [resolvable:$true] %s31
      %34 = dma.hbm_to_vmem [thread:$0]  %s2, 16, %s32, [#allocation5]
    $region13: #{decoder_forward.6} parent=1 // pred_fallthru
      _
    // Predicated region
    $region14: #{decoder_forward.6} parent=1 // pred_check
      _
    $region15: #{decoder_forward.6} parent=1 // pred_check_branch
      %36 = sbr.rel (0) target = $region17
    $region16: #{decoder_forward.6} parent=1 // pred_region
      %s38 = ssub.s32 16, 16
      %39 = vsyncadd [#allocation5], %s38
      %s41 = sshll.u32 [#allocation6], 4
      %s42 = int_to_ptr.vmem [resolvable:$true] %s41
      %44 = dma.hbm_to_vmem [thread:$0]  %s3, 16, %s42, [#allocation5]
    $region17: #{decoder_forward.6} parent=1 // pred_fallthru
      _
    // Predicated region
    $region18: #{decoder_forward.6} parent=1 // pred_check
      _
    $region19: #{decoder_forward.6} parent=1 // pred_check_branch
      %46 = sbr.rel (0) target = $region21
    $region20: #{decoder_forward.6} parent=1 // pred_region
      %47 = dma.done [#allocation3], 576
    $region21: #{decoder_forward.6} parent=1 // pred_fallthru
      _
    // Predicated region
    $region22: #{decoder_forward.6} parent=1 // pred_check
      _
    $region23: #{decoder_forward.6} parent=1 // pred_check_branch
      %49 = sbr.rel (0) target = $region25
    $region24: #{decoder_forward.6} parent=1 // pred_region
      %50 = dma.done [#allocation5], 16
    $region25: #{decoder_forward.6} parent=1 // pred_fallthru
      _
    // Predicated region
    $region26: #{decoder_forward.6} parent=1 // pred_check
      _
    $region27: #{decoder_forward.6} parent=1 // pred_check_branch
      %52 = sbr.rel (0) target = $region29
    $region28: #{decoder_forward.6} parent=1 // pred_region
      %53 = dma.done [#allocation5], 16
    $region29: #{decoder_forward.6} parent=1 // pred_fallthru
      _
    %v55 = vld [vmem:[%s0] sm:$0x1]
    %v56 = vld [vmem:[#allocation2] sm:$0xf]
    %v57 = vld [vmem:[#allocation2 + $0x4] sm:$0xf]
    %v58 = vld [vmem:[#allocation2 + $0x8] sm:$0xf]
    %v59 = vld [vmem:[#allocation2 + $0xc] sm:$0xf]
    %v60 = vld [vmem:[#allocation2 + $0x10] sm:$0xf]
    %v61 = vld [vmem:[#allocation2 + $0x14] sm:$0xf]
    %v62 = vld [vmem:[#allocation2 + $0x18] sm:$0xf]
    %v63 = vld [vmem:[#allocation2 + $0x1c] sm:$0xf]
    %v64 = vld [vmem:[#allocation2 + $0x20] sm:$0xf]
    %v74 = vunpack.c.l.b16 %v56
    %v75 = vunpack.c.l.b16 %v57
    %v76 = vunpack.c.l.b16 %v58
    %v77 = vunpack.c.l.b16 %v59
    %v78 = vunpack.c.l.b16 %v60
    %v79 = vunpack.c.l.b16 %v61
    %v80 = vunpack.c.l.b16 %v62
    %v81 = vunpack.c.l.b16 %v63
    %v82 = vunpack.c.l.b16 %v64
    %v83 = vpack.c.b16 %v75, %v74
    %v84 = vpack.c.b16 %v77, %v76
    %v85 = vpack.c.b16 %v79, %v78
    %v86 = vpack.c.b16 %v81, %v80
    %v87 = vpack.c.b16 %v82, %v82
    %vm92 = vcmask 588800
    %v94 = vsel %vm92, %v55, 0
    %vm96 = vcmask 1043456
    %v98 = vsel %vm96, %v87, 0
    %100 = vmatprep.subr.bf16.mxu0 0
    %101 = vmatpush1.bf16.msra.mxu0 0
    %102 = vmatprep.subr.bf16.mxu0 0
    %103 = vmatpush1.bf16.msra.mxu0 0
    %104 = vmatprep.subr.bf16.mxu0 0
    %105 = vmatpush1.bf16.msra.mxu0 0
    %106 = vmatprep.subr.bf16.mxu0 0
    %107 = vmatpush1.bf16.msra.mxu0 %v98
    %108 = vmatprep.subr.bf16.mxu0 0
    %109 = vmatpush1.bf16.msra.mxu0 %v86
    %110 = vmatprep.subr.bf16.mxu0 0
    %111 = vmatpush1.bf16.msra.mxu0 %v85
    %112 = vmatprep.subr.bf16.mxu0 0
    %113 = vmatpush1.bf16.msra.mxu0 %v84
    %114 = vmatprep.subr.bf16.mxu0 0
    %115 = vmatpush1.bf16.msra.mxu0 %v83
    %116 = vmatprep.subr.bf16.mxu0 0
    %117 = vmatpush2.bf16.msra.mxu0 0
    %118 = vmatprep.subr.bf16.mxu0 0
    %119 = vmatpush2.bf16.msra.mxu0 0
    %120 = vmatprep.subr.bf16.mxu0 0
    %121 = vmatpush2.bf16.msra.mxu0 0
    %122 = vmatprep.subr.bf16.mxu0 0
    %123 = vmatpush2.bf16.msra.mxu0 0
    %124 = vmatprep.subr.bf16.mxu0 0
    %125 = vmatpush2.bf16.msra.mxu0 0
    %126 = vmatprep.subr.bf16.mxu0 0
    %127 = vmatpush2.bf16.msra.mxu0 0
    %128 = vmatprep.subr.bf16.mxu0 0
    %129 = vmatpush2.bf16.msra.mxu0 0
    %130 = vmatprep.subr.bf16.mxu0 0
    %131 = vmatpush2.bf16.msra.mxu0 0
    %132 = vmatprep.mubr.bf16.mxu0 0
    %133 = vmatmul.mubr.bf16.gmra.mxu0 %v94
    %v134 = vpop.f32.mrf.mxu0
    %v135 = vadd.f32 0.0, %v134
    %v136 = vpop.f32.mrf.mxu0
    %v137 = vpop.f32.mrf.mxu0
    %v138 = vpop.f32.mrf.mxu0
    %139 = vdwg.mxu0
    %vm140 = vcmask 1041408
    %v141 = vsel %vm140, %v135, 0.0
    %v142 = vrot.slane %v141, 4
    %v143 = vadd.f32 %v141, %v142
    %v144 = vrot.slane %v143, 2
    %v145 = vadd.f32 %v143, %v144
    %v146 = vrot.slane %v145, 1
    %v147 = vadd.f32 %v145, %v146
    %148 = vrot.lane.b32.xlu0 %v147, 32
    %v149 = vpop.permute.xlu0 %148
    %v150 = vadd.f32 %v147, %v149
    %151 = vrot.lane.b32.xlu0 %v150, 64
    %v152 = vpop.permute.xlu0 %151
    %v153 = vadd.f32 %v150, %v152
    %v154 = vmul.f32 %v153, 0.125
    %v155 = vlaneseq
    %v156 = vshrl.u32 %v155, 7
    %v157 = vsub.s32 0, %v156
    %v158 = vrot.slane %v154, %v157
    %v159 = vsub.f32 %v135, %v158
    %v160 = vmul.f32 %v159, %v159
    %v161 = vsel %vm140, %v160, 0.0
    %v162 = vrot.slane %v161, 4
    %v163 = vadd.f32 %v161, %v162
    %v164 = vrot.slane %v163, 2
    %v165 = vadd.f32 %v163, %v164
    %v166 = vrot.slane %v165, 1
    %v167 = vadd.f32 %v165, %v166
    %168 = vrot.lane.b32.xlu0 %v167, 32
    %v169 = vpop.permute.xlu0 %168
    %v170 = vadd.f32 %v167, %v169
    %171 = vrot.lane.b32.xlu0 %v170, 64
    %v172 = vpop.permute.xlu0 %171
    %v173 = vadd.f32 %v170, %v172
    %v174 = vmul.f32 %v173, 0.125
    %v175 = vld [vmem:[#allocation4] sm:$0x1]
    %v176 = vadd.f32 %v174, 1e-05
    %v177 = vrsqrt.pop %v176
    %v178 = vmul.f32 %v175, %v177
    %v180 = vlaneseq
    %v181 = vshrl.u32 %v180, 7
    %v182 = vsub.s32 0, %v181
    %v183 = vrot.slane %v178, %v182
    %v185 = vmul.f32 %v159, %v183
    %v186 = vld [vmem:[#allocation6] sm:$0x1]
    %v188 = vlaneseq
    %v189 = vshrl.u32 %v188, 7
    %v190 = vsub.s32 0, %v189
    %v191 = vrot.slane %v186, %v190
    %v193 = vadd.f32 %v185, %v191
    %v194 = vmax.f32 %v193, 0.0
    %v195 = vpack.c.bf16 %v194, %v194
    %196 = vst [vmem:[%s4] sm:$0x1] %v195
    // Predicated region
    $region30: #{decoder_forward.6} parent=1 // pred_check
      _
    $region31: #{decoder_forward.6} parent=1 // pred_check_branch
      %198 = sbr.rel (0) target = $region33
    $region32: #{decoder_forward.6} parent=1 // pred_region
      _
    $region33: #{decoder_forward.6} parent=1 // pred_fallthru
      _
    // Predicated region
    $region34: #{decoder_forward.6} parent=1 // pred_check
      _
    $region35: #{decoder_forward.6} parent=1 // pred_check_branch
      %200 = sbr.rel (0) target = $region37
    $region36: #{decoder_forward.6} parent=1 // pred_region
      _
    $region37: #{decoder_forward.6} parent=1 // pred_fallthru
      _
    %201 = vsyncpa [#allocation3], 1
    %202 = vsyncpa [#allocation5], 1

// kernel: decoder_forward.7
$region0: #{decoder_forward.7}
  #allocation0 [shape = 'u32[]', space=smem, size = 0x4, offset = 0x4, fixed_abs, tag = 'smem constant byte address 0x4 - core index']
  #allocation1 [shape = 'u32[144,128]{1,0:T(1,128)}', space=vmem, size = 0x12000, scoped, tag = 'internal scratch']
  %s0 = inlined_call_operand.vmem [shape: bf16[8,288], index: 0, kind: input, shape index: {}]
  %s1 = inlined_call_operand.vmem [shape: bf16[288,128], index: 1, kind: input, shape index: {}]
  %s2 = inlined_call_operand.vmem [shape: f32[1,128], index: 2, kind: input, shape index: {}]
  %s3 = inlined_call_operand.vmem [shape: f32[1,128], index: 3, kind: input, shape index: {}]
  %s4 = inlined_call_operand.vmem [shape: bf16[8,128], index: 4, kind: output, shape index: {}]
  %s5 = sld [smem:[#allocation0]]
  $region26: #{decoder_forward.7} parent=0
    _
  %s7 = ssub.s32 1, %s5
  %s8 = scalar_select 0, %s7, %s5
  // Predicated region
  $region2: #{decoder_forward.7} parent=0 // pred_check
    _
  $region3: #{decoder_forward.7} parent=0 // pred_check_branch
    %10 = sbr.rel (0) target = $region5
  $region4: #{decoder_forward.7} parent=0 // pred_region
    _
  $region5: #{decoder_forward.7} parent=0 // pred_fallthru
    _
  // Predicated region
  $region6: #{decoder_forward.7} parent=0 // pred_check
    _
  $region7: #{decoder_forward.7} parent=0 // pred_check_branch
    %12 = sbr.rel (0) target = $region9
  $region8: #{decoder_forward.7} parent=0 // pred_region
    _
  $region9: #{decoder_forward.7} parent=0 // pred_fallthru
    _
  // Predicated region
  $region10: #{decoder_forward.7} parent=0 // pred_check
    _
  $region11: #{decoder_forward.7} parent=0 // pred_check_branch
    %14 = sbr.rel (0) target = $region13
  $region12: #{decoder_forward.7} parent=0 // pred_region
    _
  $region13: #{decoder_forward.7} parent=0 // pred_fallthru
    _
  // Predicated region
  $region14: #{decoder_forward.7} parent=0 // pred_check
    _
  $region15: #{decoder_forward.7} parent=0 // pred_check_branch
    %16 = sbr.rel (0) target = $region17
  $region16: #{decoder_forward.7} parent=0 // pred_region
    _
  $region17: #{decoder_forward.7} parent=0 // pred_fallthru
    _
  %v18 = vld [vmem:[%s0] sm:$0xff]
  %v19 = vld [vmem:[%s0 + $0x8] sm:$0xf]
  %v20 = vld [vmem:[%s1] sm:$0xf]
  %v21 = vld [vmem:[%s1 + $0x4] sm:$0xf]
  %v22 = vld [vmem:[%s1 + $0x8] sm:$0xf]
  %v23 = vld [vmem:[%s1 + $0xc] sm:$0xf]
  %v24 = vld [vmem:[%s1 + $0x10] sm:$0xf]
  %v25 = vld [vmem:[%s1 + $0x14] sm:$0xf]
  %v26 = vld [vmem:[%s1 + $0x18] sm:$0xf]
  %v27 = vld [vmem:[%s1 + $0x1c] sm:$0xf]
  %v28 = vld [vmem:[%s1 + $0x20] sm:$0xf]
  %v29 = vld [vmem:[%s1 + $0x24] sm:$0xf]
  %v30 = vld [vmem:[%s1 + $0x28] sm:$0xf]
  %v31 = vld [vmem:[%s1 + $0x2c] sm:$0xf]
  %v32 = vld [vmem:[%s1 + $0x30] sm:$0xf]
  %v33 = vld [vmem:[%s1 + $0x34] sm:$0xf]
  %v34 = vld [vmem:[%s1 + $0x38] sm:$0xf]
  %v35 = vld [vmem:[%s1 + $0x3c] sm:$0xf]
  %v36 = vld [vmem:[%s1 + $0x40] sm:$0xf]
  %v37 = vld [vmem:[%s1 + $0x44] sm:$0xf]
  %v38 = vld [vmem:[%s1 + $0x48] sm:$0xf]
  %v39 = vld [vmem:[%s1 + $0x4c] sm:$0xf]
  %v40 = vld [vmem:[%s1 + $0x50] sm:$0xf]
  %v41 = vld [vmem:[%s1 + $0x54] sm:$0xf]
  %v42 = vld [vmem:[%s1 + $0x58] sm:$0xf]
  %v43 = vld [vmem:[%s1 + $0x5c] sm:$0xf]
  %v44 = vld [vmem:[%s1 + $0x60] sm:$0xf]
  %v45 = vld [vmem:[%s1 + $0x64] sm:$0xf]
  %v46 = vld [vmem:[%s1 + $0x68] sm:$0xf]
  %v47 = vld [vmem:[%s1 + $0x6c] sm:$0xf]
  %v48 = vld [vmem:[%s1 + $0x70] sm:$0xf]
  %v49 = vld [vmem:[%s1 + $0x74] sm:$0xf]
  %v50 = vld [vmem:[%s1 + $0x78] sm:$0xf]
  %v51 = vld [vmem:[%s1 + $0x7c] sm:$0xf]
  %v52 = vld [vmem:[%s1 + $0x80] sm:$0xf]
  %v53 = vld [vmem:[%s1 + $0x84] sm:$0xf]
  %v54 = vld [vmem:[%s1 + $0x88] sm:$0xf]
  %v55 = vld [vmem:[%s1 + $0x8c] sm:$0xf]
  %v58 = vunpack.c.l.b16 %v18
  %v59 = vunpack.c.h.b16 %v18
  %v60 = vunpack.c.l.b16 %v19
  %v61 = vpack.c.b16 %v58, %v58
  %v62 = vpack.c.b16 %v59, %v59
  %v63 = vpack.c.b16 %v60, %v60
  %v102 = vunpack.c.l.b16 %v20
  %v103 = vunpack.c.l.b16 %v21
  %v104 = vunpack.c.l.b16 %v22
  %v105 = vunpack.c.l.b16 %v23
  %v106 = vunpack.c.l.b16 %v24
  %v107 = vunpack.c.l.b16 %v25
  %v108 = vunpack.c.l.b16 %v26
  %v109 = vunpack.c.l.b16 %v27
  %v110 = vunpack.c.l.b16 %v28
  %v111 = vunpack.c.l.b16 %v29
  %v112 = vunpack.c.l.b16 %v30
  %v113 = vunpack.c.l.b16 %v31
  %v114 = vunpack.c.l.b16 %v32
  %v115 = vunpack.c.l.b16 %v33
  %v116 = vunpack.c.l.b16 %v34
  %v117 = vunpack.c.l.b16 %v35
  %v118 = vunpack.c.l.b16 %v36
  %v119 = vunpack.c.l.b16 %v37
  %v120 = vunpack.c.l.b16 %v38
  %v121 = vunpack.c.l.b16 %v39
  %v122 = vunpack.c.l.b16 %v40
  %v123 = vunpack.c.l.b16 %v41
  %v124 = vunpack.c.l.b16 %v42
  %v125 = vunpack.c.l.b16 %v43
  %v126 = vunpack.c.l.b16 %v44
  %v127 = vunpack.c.l.b16 %v45
  %v128 = vunpack.c.l.b16 %v46
  %v129 = vunpack.c.l.b16 %v47
  %v130 = vunpack.c.l.b16 %v48
  %v131 = vunpack.c.l.b16 %v49
  %v132 = vunpack.c.l.b16 %v50
  %v133 = vunpack.c.l.b16 %v51
  %v134 = vunpack.c.l.b16 %v52
  %v135 = vunpack.c.l.b16 %v53
  %v136 = vunpack.c.l.b16 %v54
  %v137 = vunpack.c.l.b16 %v55
  %v138 = vpack.c.b16 %v103, %v102
  %v139 = vpack.c.b16 %v105, %v104
  %v140 = vpack.c.b16 %v107, %v106
  %v141 = vpack.c.b16 %v109, %v108
  %v142 = vpack.c.b16 %v111, %v110
  %v143 = vpack.c.b16 %v113, %v112
  %v144 = vpack.c.b16 %v115, %v114
  %v145 = vpack.c.b16 %v117, %v116
  %v146 = vpack.c.b16 %v119, %v118
  %v147 = vpack.c.b16 %v121, %v120
  %v148 = vpack.c.b16 %v123, %v122
  %v149 = vpack.c.b16 %v125, %v124
  %v150 = vpack.c.b16 %v127, %v126
  %v151 = vpack.c.b16 %v129, %v128
  %v152 = vpack.c.b16 %v131, %v130
  %v153 = vpack.c.b16 %v133, %v132
  %v154 = vpack.c.b16 %v135, %v134
  %v155 = vpack.c.b16 %v137, %v136
  %vm174 = vcmask 261120
  %v176 = vsel %vm174, %v63, 0
  %178 = vmatprep.subr.bf16.mxu0 0
  %179 = vmatpush1.bf16.msra.mxu0 %v145
  %180 = vmatprep.subr.bf16.mxu0 0
  %181 = vmatpush1.bf16.msra.mxu0 %v144
  %182 = vmatprep.subr.bf16.mxu0 0
  %183 = vmatpush1.bf16.msra.mxu0 %v143
  %184 = vmatprep.subr.bf16.mxu0 0
  %185 = vmatpush1.bf16.msra.mxu0 %v142
  %186 = vmatprep.subr.bf16.mxu0 0
  %187 = vmatpush1.bf16.msra.mxu0 %v141
  %188 = vmatprep.subr.bf16.mxu0 0
  %189 = vmatpush1.bf16.msra.mxu0 %v140
  %190 = vmatprep.subr.bf16.mxu0 0
  %191 = vmatpush1.bf16.msra.mxu0 %v139
  %192 = vmatprep.subr.bf16.mxu0 0
  %193 = vmatpush1.bf16.msra.mxu0 %v138
  %194 = vmatprep.subr.bf16.mxu0 0
  %195 = vmatpush2.bf16.msra.mxu0 %v153
  %196 = vmatprep.subr.bf16.mxu0 0
  %197 = vmatpush2.bf16.msra.mxu0 %v152
  %198 = vmatprep.subr.bf16.mxu0 0
  %199 = vmatpush2.bf16.msra.mxu0 %v151
  %200 = vmatprep.subr.bf16.mxu0 0
  %201 = vmatpush2.bf16.msra.mxu0 %v150
  %202 = vmatprep.subr.bf16.mxu0 0
  %203 = vmatpush2.bf16.msra.mxu0 %v149
  %204 = vmatprep.subr.bf16.mxu0 0
  %205 = vmatpush2.bf16.msra.mxu0 %v148
  %206 = vmatprep.subr.bf16.mxu0 0
  %207 = vmatpush2.bf16.msra.mxu0 %v147
  %208 = vmatprep.subr.bf16.mxu0 0
  %209 = vmatpush2.bf16.msra.mxu0 %v146
  %210 = vmatprep.mubr.bf16.mxu0 %v62
  %211 = vmatmul.mubr.bf16.gmra.mxu0 %v61
  %v212 = vpop.f32.mrf.mxu0
  %v213 = vadd.f32 0.0, %v212
  %v214 = vpop.f32.mrf.mxu0
  %v215 = vpop.f32.mrf.mxu0
  %v216 = vpop.f32.mrf.mxu0
  %217 = vdwg.mxu0
  %218 = vmatprep.subr.bf16.mxu0 0
  %219 = vmatpush1.bf16.msra.mxu0 0
  %220 = vmatprep.subr.bf16.mxu0 0
  %221 = vmatpush1.bf16.msra.mxu0 0
  %222 = vmatprep.subr.bf16.mxu0 0
  %223 = vmatpush1.bf16.msra.mxu0 0
  %224 = vmatprep.subr.bf16.mxu0 0
  %225 = vmatpush1.bf16.msra.mxu0 0
  %226 = vmatprep.subr.bf16.mxu0 0
  %227 = vmatpush1.bf16.msra.mxu0 0
  %228 = vmatprep.subr.bf16.mxu0 0
  %229 = vmatpush1.bf16.msra.mxu0 0
  %230 = vmatprep.subr.bf16.mxu0 0
  %231 = vmatpush1.bf16.msra.mxu0 %v155
  %232 = vmatprep.subr.bf16.mxu0 0
  %233 = vmatpush1.bf16.msra.mxu0 %v154
  %234 = vmatprep.subr.bf16.mxu0 0
  %235 = vmatpush2.bf16.msra.mxu0 0
  %236 = vmatprep.subr.bf16.mxu0 0
  %237 = vmatpush2.bf16.msra.mxu0 0
  %238 = vmatprep.subr.bf16.mxu0 0
  %239 = vmatpush2.bf16.msra.mxu0 0
  %240 = vmatprep.subr.bf16.mxu0 0
  %241 = vmatpush2.bf16.msra.mxu0 0
  %242 = vmatprep.subr.bf16.mxu0 0
  %243 = vmatpush2.bf16.msra.mxu0 0
  %244 = vmatprep.subr.bf16.mxu0 0
  %245 = vmatpush2.bf16.msra.mxu0 0
  %246 = vmatprep.subr.bf16.mxu0 0
  %247 = vmatpush2.bf16.msra.mxu0 0
  %248 = vmatprep.subr.bf16.mxu0 0
  %249 = vmatpush2.bf16.msra.mxu0 0
  %250 = vmatprep.mubr.bf16.mxu0 0
  %251 = vmatmul.mubr.bf16.gmra.mxu0 %v176
  %v252 = vpop.f32.mrf.mxu0
  %v253 = vadd.f32 %v213, %v252
  %v254 = vpop.f32.mrf.mxu0
  %v255 = vpop.f32.mrf.mxu0
  %v256 = vpop.f32.mrf.mxu0
  %257 = vdwg.mxu0
  %v258 = vrot.slane %v253, 4
  %v259 = vadd.f32 %v253, %v258
  %v260 = vrot.slane %v259, 2
  %v261 = vadd.f32 %v259, %v260
  %v262 = vrot.slane %v261, 1
  %v263 = vadd.f32 %v261, %v262
  %264 = vrot.lane.b32.xlu0 %v263, 32
  %v265 = vpop.permute.xlu0 %264
  %v266 = vadd.f32 %v263, %v265
  %267 = vrot.lane.b32.xlu0 %v266, 64
  %v268 = vpop.permute.xlu0 %267
  %v269 = vadd.f32 %v266, %v268
  %v270 = vmul.f32 %v269, 0.03125
  %v271 = vlaneseq
  %v272 = vshrl.u32 %v271, 7
  %v273 = vsub.s32 0, %v272
  %v274 = vrot.slane %v270, %v273
  %v275 = vsub.f32 %v253, %v274
  %v276 = vmul.f32 %v275, %v275
  %v277 = vrot.slane %v276, 4
  %v278 = vadd.f32 %v276, %v277
  %v279 = vrot.slane %v278, 2
  %v280 = vadd.f32 %v278, %v279
  %v281 = vrot.slane %v280, 1
  %v282 = vadd.f32 %v280, %v281
  %283 = vrot.lane.b32.xlu0 %v282, 32
  %v284 = vpop.permute.xlu0 %283
  %v285 = vadd.f32 %v282, %v284
  %286 = vrot.lane.b32.xlu0 %v285, 64
  %v287 = vpop.permute.xlu0 %286
  %v288 = vadd.f32 %v285, %v287
  %v289 = vmul.f32 %v288, 0.03125
  %v290 = vld [vmem:[%s2] sm:$0x1]
  %v291 = vadd.f32 %v289, 1e-05
  %v292 = vrsqrt.pop %v291
  %v293 = vmul.f32 %v290, %v292
  %v295 = vlaneseq
  %v296 = vshrl.u32 %v295, 7
  %v297 = vsub.s32 0, %v296
  %v298 = vrot.slane %v293, %v297
  %v300 = vmul.f32 %v275, %v298
  %v301 = vld [vmem:[%s3] sm:$0x1]
  %v303 = vlaneseq
  %v304 = vshrl.u32 %v303, 7
  %v305 = vsub.s32 0, %v304
  %v306 = vrot.slane %v301, %v305
  %v308 = vadd.f32 %v300, %v306
  %v309 = vmax.f32 %v308, 0.0
  %v310 = vpack.c.bf16 %v309, %v309
  %311 = vst [vmem:[%s4] sm:$0xf] %v310
  // Predicated region
  $region18: #{decoder_forward.7} parent=0 // pred_check
    _
  $region19: #{decoder_forward.7} parent=0 // pred_check_branch
    %313 = sbr.rel (0) target = $region21
  $region20: #{decoder_forward.7} parent=0 // pred_region
    _
  $region21: #{decoder_forward.7} parent=0 // pred_fallthru
    _
  // Predicated region
  $region22: #{decoder_forward.7} parent=0 // pred_check
    _
  $region23: #{decoder_forward.7} parent=0 // pred_check_branch
    %315 = sbr.rel (0) target = $region25
  $region24: #{decoder_forward.7} parent=0 // pred_region
    _
  $region25: #{decoder_forward.7} parent=0 // pred_fallthru
    _

// kernel: decoder_forward.8
$region0: #{decoder_forward.8}
  #allocation0 [shape = 'u32[]', space=smem, size = 0x4, offset = 0x4, fixed_abs, tag = 'smem constant byte address 0x4 - core index']
  #allocation1 [shape = 'u32[144,128]{1,0:T(1,128)}', space=vmem, size = 0x12000, scoped, tag = 'internal scratch']
  %s0 = inlined_call_operand.vmem [shape: bf16[16,576], index: 0, kind: input, shape index: {}]
  %s1 = inlined_call_operand.vmem [shape: bf16[576,128], index: 1, kind: input, shape index: {}]
  %s2 = inlined_call_operand.vmem [shape: f32[1,128], index: 2, kind: input, shape index: {}]
  %s3 = inlined_call_operand.vmem [shape: f32[1,128], index: 3, kind: input, shape index: {}]
  %s4 = inlined_call_operand.vmem [shape: bf16[16,128], index: 4, kind: output, shape index: {}]
  %s5 = sld [smem:[#allocation0]]
  $region26: #{decoder_forward.8} parent=0
    _
  %s7 = ssub.s32 1, %s5
  %s8 = scalar_select 0, %s7, %s5
  // Predicated region
  $region2: #{decoder_forward.8} parent=0 // pred_check
    _
  $region3: #{decoder_forward.8} parent=0 // pred_check_branch
    %10 = sbr.rel (0) target = $region5
  $region4: #{decoder_forward.8} parent=0 // pred_region
    _
  $region5: #{decoder_forward.8} parent=0 // pred_fallthru
    _
  // Predicated region
  $region6: #{decoder_forward.8} parent=0 // pred_check
    _
  $region7: #{decoder_forward.8} parent=0 // pred_check_branch
    %12 = sbr.rel (0) target = $region9
  $region8: #{decoder_forward.8} parent=0 // pred_region
    _
  $region9: #{decoder_forward.8} parent=0 // pred_fallthru
    _
  // Predicated region
  $region10: #{decoder_forward.8} parent=0 // pred_check
    _
  $region11: #{decoder_forward.8} parent=0 // pred_check_branch
    %14 = sbr.rel (0) target = $region13
  $region12: #{decoder_forward.8} parent=0 // pred_region
    _
  $region13: #{decoder_forward.8} parent=0 // pred_fallthru
    _
  // Predicated region
  $region14: #{decoder_forward.8} parent=0 // pred_check
    _
  $region15: #{decoder_forward.8} parent=0 // pred_check_branch
    %16 = sbr.rel (0) target = $region17
  $region16: #{decoder_forward.8} parent=0 // pred_region
    _
  $region17: #{decoder_forward.8} parent=0 // pred_fallthru
    _
  %v18 = vld [vmem:[%s0] sm:$0xff]
  %v19 = vld [vmem:[%s0 + $0x8] sm:$0xff]
  %v20 = vld [vmem:[%s0 + $0x10] sm:$0xf]
  %v21 = vld [vmem:[%s0 + $0x14] sm:$0xff]
  %v22 = vld [vmem:[%s0 + $0x1c] sm:$0xff]
  %v23 = vld [vmem:[%s0 + $0x24] sm:$0xf]
  %v24 = vld [vmem:[%s1] sm:$0xf]
  %v25 = vld [vmem:[%s1 + $0x4] sm:$0xf]
  %v26 = vld [vmem:[%s1 + $0x8] sm:$0xf]
  %v27 = vld [vmem:[%s1 + $0xc] sm:$0xf]
  %v28 = vld [vmem:[%s1 + $0x10] sm:$0xf]
  %v29 = vld [vmem:[%s1 + $0x14] sm:$0xf]
  %v30 = vld [vmem:[%s1 + $0x18] sm:$0xf]
  %v31 = vld [vmem:[%s1 + $0x1c] sm:$0xf]
  %v32 = vld [vmem:[%s1 + $0x20] sm:$0xf]
  %v33 = vld [vmem:[%s1 + $0x24] sm:$0xf]
  %v34 = vld [vmem:[%s1 + $0x28] sm:$0xf]
  %v35 = vld [vmem:[%s1 + $0x2c] sm:$0xf]
  %v36 = vld [vmem:[%s1 + $0x30] sm:$0xf]
  %v37 = vld [vmem:[%s1 + $0x34] sm:$0xf]
  %v38 = vld [vmem:[%s1 + $0x38] sm:$0xf]
  %v39 = vld [vmem:[%s1 + $0x3c] sm:$0xf]
  %v40 = vld [vmem:[%s1 + $0x40] sm:$0xf]
  %v41 = vld [vmem:[%s1 + $0x44] sm:$0xf]
  %v42 = vld [vmem:[%s1 + $0x48] sm:$0xf]
  %v43 = vld [vmem:[%s1 + $0x4c] sm:$0xf]
  %v44 = vld [vmem:[%s1 + $0x50] sm:$0xf]
  %v45 = vld [vmem:[%s1 + $0x54] sm:$0xf]
  %v46 = vld [vmem:[%s1 + $0x58] sm:$0xf]
  %v47 = vld [vmem:[%s1 + $0x5c] sm:$0xf]
  %v48 = vld [vmem:[%s1 + $0x60] sm:$0xf]
  %v49 = vld [vmem:[%s1 + $0x64] sm:$0xf]
  %v50 = vld [vmem:[%s1 + $0x68] sm:$0xf]
  %v51 = vld [vmem:[%s1 + $0x6c] sm:$0xf]
  %v52 = vld [vmem:[%s1 + $0x70] sm:$0xf]
  %v53 = vld [vmem:[%s1 + $0x74] sm:$0xf]
  %v54 = vld [vmem:[%s1 + $0x78] sm:$0xf]
  %v55 = vld [vmem:[%s1 + $0x7c] sm:$0xf]
  %v56 = vld [vmem:[%s1 + $0x80] sm:$0xf]
  %v57 = vld [vmem:[%s1 + $0x84] sm:$0xf]
  %v58 = vld [vmem:[%s1 + $0x88] sm:$0xf]
  %v59 = vld [vmem:[%s1 + $0x8c] sm:$0xf]
  %v60 = vld [vmem:[%s1 + $0x90] sm:$0xf]
  %v61 = vld [vmem:[%s1 + $0x94] sm:$0xf]
  %v62 = vld [vmem:[%s1 + $0x98] sm:$0xf]
  %v63 = vld [vmem:[%s1 + $0x9c] sm:$0xf]
  %v64 = vld [vmem:[%s1 + $0xa0] sm:$0xf]
  %v65 = vld [vmem:[%s1 + $0xa4] sm:$0xf]
  %v66 = vld [vmem:[%s1 + $0xa8] sm:$0xf]
  %v67 = vld [vmem:[%s1 + $0xac] sm:$0xf]
  %v68 = vld [vmem:[%s1 + $0xb0] sm:$0xf]
  %v69 = vld [vmem:[%s1 + $0xb4] sm:$0xf]
  %v70 = vld [vmem:[%s1 + $0xb8] sm:$0xf]
  %v71 = vld [vmem:[%s1 + $0xbc] sm:$0xf]
  %v72 = vld [vmem:[%s1 + $0xc0] sm:$0xf]
  %v73 = vld [vmem:[%s1 + $0xc4] sm:$0xf]
  %v74 = vld [vmem:[%s1 + $0xc8] sm:$0xf]
  %v75 = vld [vmem:[%s1 + $0xcc] sm:$0xf]
  %v76 = vld [vmem:[%s1 + $0xd0] sm:$0xf]
  %v77 = vld [vmem:[%s1 + $0xd4] sm:$0xf]
  %v78 = vld [vmem:[%s1 + $0xd8] sm:$0xf]
  %v79 = vld [vmem:[%s1 + $0xdc] sm:$0xf]
  %v80 = vld [vmem:[%s1 + $0xe0] sm:$0xf]
  %v81 = vld [vmem:[%s1 + $0xe4] sm:$0xf]
  %v82 = vld [vmem:[%s1 + $0xe8] sm:$0xf]
  %v83 = vld [vmem:[%s1 + $0xec] sm:$0xf]
  %v84 = vld [vmem:[%s1 + $0xf0] sm:$0xf]
  %v85 = vld [vmem:[%s1 + $0xf4] sm:$0xf]
  %v86 = vld [vmem:[%s1 + $0xf8] sm:$0xf]
  %v87 = vld [vmem:[%s1 + $0xfc] sm:$0xf]
  %v88 = vld [vmem:[%s1 + $0x100] sm:$0xf]
  %v89 = vld [vmem:[%s1 + $0x104] sm:$0xf]
  %v90 = vld [vmem:[%s1 + $0x108] sm:$0xf]
  %v91 = vld [vmem:[%s1 + $0x10c] sm:$0xf]
  %v92 = vld [vmem:[%s1 + $0x110] sm:$0xf]
  %v93 = vld [vmem:[%s1 + $0x114] sm:$0xf]
  %v94 = vld [vmem:[%s1 + $0x118] sm:$0xf]
  %v95 = vld [vmem:[%s1 + $0x11c] sm:$0xf]
  %v102 = vunpack.c.l.b16 %v18
  %v103 = vunpack.c.h.b16 %v18
  %v104 = vunpack.c.l.b16 %v19
  %v105 = vunpack.c.h.b16 %v19
  %v106 = vunpack.c.l.b16 %v20
  %v107 = vunpack.c.l.b16 %v21
  %v108 = vunpack.c.h.b16 %v21
  %v109 = vunpack.c.l.b16 %v22
  %v110 = vunpack.c.h.b16 %v22
  %v111 = vunpack.c.l.b16 %v23
  %v112 = vpack.c.b16 %v107, %v102
  %v113 = vpack.c.b16 %v108, %v103
  %v114 = vpack.c.b16 %v109, %v104
  %v115 = vpack.c.b16 %v110, %v105
  %v116 = vpack.c.b16 %v111, %v106
  %v193 = vunpack.c.l.b16 %v24
  %v194 = vunpack.c.l.b16 %v25
  %v195 = vunpack.c.l.b16 %v26
  %v196 = vunpack.c.l.b16 %v27
  %v197 = vunpack.c.l.b16 %v28
  %v198 = vunpack.c.l.b16 %v29
  %v199 = vunpack.c.l.b16 %v30
  %v200 = vunpack.c.l.b16 %v31
  %v201 = vunpack.c.l.b16 %v32
  %v202 = vunpack.c.l.b16 %v33
  %v203 = vunpack.c.l.b16 %v34
  %v204 = vunpack.c.l.b16 %v35
  %v205 = vunpack.c.l.b16 %v36
  %v206 = vunpack.c.l.b16 %v37
  %v207 = vunpack.c.l.b16 %v38
  %v208 = vunpack.c.l.b16 %v39
  %v209 = vunpack.c.l.b16 %v40
  %v210 = vunpack.c.l.b16 %v41
  %v211 = vunpack.c.l.b16 %v42
  %v212 = vunpack.c.l.b16 %v43
  %v213 = vunpack.c.l.b16 %v44
  %v214 = vunpack.c.l.b16 %v45
  %v215 = vunpack.c.l.b16 %v46
  %v216 = vunpack.c.l.b16 %v47
  %v217 = vunpack.c.l.b16 %v48
  %v218 = vunpack.c.l.b16 %v49
  %v219 = vunpack.c.l.b16 %v50
  %v220 = vunpack.c.l.b16 %v51
  %v221 = vunpack.c.l.b16 %v52
  %v222 = vunpack.c.l.b16 %v53
  %v223 = vunpack.c.l.b16 %v54
  %v224 = vunpack.c.l.b16 %v55
  %v225 = vunpack.c.l.b16 %v56
  %v226 = vunpack.c.l.b16 %v57
  %v227 = vunpack.c.l.b16 %v58
  %v228 = vunpack.c.l.b16 %v59
  %v229 = vunpack.c.l.b16 %v60
  %v230 = vunpack.c.l.b16 %v61
  %v231 = vunpack.c.l.b16 %v62
  %v232 = vunpack.c.l.b16 %v63
  %v233 = vunpack.c.l.b16 %v64
  %v234 = vunpack.c.l.b16 %v65
  %v235 = vunpack.c.l.b16 %v66
  %v236 = vunpack.c.l.b16 %v67
  %v237 = vunpack.c.l.b16 %v68
  %v238 = vunpack.c.l.b16 %v69
  %v239 = vunpack.c.l.b16 %v70
  %v240 = vunpack.c.l.b16 %v71
  %v241 = vunpack.c.l.b16 %v72
  %v242 = vunpack.c.l.b16 %v73
  %v243 = vunpack.c.l.b16 %v74
  %v244 = vunpack.c.l.b16 %v75
  %v245 = vunpack.c.l.b16 %v76
  %v246 = vunpack.c.l.b16 %v77
  %v247 = vunpack.c.l.b16 %v78
  %v248 = vunpack.c.l.b16 %v79
  %v249 = vunpack.c.l.b16 %v80
  %v250 = vunpack.c.l.b16 %v81
  %v251 = vunpack.c.l.b16 %v82
  %v252 = vunpack.c.l.b16 %v83
  %v253 = vunpack.c.l.b16 %v84
  %v254 = vunpack.c.l.b16 %v85
  %v255 = vunpack.c.l.b16 %v86
  %v256 = vunpack.c.l.b16 %v87
  %v257 = vunpack.c.l.b16 %v88
  %v258 = vunpack.c.l.b16 %v89
  %v259 = vunpack.c.l.b16 %v90
  %v260 = vunpack.c.l.b16 %v91
  %v261 = vunpack.c.l.b16 %v92
  %v262 = vunpack.c.l.b16 %v93
  %v263 = vunpack.c.l.b16 %v94
  %v264 = vunpack.c.l.b16 %v95
  %v265 = vpack.c.b16 %v194, %v193
  %v266 = vpack.c.b16 %v196, %v195
  %v267 = vpack.c.b16 %v198, %v197
  %v268 = vpack.c.b16 %v200, %v199
  %v269 = vpack.c.b16 %v202, %v201
  %v270 = vpack.c.b16 %v204, %v203
  %v271 = vpack.c.b16 %v206, %v205
  %v272 = vpack.c.b16 %v208, %v207
  %v273 = vpack.c.b16 %v210, %v209
  %v274 = vpack.c.b16 %v212, %v211
  %v275 = vpack.c.b16 %v214, %v213
  %v276 = vpack.c.b16 %v216, %v215
  %v277 = vpack.c.b16 %v218, %v217
  %v278 = vpack.c.b16 %v220, %v219
  %v279 = vpack.c.b16 %v222, %v221
  %v280 = vpack.c.b16 %v224, %v223
  %v281 = vpack.c.b16 %v226, %v225
  %v282 = vpack.c.b16 %v228, %v227
  %v283 = vpack.c.b16 %v230, %v229
  %v284 = vpack.c.b16 %v232, %v231
  %v285 = vpack.c.b16 %v234, %v233
  %v286 = vpack.c.b16 %v236, %v235
  %v287 = vpack.c.b16 %v238, %v237
  %v288 = vpack.c.b16 %v240, %v239
  %v289 = vpack.c.b16 %v242, %v241
  %v290 = vpack.c.b16 %v244, %v243
  %v291 = vpack.c.b16 %v246, %v245
  %v292 = vpack.c.b16 %v248, %v247
  %v293 = vpack.c.b16 %v250, %v249
  %v294 = vpack.c.b16 %v252, %v251
  %v295 = vpack.c.b16 %v254, %v253
  %v296 = vpack.c.b16 %v256, %v255
  %v297 = vpack.c.b16 %v258, %v257
  %v298 = vpack.c.b16 %v260, %v259
  %v299 = vpack.c.b16 %v262, %v261
  %v300 = vpack.c.b16 %v264, %v263
  %vm337 = vcmask 523264
  %v339 = vsel %vm337, %v116, 0
  %341 = vmatprep.subr.bf16.mxu0 0
  %342 = vmatpush1.bf16.msra.mxu0 %v272
  %343 = vmatprep.subr.bf16.mxu0 0
  %344 = vmatpush1.bf16.msra.mxu0 %v271
  %345 = vmatprep.subr.bf16.mxu0 0
  %346 = vmatpush1.bf16.msra.mxu0 %v270
  %347 = vmatprep.subr.bf16.mxu0 0
  %348 = vmatpush1.bf16.msra.mxu0 %v269
  %349 = vmatprep.subr.bf16.mxu0 0
  %350 = vmatpush1.bf16.msra.mxu0 %v268
  %351 = vmatprep.subr.bf16.mxu0 0
  %352 = vmatpush1.bf16.msra.mxu0 %v267
  %353 = vmatprep.subr.bf16.mxu0 0
  %354 = vmatpush1.bf16.msra.mxu0 %v266
  %355 = vmatprep.subr.bf16.mxu0 0
  %356 = vmatpush1.bf16.msra.mxu0 %v265
  %357 = vmatprep.subr.bf16.mxu0 0
  %358 = vmatpush2.bf16.msra.mxu0 %v280
  %359 = vmatprep.subr.bf16.mxu0 0
  %360 = vmatpush2.bf16.msra.mxu0 %v279
  %361 = vmatprep.subr.bf16.mxu0 0
  %362 = vmatpush2.bf16.msra.mxu0 %v278
  %363 = vmatprep.subr.bf16.mxu0 0
  %364 = vmatpush2.bf16.msra.mxu0 %v277
  %365 = vmatprep.subr.bf16.mxu0 0
  %366 = vmatpush2.bf16.msra.mxu0 %v276
  %367 = vmatprep.subr.bf16.mxu0 0
  %368 = vmatpush2.bf16.msra.mxu0 %v275
  %369 = vmatprep.subr.bf16.mxu0 0
  %370 = vmatpush2.bf16.msra.mxu0 %v274
  %371 = vmatprep.subr.bf16.mxu0 0
  %372 = vmatpush2.bf16.msra.mxu0 %v273
  %373 = vmatprep.mubr.bf16.mxu0 %v113
  %374 = vmatmul.mubr.bf16.gmra.mxu0 %v112
  %v375 = vpop.f32.mrf.mxu0
  %v376 = vadd.f32 0.0, %v375
  %v377 = vpop.f32.mrf.mxu0
  %v378 = vpop.f32.mrf.mxu0
  %v379 = vadd.f32 0.0, %v378
  %v380 = vpop.f32.mrf.mxu0
  %381 = vdwg.mxu0
  %382 = vmatprep.subr.bf16.mxu0 0
  %383 = vmatpush1.bf16.msra.mxu0 %v288
  %384 = vmatprep.subr.bf16.mxu0 0
  %385 = vmatpush1.bf16.msra.mxu0 %v287
  %386 = vmatprep.subr.bf16.mxu0 0
  %387 = vmatpush1.bf16.msra.mxu0 %v286
  %388 = vmatprep.subr.bf16.mxu0 0
  %389 = vmatpush1.bf16.msra.mxu0 %v285
  %390 = vmatprep.subr.bf16.mxu0 0
  %391 = vmatpush1.bf16.msra.mxu0 %v284
  %392 = vmatprep.subr.bf16.mxu0 0
  %393 = vmatpush1.bf16.msra.mxu0 %v283
  %394 = vmatprep.subr.bf16.mxu0 0
  %395 = vmatpush1.bf16.msra.mxu0 %v282
  %396 = vmatprep.subr.bf16.mxu0 0
  %397 = vmatpush1.bf16.msra.mxu0 %v281
  %398 = vmatprep.subr.bf16.mxu0 0
  %399 = vmatpush2.bf16.msra.mxu0 %v296
  %400 = vmatprep.subr.bf16.mxu0 0
  %401 = vmatpush2.bf16.msra.mxu0 %v295
  %402 = vmatprep.subr.bf16.mxu0 0
  %403 = vmatpush2.bf16.msra.mxu0 %v294
  %404 = vmatprep.subr.bf16.mxu0 0
  %405 = vmatpush2.bf16.msra.mxu0 %v293
  %406 = vmatprep.subr.bf16.mxu0 0
  %407 = vmatpush2.bf16.msra.mxu0 %v292
  %408 = vmatprep.subr.bf16.mxu0 0
  %409 = vmatpush2.bf16.msra.mxu0 %v291
  %410 = vmatprep.subr.bf16.mxu0 0
  %411 = vmatpush2.bf16.msra.mxu0 %v290
  %412 = vmatprep.subr.bf16.mxu0 0
  %413 = vmatpush2.bf16.msra.mxu0 %v289
  %414 = vmatprep.mubr.bf16.mxu0 %v115
  %415 = vmatmul.mubr.bf16.gmra.mxu0 %v114
  %v416 = vpop.f32.mrf.mxu0
  %v417 = vadd.f32 %v376, %v416
  %v418 = vpop.f32.mrf.mxu0
  %v419 = vpop.f32.mrf.mxu0
  %v420 = vadd.f32 %v379, %v419
  %v421 = vpop.f32.mrf.mxu0
  %422 = vdwg.mxu0
  %423 = vmatprep.subr.bf16.mxu0 0
  %424 = vmatpush1.bf16.msra.mxu0 0
  %425 = vmatprep.subr.bf16.mxu0 0
  %426 = vmatpush1.bf16.msra.mxu0 0
  %427 = vmatprep.subr.bf16.mxu0 0
  %428 = vmatpush1.bf16.msra.mxu0 0
  %429 = vmatprep.subr.bf16.mxu0 0
  %430 = vmatpush1.bf16.msra.mxu0 0
  %431 = vmatprep.subr.bf16.mxu0 0
  %432 = vmatpush1.bf16.msra.mxu0 %v300
  %433 = vmatprep.subr.bf16.mxu0 0
  %434 = vmatpush1.bf16.msra.mxu0 %v299
  %435 = vmatprep.subr.bf16.mxu0 0
  %436 = vmatpush1.bf16.msra.mxu0 %v298
  %437 = vmatprep.subr.bf16.mxu0 0
  %438 = vmatpush1.bf16.msra.mxu0 %v297
  %439 = vmatprep.subr.bf16.mxu0 0
  %440 = vmatpush2.bf16.msra.mxu0 0
  %441 = vmatprep.subr.bf16.mxu0 0
  %442 = vmatpush2.bf16.msra.mxu0 0
  %443 = vmatprep.subr.bf16.mxu0 0
  %444 = vmatpush2.bf16.msra.mxu0 0
  %445 = vmatprep.subr.bf16.mxu0 0
  %446 = vmatpush2.bf16.msra.mxu0 0
  %447 = vmatprep.subr.bf16.mxu0 0
  %448 = vmatpush2.bf16.msra.mxu0 0
  %449 = vmatprep.subr.bf16.mxu0 0
  %450 = vmatpush2.bf16.msra.mxu0 0
  %451 = vmatprep.subr.bf16.mxu0 0
  %452 = vmatpush2.bf16.msra.mxu0 0
  %453 = vmatprep.subr.bf16.mxu0 0
  %454 = vmatpush2.bf16.msra.mxu0 0
  %455 = vmatprep.mubr.bf16.mxu0 0
  %456 = vmatmul.mubr.bf16.gmra.mxu0 %v339
  %v457 = vpop.f32.mrf.mxu0
  %v458 = vadd.f32 %v417, %v457
  %v459 = vpop.f32.mrf.mxu0
  %v460 = vpop.f32.mrf.mxu0
  %v461 = vadd.f32 %v420, %v460
  %v462 = vpop.f32.mrf.mxu0
  %463 = vdwg.mxu0
  %v464 = vadd.f32 %v458, %v461
  %v465 = vrot.slane %v464, 4
  %v466 = vadd.f32 %v464, %v465
  %v467 = vrot.slane %v466, 2
  %v468 = vadd.f32 %v466, %v467
  %v469 = vrot.slane %v468, 1
  %v470 = vadd.f32 %v468, %v469
  %471 = vrot.lane.b32.xlu0 %v470, 16
  %v472 = vpop.permute.xlu0 %471
  %v473 = vadd.f32 %v470, %v472
  %474 = vrot.lane.b32.xlu0 %v473, 32
  %v475 = vpop.permute.xlu0 %474
  %v476 = vadd.f32 %v473, %v475
  %477 = vrot.lane.b32.xlu0 %v476, 64
  %v478 = vpop.permute.xlu0 %477
  %v479 = vadd.f32 %v476, %v478
  %v480 = vmul.f32 %v479, 0.0078125
  %v481 = vlaneseq
  %v482 = vshrl.u32 %v481, 7
  %v483 = vsub.s32 0, %v482
  %v484 = vrot.slane %v480, %v483
  %v485 = vsub.f32 %v458, %v484
  %v486 = vsub.f32 %v461, %v484
  %v487 = vmul.f32 %v485, %v485
  %v488 = vmul.f32 %v486, %v486
  %v489 = vadd.f32 %v487, %v488
  %v490 = vrot.slane %v489, 4
  %v491 = vadd.f32 %v489, %v490
  %v492 = vrot.slane %v491, 2
  %v493 = vadd.f32 %v491, %v492
  %v494 = vrot.slane %v493, 1
  %v495 = vadd.f32 %v493, %v494
  %496 = vrot.lane.b32.xlu0 %v495, 16
  %v497 = vpop.permute.xlu0 %496
  %v498 = vadd.f32 %v495, %v497
  %499 = vrot.lane.b32.xlu0 %v498, 32
  %v500 = vpop.permute.xlu0 %499
  %v501 = vadd.f32 %v498, %v500
  %502 = vrot.lane.b32.xlu0 %v501, 64
  %v503 = vpop.permute.xlu0 %502
  %v504 = vadd.f32 %v501, %v503
  %v505 = vmul.f32 %v504, 0.0078125
  %v506 = vld [vmem:[%s2] sm:$0x1]
  %v507 = vadd.f32 %v505, 1e-05
  %v508 = vrsqrt.pop %v507
  %v509 = vmul.f32 %v506, %v508
  %v511 = vlaneseq
  %v512 = vshrl.u32 %v511, 7
  %v513 = vsub.s32 0, %v512
  %v514 = vrot.slane %v509, %v513
  %v516 = vmul.f32 %v485, %v514
  %v517 = vmul.f32 %v486, %v514
  %v518 = vld [vmem:[%s3] sm:$0x1]
  %v520 = vlaneseq
  %v521 = vshrl.u32 %v520, 7
  %v522 = vsub.s32 0, %v521
  %v523 = vrot.slane %v518, %v522
  %v525 = vadd.f32 %v516, %v523
  %v526 = vadd.f32 %v517, %v523
  %v527 = vmax.f32 %v525, 0.0
  %v528 = vmax.f32 %v526, 0.0
  %v529 = vpack.c.bf16 %v528, %v527
  %v531 = vunpack.c.l.b16 %v529
  %v532 = vunpack.c.h.b16 %v529
  %v533 = vpack.c.b16 %v531, %v531
  %v534 = vpack.c.b16 %v532, %v532
  %537 = vst [vmem:[%s4] sm:$0xf] %v533
  %538 = vst [vmem:[%s4 + $0x4] sm:$0xf] %v534
  // Predicated region
  $region18: #{decoder_forward.8} parent=0 // pred_check
    _
  $region19: #{decoder_forward.8} parent=0 // pred_check_branch
    %540 = sbr.rel (0) target = $region21
  $region20: #{decoder_forward.8} parent=0 // pred_region
    _
  $region21: #{decoder_forward.8} parent=0 // pred_fallthru
    _
  // Predicated region
  $region22: #{decoder_forward.8} parent=0 // pred_check
    _
  $region23: #{decoder_forward.8} parent=0 // pred_check_branch
    %542 = sbr.rel (0) target = $region25
  $region24: #{decoder_forward.8} parent=0 // pred_region
    _
  $region25: #{decoder_forward.8} parent=0 // pred_fallthru
    _

// kernel: decoder_forward.9
$region0: #{decoder_forward.9}
  #allocation0 [shape = 'u32[]', space=smem, size = 0x4, offset = 0x4, fixed_abs, tag = 'smem constant byte address 0x4 - core index']
  #allocation1 [shape = 'u32[144,128]{1,0:T(1,128)}', space=vmem, size = 0x12000, scoped, tag = 'internal scratch']
  %s0 = inlined_call_operand.vmem [shape: bf16[32,576], index: 0, kind: input, shape index: {}]
  %s1 = inlined_call_operand.vmem [shape: bf16[576,128], index: 1, kind: input, shape index: {}]
  %s2 = inlined_call_operand.vmem [shape: f32[1,128], index: 2, kind: input, shape index: {}]
  %s3 = inlined_call_operand.vmem [shape: f32[1,128], index: 3, kind: input, shape index: {}]
  %s4 = inlined_call_operand.vmem [shape: bf16[32,128], index: 4, kind: output, shape index: {}]
  %s5 = sld [smem:[#allocation0]]
  $region26: #{decoder_forward.9} parent=0
    _
  %s7 = ssub.s32 1, %s5
  %s8 = scalar_select 0, %s7, %s5
  // Predicated region
  $region2: #{decoder_forward.9} parent=0 // pred_check
    _
  $region3: #{decoder_forward.9} parent=0 // pred_check_branch
    %10 = sbr.rel (0) target = $region5
  $region4: #{decoder_forward.9} parent=0 // pred_region
    _
  $region5: #{decoder_forward.9} parent=0 // pred_fallthru
    _
  // Predicated region
  $region6: #{decoder_forward.9} parent=0 // pred_check
    _
  $region7: #{decoder_forward.9} parent=0 // pred_check_branch
    %12 = sbr.rel (0) target = $region9
  $region8: #{decoder_forward.9} parent=0 // pred_region
    _
  $region9: #{decoder_forward.9} parent=0 // pred_fallthru
    _
  // Predicated region
  $region10: #{decoder_forward.9} parent=0 // pred_check
    _
  $region11: #{decoder_forward.9} parent=0 // pred_check_branch
    %14 = sbr.rel (0) target = $region13
  $region12: #{decoder_forward.9} parent=0 // pred_region
    _
  $region13: #{decoder_forward.9} parent=0 // pred_fallthru
    _
  // Predicated region
  $region14: #{decoder_forward.9} parent=0 // pred_check
    _
  $region15: #{decoder_forward.9} parent=0 // pred_check_branch
    %16 = sbr.rel (0) target = $region17
  $region16: #{decoder_forward.9} parent=0 // pred_region
    _
  $region17: #{decoder_forward.9} parent=0 // pred_fallthru
    _
  %v18 = vld [vmem:[%s0] sm:$0xff]
  %v19 = vld [vmem:[%s0 + $0x8] sm:$0xff]
  %v20 = vld [vmem:[%s0 + $0x10] sm:$0xf]
  %v21 = vld [vmem:[%s0 + $0x14] sm:$0xff]
  %v22 = vld [vmem:[%s0 + $0x1c] sm:$0xff]
  %v23 = vld [vmem:[%s0 + $0x24] sm:$0xf]
  %v24 = vld [vmem:[%s0 + $0x28] sm:$0xff]
  %v25 = vld [vmem:[%s0 + $0x30] sm:$0xff]
  %v26 = vld [vmem:[%s0 + $0x38] sm:$0xf]
  %v27 = vld [vmem:[%s0 + $0x3c] sm:$0xff]
  %v28 = vld [vmem:[%s0 + $0x44] sm:$0xff]
  %v29 = vld [vmem:[%s0 + $0x4c] sm:$0xf]
  %v30 = vld [vmem:[%s1] sm:$0xf]
  %v31 = vld [vmem:[%s1 + $0x4] sm:$0xf]
  %v32 = vld [vmem:[%s1 + $0x8] sm:$0xf]
  %v33 = vld [vmem:[%s1 + $0xc] sm:$0xf]
  %v34 = vld [vmem:[%s1 + $0x10] sm:$0xf]
  %v35 = vld [vmem:[%s1 + $0x14] sm:$0xf]
  %v36 = vld [vmem:[%s1 + $0x18] sm:$0xf]
  %v37 = vld [vmem:[%s1 + $0x1c] sm:$0xf]
  %v38 = vld [vmem:[%s1 + $0x20] sm:$0xf]
  %v39 = vld [vmem:[%s1 + $0x24] sm:$0xf]
  %v40 = vld [vmem:[%s1 + $0x28] sm:$0xf]
  %v41 = vld [vmem:[%s1 + $0x2c] sm:$0xf]
  %v42 = vld [vmem:[%s1 + $0x30] sm:$0xf]
  %v43 = vld [vmem:[%s1 + $0x34] sm:$0xf]
  %v44 = vld [vmem:[%s1 + $0x38] sm:$0xf]
  %v45 = vld [vmem:[%s1 + $0x3c] sm:$0xf]
  %v46 = vld [vmem:[%s1 + $0x40] sm:$0xf]
  %v47 = vld [vmem:[%s1 + $0x44] sm:$0xf]
  %v48 = vld [vmem:[%s1 + $0x48] sm:$0xf]
  %v49 = vld [vmem:[%s1 + $0x4c] sm:$0xf]
  %v50 = vld [vmem:[%s1 + $0x50] sm:$0xf]
  %v51 = vld [vmem:[%s1 + $0x54] sm:$0xf]
  %v52 = vld [vmem:[%s1 + $0x58] sm:$0xf]
  %v53 = vld [vmem:[%s1 + $0x5c] sm:$0xf]
  %v54 = vld [vmem:[%s1 + $0x60] sm:$0xf]
  %v55 = vld [vmem:[%s1 + $0x64] sm:$0xf]
  %v56 = vld [vmem:[%s1 + $0x68] sm:$0xf]
  %v57 = vld [vmem:[%s1 + $0x6c] sm:$0xf]
  %v58 = vld [vmem:[%s1 + $0x70] sm:$0xf]
  %v59 = vld [vmem:[%s1 + $0x74] sm:$0xf]
  %v60 = vld [vmem:[%s1 + $0x78] sm:$0xf]
  %v61 = vld [vmem:[%s1 + $0x7c] sm:$0xf]
  %v62 = vld [vmem:[%s1 + $0x80] sm:$0xf]
  %v63 = vld [vmem:[%s1 + $0x84] sm:$0xf]
  %v64 = vld [vmem:[%s1 + $0x88] sm:$0xf]
  %v65 = vld [vmem:[%s1 + $0x8c] sm:$0xf]
  %v66 = vld [vmem:[%s1 + $0x90] sm:$0xf]
  %v67 = vld [vmem:[%s1 + $0x94] sm:$0xf]
  %v68 = vld [vmem:[%s1 + $0x98] sm:$0xf]
  %v69 = vld [vmem:[%s1 + $0x9c] sm:$0xf]
  %v70 = vld [vmem:[%s1 + $0xa0] sm:$0xf]
  %v71 = vld [vmem:[%s1 + $0xa4] sm:$0xf]
  %v72 = vld [vmem:[%s1 + $0xa8] sm:$0xf]
  %v73 = vld [vmem:[%s1 + $0xac] sm:$0xf]
  %v74 = vld [vmem:[%s1 + $0xb0] sm:$0xf]
  %v75 = vld [vmem:[%s1 + $0xb4] sm:$0xf]
  %v76 = vld [vmem:[%s1 + $0xb8] sm:$0xf]
  %v77 = vld [vmem:[%s1 + $0xbc] sm:$0xf]
  %v78 = vld [vmem:[%s1 + $0xc0] sm:$0xf]
  %v79 = vld [vmem:[%s1 + $0xc4] sm:$0xf]
  %v80 = vld [vmem:[%s1 + $0xc8] sm:$0xf]
  %v81 = vld [vmem:[%s1 + $0xcc] sm:$0xf]
  %v82 = vld [vmem:[%s1 + $0xd0] sm:$0xf]
  %v83 = vld [vmem:[%s1 + $0xd4] sm:$0xf]
  %v84 = vld [vmem:[%s1 + $0xd8] sm:$0xf]
  %v85 = vld [vmem:[%s1 + $0xdc] sm:$0xf]
  %v86 = vld [vmem:[%s1 + $0xe0] sm:$0xf]
  %v87 = vld [vmem:[%s1 + $0xe4] sm:$0xf]
  %v88 = vld [vmem:[%s1 + $0xe8] sm:$0xf]
  %v89 = vld [vmem:[%s1 + $0xec] sm:$0xf]
  %v90 = vld [vmem:[%s1 + $0xf0] sm:$0xf]
  %v91 = vld [vmem:[%s1 + $0xf4] sm:$0xf]
  %v92 = vld [vmem:[%s1 + $0xf8] sm:$0xf]
  %v93 = vld [vmem:[%s1 + $0xfc] sm:$0xf]
  %v94 = vld [vmem:[%s1 + $0x100] sm:$0xf]
  %v95 = vld [vmem:[%s1 + $0x104] sm:$0xf]
  %v96 = vld [vmem:[%s1 + $0x108] sm:$0xf]
  %v97 = vld [vmem:[%s1 + $0x10c] sm:$0xf]
  %v98 = vld [vmem:[%s1 + $0x110] sm:$0xf]
  %v99 = vld [vmem:[%s1 + $0x114] sm:$0xf]
  %v100 = vld [vmem:[%s1 + $0x118] sm:$0xf]
  %v101 = vld [vmem:[%s1 + $0x11c] sm:$0xf]
  %v114 = vunpack.c.l.b16 %v18
  %v115 = vunpack.c.h.b16 %v18
  %v116 = vunpack.c.l.b16 %v19
  %v117 = vunpack.c.h.b16 %v19
  %v118 = vunpack.c.l.b16 %v20
  %v119 = vunpack.c.l.b16 %v21
  %v120 = vunpack.c.h.b16 %v21
  %v121 = vunpack.c.l.b16 %v22
  %v122 = vunpack.c.h.b16 %v22
  %v123 = vunpack.c.l.b16 %v23
  %v124 = vunpack.c.l.b16 %v24
  %v125 = vunpack.c.h.b16 %v24
  %v126 = vunpack.c.l.b16 %v25
  %v127 = vunpack.c.h.b16 %v25
  %v128 = vunpack.c.l.b16 %v26
  %v129 = vunpack.c.l.b16 %v27
  %v130 = vunpack.c.h.b16 %v27
  %v131 = vunpack.c.l.b16 %v28
  %v132 = vunpack.c.h.b16 %v28
  %v133 = vunpack.c.l.b16 %v29
  %v134 = vpack.c.b16 %v119, %v114
  %v135 = vpack.c.b16 %v120, %v115
  %v136 = vpack.c.b16 %v121, %v116
  %v137 = vpack.c.b16 %v122, %v117
  %v138 = vpack.c.b16 %v123, %v118
  %v139 = vpack.c.b16 %v129, %v124
  %v140 = vpack.c.b16 %v130, %v125
  %v141 = vpack.c.b16 %v131, %v126
  %v142 = vpack.c.b16 %v132, %v127
  %v143 = vpack.c.b16 %v133, %v128
  %v224 = vunpack.c.l.b16 %v30
  %v225 = vunpack.c.l.b16 %v31
  %v226 = vunpack.c.l.b16 %v32
  %v227 = vunpack.c.l.b16 %v33
  %v228 = vunpack.c.l.b16 %v34
  %v229 = vunpack.c.l.b16 %v35
  %v230 = vunpack.c.l.b16 %v36
  %v231 = vunpack.c.l.b16 %v37
  %v232 = vunpack.c.l.b16 %v38
  %v233 = vunpack.c.l.b16 %v39
  %v234 = vunpack.c.l.b16 %v40
  %v235 = vunpack.c.l.b16 %v41
  %v236 = vunpack.c.l.b16 %v42
  %v237 = vunpack.c.l.b16 %v43
  %v238 = vunpack.c.l.b16 %v44
  %v239 = vunpack.c.l.b16 %v45
  %v240 = vunpack.c.l.b16 %v46
  %v241 = vunpack.c.l.b16 %v47
  %v242 = vunpack.c.l.b16 %v48
  %v243 = vunpack.c.l.b16 %v49
  %v244 = vunpack.c.l.b16 %v50
  %v245 = vunpack.c.l.b16 %v51
  %v246 = vunpack.c.l.b16 %v52
  %v247 = vunpack.c.l.b16 %v53
  %v248 = vunpack.c.l.b16 %v54
  %v249 = vunpack.c.l.b16 %v55
  %v250 = vunpack.c.l.b16 %v56
  %v251 = vunpack.c.l.b16 %v57
  %v252 = vunpack.c.l.b16 %v58
  %v253 = vunpack.c.l.b16 %v59
  %v254 = vunpack.c.l.b16 %v60
  %v255 = vunpack.c.l.b16 %v61
  %v256 = vunpack.c.l.b16 %v62
  %v257 = vunpack.c.l.b16 %v63
  %v258 = vunpack.c.l.b16 %v64
  %v259 = vunpack.c.l.b16 %v65
  %v260 = vunpack.c.l.b16 %v66
  %v261 = vunpack.c.l.b16 %v67
  %v262 = vunpack.c.l.b16 %v68
  %v263 = vunpack.c.l.b16 %v69
  %v264 = vunpack.c.l.b16 %v70
  %v265 = vunpack.c.l.b16 %v71
  %v266 = vunpack.c.l.b16 %v72
  %v267 = vunpack.c.l.b16 %v73
  %v268 = vunpack.c.l.b16 %v74
  %v269 = vunpack.c.l.b16 %v75
  %v270 = vunpack.c.l.b16 %v76
  %v271 = vunpack.c.l.b16 %v77
  %v272 = vunpack.c.l.b16 %v78
  %v273 = vunpack.c.l.b16 %v79
  %v274 = vunpack.c.l.b16 %v80
  %v275 = vunpack.c.l.b16 %v81
  %v276 = vunpack.c.l.b16 %v82
  %v277 = vunpack.c.l.b16 %v83
  %v278 = vunpack.c.l.b16 %v84
  %v279 = vunpack.c.l.b16 %v85
  %v280 = vunpack.c.l.b16 %v86
  %v281 = vunpack.c.l.b16 %v87
  %v282 = vunpack.c.l.b16 %v88
  %v283 = vunpack.c.l.b16 %v89
  %v284 = vunpack.c.l.b16 %v90
  %v285 = vunpack.c.l.b16 %v91
  %v286 = vunpack.c.l.b16 %v92
  %v287 = vunpack.c.l.b16 %v93
  %v288 = vunpack.c.l.b16 %v94
  %v289 = vunpack.c.l.b16 %v95
  %v290 = vunpack.c.l.b16 %v96
  %v291 = vunpack.c.l.b16 %v97
  %v292 = vunpack.c.l.b16 %v98
  %v293 = vunpack.c.l.b16 %v99
  %v294 = vunpack.c.l.b16 %v100
  %v295 = vunpack.c.l.b16 %v101
  %v296 = vpack.c.b16 %v225, %v224
  %v297 = vpack.c.b16 %v227, %v226
  %v298 = vpack.c.b16 %v229, %v228
  %v299 = vpack.c.b16 %v231, %v230
  %v300 = vpack.c.b16 %v233, %v232
  %v301 = vpack.c.b16 %v235, %v234
  %v302 = vpack.c.b16 %v237, %v236
  %v303 = vpack.c.b16 %v239, %v238
  %v304 = vpack.c.b16 %v241, %v240
  %v305 = vpack.c.b16 %v243, %v242
  %v306 = vpack.c.b16 %v245, %v244
  %v307 = vpack.c.b16 %v247, %v246
  %v308 = vpack.c.b16 %v249, %v248
  %v309 = vpack.c.b16 %v251, %v250
  %v310 = vpack.c.b16 %v253, %v252
  %v311 = vpack.c.b16 %v255, %v254
  %v312 = vpack.c.b16 %v257, %v256
  %v313 = vpack.c.b16 %v259, %v258
  %v314 = vpack.c.b16 %v261, %v260
  %v315 = vpack.c.b16 %v263, %v262
  %v316 = vpack.c.b16 %v265, %v264
  %v317 = vpack.c.b16 %v267, %v266
  %v318 = vpack.c.b16 %v269, %v268
  %v319 = vpack.c.b16 %v271, %v270
  %v320 = vpack.c.b16 %v273, %v272
  %v321 = vpack.c.b16 %v275, %v274
  %v322 = vpack.c.b16 %v277, %v276
  %v323 = vpack.c.b16 %v279, %v278
  %v324 = vpack.c.b16 %v281, %v280
  %v325 = vpack.c.b16 %v283, %v282
  %v326 = vpack.c.b16 %v285, %v284
  %v327 = vpack.c.b16 %v287, %v286
  %v328 = vpack.c.b16 %v289, %v288
  %v329 = vpack.c.b16 %v291, %v290
  %v330 = vpack.c.b16 %v293, %v292
  %v331 = vpack.c.b16 %v295, %v294
  %vm368 = vcmask 523264
  %v370 = vsel %vm368, %v138, 0
  %v373 = vsel %vm368, %v143, 0
  %375 = vmatprep.subr.bf16.mxu0 0
  %376 = vmatpush1.bf16.msra.mxu0 %v303
  %377 = vmatprep.subr.bf16.mxu0 0
  %378 = vmatpush1.bf16.msra.mxu0 %v302
  %379 = vmatprep.subr.bf16.mxu0 0
  %380 = vmatpush1.bf16.msra.mxu0 %v301
  %381 = vmatprep.subr.bf16.mxu0 0
  %382 = vmatpush1.bf16.msra.mxu0 %v300
  %383 = vmatprep.subr.bf16.mxu0 0
  %384 = vmatpush1.bf16.msra.mxu0 %v299
  %385 = vmatprep.subr.bf16.mxu0 0
  %386 = vmatpush1.bf16.msra.mxu0 %v298
  %387 = vmatprep.subr.bf16.mxu0 0
  %388 = vmatpush1.bf16.msra.mxu0 %v297
  %389 = vmatprep.subr.bf16.mxu0 0
  %390 = vmatpush1.bf16.msra.mxu0 %v296
  %391 = vmatprep.subr.bf16.mxu0 0
  %392 = vmatpush2.bf16.msra.mxu0 %v311
  %393 = vmatprep.subr.bf16.mxu0 0
  %394 = vmatpush2.bf16.msra.mxu0 %v310
  %395 = vmatprep.subr.bf16.mxu0 0
  %396 = vmatpush2.bf16.msra.mxu0 %v309
  %397 = vmatprep.subr.bf16.mxu0 0
  %398 = vmatpush2.bf16.msra.mxu0 %v308
  %399 = vmatprep.subr.bf16.mxu0 0
  %400 = vmatpush2.bf16.msra.mxu0 %v307
  %401 = vmatprep.subr.bf16.mxu0 0
  %402 = vmatpush2.bf16.msra.mxu0 %v306
  %403 = vmatprep.subr.bf16.mxu0 0
  %404 = vmatpush2.bf16.msra.mxu0 %v305
  %405 = vmatprep.subr.bf16.mxu0 0
  %406 = vmatpush2.bf16.msra.mxu0 %v304
  %407 = vmatprep.mubr.bf16.mxu0 %v135
  %408 = vmatmul.mubr.bf16.gmra.mxu0 %v134
  %v409 = vpop.f32.mrf.mxu0
  %v410 = vadd.f32 0.0, %v409
  %v411 = vpop.f32.mrf.mxu0
  %v412 = vpop.f32.mrf.mxu0
  %v413 = vadd.f32 0.0, %v412
  %v414 = vpop.f32.mrf.mxu0
  %415 = vmatprep.mubr.bf16.mxu0 %v140
  %416 = vmatmul.mubr.bf16.gmra.mxu0 %v139
  %v417 = vpop.f32.mrf.mxu0
  %v418 = vadd.f32 0.0, %v417
  %v419 = vpop.f32.mrf.mxu0
  %v420 = vpop.f32.mrf.mxu0
  %v421 = vadd.f32 0.0, %v420
  %v422 = vpop.f32.mrf.mxu0
  %423 = vdwg.mxu0
  %424 = vmatprep.subr.bf16.mxu0 0
  %425 = vmatpush1.bf16.msra.mxu0 %v319
  %426 = vmatprep.subr.bf16.mxu0 0
  %427 = vmatpush1.bf16.msra.mxu0 %v318
  %428 = vmatprep.subr.bf16.mxu0 0
  %429 = vmatpush1.bf16.msra.mxu0 %v317
  %430 = vmatprep.subr.bf16.mxu0 0
  %431 = vmatpush1.bf16.msra.mxu0 %v316
  %432 = vmatprep.subr.bf16.mxu0 0
  %433 = vmatpush1.bf16.msra.mxu0 %v315
  %434 = vmatprep.subr.bf16.mxu0 0
  %435 = vmatpush1.bf16.msra.mxu0 %v314
  %436 = vmatprep.subr.bf16.mxu0 0
  %437 = vmatpush1.bf16.msra.mxu0 %v313
  %438 = vmatprep.subr.bf16.mxu0 0
  %439 = vmatpush1.bf16.msra.mxu0 %v312
  %440 = vmatprep.subr.bf16.mxu0 0
  %441 = vmatpush2.bf16.msra.mxu0 %v327
  %442 = vmatprep.subr.bf16.mxu0 0
  %443 = vmatpush2.bf16.msra.mxu0 %v326
  %444 = vmatprep.subr.bf16.mxu0 0
  %445 = vmatpush2.bf16.msra.mxu0 %v325
  %446 = vmatprep.subr.bf16.mxu0 0
  %447 = vmatpush2.bf16.msra.mxu0 %v324
  %448 = vmatprep.subr.bf16.mxu0 0
  %449 = vmatpush2.bf16.msra.mxu0 %v323
  %450 = vmatprep.subr.bf16.mxu0 0
  %451 = vmatpush2.bf16.msra.mxu0 %v322
  %452 = vmatprep.subr.bf16.mxu0 0
  %453 = vmatpush2.bf16.msra.mxu0 %v321
  %454 = vmatprep.subr.bf16.mxu0 0
  %455 = vmatpush2.bf16.msra.mxu0 %v320
  %456 = vmatprep.mubr.bf16.mxu0 %v137
  %457 = vmatmul.mubr.bf16.gmra.mxu0 %v136
  %v458 = vpop.f32.mrf.mxu0
  %v459 = vadd.f32 %v410, %v458
  %v460 = vpop.f32.mrf.mxu0
  %v461 = vpop.f32.mrf.mxu0
  %v462 = vadd.f32 %v413, %v461
  %v463 = vpop.f32.mrf.mxu0
  %464 = vmatprep.mubr.bf16.mxu0 %v142
  %465 = vmatmul.mubr.bf16.gmra.mxu0 %v141
  %v466 = vpop.f32.mrf.mxu0
  %v467 = vadd.f32 %v418, %v466
  %v468 = vpop.f32.mrf.mxu0
  %v469 = vpop.f32.mrf.mxu0
  %v470 = vadd.f32 %v421, %v469
  %v471 = vpop.f32.mrf.mxu0
  %472 = vdwg.mxu0
  %473 = vmatprep.subr.bf16.mxu0 0
  %474 = vmatpush1.bf16.msra.mxu0 0
  %475 = vmatprep.subr.bf16.mxu0 0
  %476 = vmatpush1.bf16.msra.mxu0 0
  %477 = vmatprep.subr.bf16.mxu0 0
  %478 = vmatpush1.bf16.msra.mxu0 0
  %479 = vmatprep.subr.bf16.mxu0 0
  %480 = vmatpush1.bf16.msra.mxu0 0
  %481 = vmatprep.subr.bf16.mxu0 0
  %482 = vmatpush1.bf16.msra.mxu0 %v331
  %483 = vmatprep.subr.bf16.mxu0 0
  %484 = vmatpush1.bf16.msra.mxu0 %v330
  %485 = vmatprep.subr.bf16.mxu0 0
  %486 = vmatpush1.bf16.msra.mxu0 %v329
  %487 = vmatprep.subr.bf16.mxu0 0
  %488 = vmatpush1.bf16.msra.mxu0 %v328
  %489 = vmatprep.subr.bf16.mxu0 0
  %490 = vmatpush2.bf16.msra.mxu0 0
  %491 = vmatprep.subr.bf16.mxu0 0
  %492 = vmatpush2.bf16.msra.mxu0 0
  %493 = vmatprep.subr.bf16.mxu0 0
  %494 = vmatpush2.bf16.msra.mxu0 0
  %495 = vmatprep.subr.bf16.mxu0 0
  %496 = vmatpush2.bf16.msra.mxu0 0
  %497 = vmatprep.subr.bf16.mxu0 0
  %498 = vmatpush2.bf16.msra.mxu0 0
  %499 = vmatprep.subr.bf16.mxu0 0
  %500 = vmatpush2.bf16.msra.mxu0 0
  %501 = vmatprep.subr.bf16.mxu0 0
  %502 = vmatpush2.bf16.msra.mxu0 0
  %503 = vmatprep.subr.bf16.mxu0 0
  %504 = vmatpush2.bf16.msra.mxu0 0
  %505 = vmatprep.mubr.bf16.mxu0 0
  %506 = vmatmul.mubr.bf16.gmra.mxu0 %v370
  %v507 = vpop.f32.mrf.mxu0
  %v508 = vadd.f32 %v459, %v507
  %v509 = vpop.f32.mrf.mxu0
  %v510 = vpop.f32.mrf.mxu0
  %v511 = vadd.f32 %v462, %v510
  %v512 = vpop.f32.mrf.mxu0
  %513 = vmatprep.mubr.bf16.mxu0 0
  %514 = vmatmul.mubr.bf16.gmra.mxu0 %v373
  %v515 = vpop.f32.mrf.mxu0
  %v516 = vadd.f32 %v467, %v515
  %v517 = vpop.f32.mrf.mxu0
  %v518 = vpop.f32.mrf.mxu0
  %v519 = vadd.f32 %v470, %v518
  %v520 = vpop.f32.mrf.mxu0
  %521 = vdwg.mxu0
  %v522 = vadd.f32 %v508, %v511
  %v523 = vadd.f32 %v522, %v516
  %v524 = vadd.f32 %v523, %v519
  %v525 = vrot.slane %v524, 4
  %v526 = vadd.f32 %v524, %v525
  %v527 = vrot.slane %v526, 2
  %v528 = vadd.f32 %v526, %v527
  %v529 = vrot.slane %v528, 1
  %v530 = vadd.f32 %v528, %v529
  %531 = vrot.lane.b32.xlu0 %v530, 8
  %v532 = vpop.permute.xlu0 %531
  %v533 = vadd.f32 %v530, %v532
  %534 = vrot.lane.b32.xlu0 %v533, 16
  %v535 = vpop.permute.xlu0 %534
  %v536 = vadd.f32 %v533, %v535
  %537 = vrot.lane.b32.xlu0 %v536, 32
  %v538 = vpop.permute.xlu0 %537
  %v539 = vadd.f32 %v536, %v538
  %540 = vrot.lane.b32.xlu0 %v539, 64
  %v541 = vpop.permute.xlu0 %540
  %v542 = vadd.f32 %v539, %v541
  %v543 = vmul.f32 %v542, 0.001953125
  %v544 = vlaneseq
  %v545 = vshrl.u32 %v544, 7
  %v546 = vsub.s32 0, %v545
  %v547 = vrot.slane %v543, %v546
  %v548 = vsub.f32 %v508, %v547
  %v549 = vsub.f32 %v511, %v547
  %v550 = vsub.f32 %v516, %v547
  %v551 = vsub.f32 %v519, %v547
  %v552 = vmul.f32 %v548, %v548
  %v553 = vmul.f32 %v549, %v549
  %v554 = vmul.f32 %v550, %v550
  %v555 = vmul.f32 %v551, %v551
  %v556 = vadd.f32 %v552, %v553
  %v557 = vadd.f32 %v556, %v554
  %v558 = vadd.f32 %v557, %v555
  %v559 = vrot.slane %v558, 4
  %v560 = vadd.f32 %v558, %v559
  %v561 = vrot.slane %v560, 2
  %v562 = vadd.f32 %v560, %v561
  %v563 = vrot.slane %v562, 1
  %v564 = vadd.f32 %v562, %v563
  %565 = vrot.lane.b32.xlu0 %v564, 8
  %v566 = vpop.permute.xlu0 %565
  %v567 = vadd.f32 %v564, %v566
  %568 = vrot.lane.b32.xlu0 %v567, 16
  %v569 = vpop.permute.xlu0 %568
  %v570 = vadd.f32 %v567, %v569
  %571 = vrot.lane.b32.xlu0 %v570, 32
  %v572 = vpop.permute.xlu0 %571
  %v573 = vadd.f32 %v570, %v572
  %574 = vrot.lane.b32.xlu0 %v573, 64
  %v575 = vpop.permute.xlu0 %574
  %v576 = vadd.f32 %v573, %v575
  %v577 = vmul.f32 %v576, 0.001953125
  %v578 = vld [vmem:[%s2] sm:$0x1]
  %v579 = vadd.f32 %v577, 1e-05
  %v580 = vrsqrt.pop %v579
  %v581 = vmul.f32 %v578, %v580
  %v583 = vlaneseq
  %v584 = vshrl.u32 %v583, 7
  %v585 = vsub.s32 0, %v584
  %v586 = vrot.slane %v581, %v585
  %v588 = vmul.f32 %v548, %v586
  %v589 = vmul.f32 %v549, %v586
  %v590 = vmul.f32 %v550, %v586
  %v591 = vmul.f32 %v551, %v586
  %v592 = vld [vmem:[%s3] sm:$0x1]
  %v594 = vlaneseq
  %v595 = vshrl.u32 %v594, 7
  %v596 = vsub.s32 0, %v595
  %v597 = vrot.slane %v592, %v596
  %v599 = vadd.f32 %v588, %v597
  %v600 = vadd.f32 %v589, %v597
  %v601 = vadd.f32 %v590, %v597
  %v602 = vadd.f32 %v591, %v597
  %v603 = vmax.f32 %v599, 0.0
  %v604 = vmax.f32 %v600, 0.0
  %v605 = vmax.f32 %v601, 0.0
  %v606 = vmax.f32 %v602, 0.0
  %v607 = vpack.c.bf16 %v604, %v603
  %v608 = vpack.c.bf16 %v606, %v605
  %v611 = vunpack.c.l.b16 %v607
  %v612 = vunpack.c.h.b16 %v607
  %v613 = vunpack.c.l.b16 %v608
  %v614 = vunpack.c.h.b16 %v608
  %v615 = vpack.c.b16 %v611, %v611
  %v616 = vpack.c.b16 %v612, %v612
  %v617 = vpack.c.b16 %v613, %v613
  %v618 = vpack.c.b16 %v614, %v614
  %623 = vst [vmem:[%s4] sm:$0xf] %v615
  %624 = vst [vmem:[%s4 + $0x4] sm:$0xf] %v616
  %625 = vst [vmem:[%s4 + $0x8] sm:$0xf] %v617
  %626 = vst [vmem:[%s4 + $0xc] sm:$0xf] %v618
  // Predicated region
  $region18: #{decoder_forward.9} parent=0 // pred_check
    _
  $region19: #{decoder_forward.9} parent=0 // pred_check_branch
    %628 = sbr.rel (0) target = $region21
  $region20: #{decoder_forward.9} parent=0 // pred_region
    _
  $region21: #{decoder_forward.9} parent=0 // pred_fallthru
    _
  // Predicated region
  $region22: #{decoder_forward.9} parent=0 // pred_check
    _
  $region23: #{decoder_forward.9} parent=0 // pred_check_branch
    %630 = sbr.rel (0) target = $region25
  $region24: #{decoder_forward.9} parent=0 // pred_region
    _
  $region25: #{decoder_forward.9} parent=0 // pred_fallthru
    _

// kernel: decoder_forward.10
$region0: #{decoder_forward.10}
  #allocation0 [shape = 'u32[]', space=smem, size = 0x4, offset = 0x4, fixed_abs, tag = 'smem constant byte address 0x4 - core index']
  #allocation1 [shape = 'u32[144,128]{1,0:T(1,128)}', space=vmem, size = 0x12000, scoped, tag = 'internal scratch']
  %s0 = inlined_call_operand.vmem [shape: bf16[64,576], index: 0, kind: input, shape index: {}]
  %s1 = inlined_call_operand.vmem [shape: bf16[576,128], index: 1, kind: input, shape index: {}]
  %s2 = inlined_call_operand.vmem [shape: f32[1,128], index: 2, kind: input, shape index: {}]
  %s3 = inlined_call_operand.vmem [shape: f32[1,128], index: 3, kind: input, shape index: {}]
  %s4 = inlined_call_operand.vmem [shape: bf16[64,128], index: 4, kind: output, shape index: {}]
  %s5 = sld [smem:[#allocation0]]
  $region26: #{decoder_forward.10} parent=0
    _
  %s7 = ssub.s32 1, %s5
  %s8 = scalar_select 0, %s7, %s5
  // Predicated region
  $region2: #{decoder_forward.10} parent=0 // pred_check
    _
  $region3: #{decoder_forward.10} parent=0 // pred_check_branch
    %10 = sbr.rel (0) target = $region5
  $region4: #{decoder_forward.10} parent=0 // pred_region
    _
  $region5: #{decoder_forward.10} parent=0 // pred_fallthru
    _
  // Predicated region
  $region6: #{decoder_forward.10} parent=0 // pred_check
    _
  $region7: #{decoder_forward.10} parent=0 // pred_check_branch
    %12 = sbr.rel (0) target = $region9
  $region8: #{decoder_forward.10} parent=0 // pred_region
    _
  $region9: #{decoder_forward.10} parent=0 // pred_fallthru
    _
  // Predicated region
  $region10: #{decoder_forward.10} parent=0 // pred_check
    _
  $region11: #{decoder_forward.10} parent=0 // pred_check_branch
    %14 = sbr.rel (0) target = $region13
  $region12: #{decoder_forward.10} parent=0 // pred_region
    _
  $region13: #{decoder_forward.10} parent=0 // pred_fallthru
    _
  // Predicated region
  $region14: #{decoder_forward.10} parent=0 // pred_check
    _
  $region15: #{decoder_forward.10} parent=0 // pred_check_branch
    %16 = sbr.rel (0) target = $region17
  $region16: #{decoder_forward.10} parent=0 // pred_region
    _
  $region17: #{decoder_forward.10} parent=0 // pred_fallthru
    _
  %v18 = vld [vmem:[%s0] sm:$0xff]
  %v19 = vld [vmem:[%s0 + $0x8] sm:$0xff]
  %v20 = vld [vmem:[%s0 + $0x10] sm:$0xf]
  %v21 = vld [vmem:[%s0 + $0x14] sm:$0xff]
  %v22 = vld [vmem:[%s0 + $0x1c] sm:$0xff]
  %v23 = vld [vmem:[%s0 + $0x24] sm:$0xf]
  %v24 = vld [vmem:[%s0 + $0x28] sm:$0xff]
  %v25 = vld [vmem:[%s0 + $0x30] sm:$0xff]
  %v26 = vld [vmem:[%s0 + $0x38] sm:$0xf]
  %v27 = vld [vmem:[%s0 + $0x3c] sm:$0xff]
  %v28 = vld [vmem:[%s0 + $0x44] sm:$0xff]
  %v29 = vld [vmem:[%s0 + $0x4c] sm:$0xf]
  %v30 = vld [vmem:[%s0 + $0x50] sm:$0xff]
  %v31 = vld [vmem:[%s0 + $0x58] sm:$0xff]
  %v32 = vld [vmem:[%s0 + $0x60] sm:$0xf]
  %v33 = vld [vmem:[%s0 + $0x64] sm:$0xff]
  %v34 = vld [vmem:[%s0 + $0x6c] sm:$0xff]
  %v35 = vld [vmem:[%s0 + $0x74] sm:$0xf]
  %v36 = vld [vmem:[%s0 + $0x78] sm:$0xff]
  %v37 = vld [vmem:[%s0 + $0x80] sm:$0xff]
  %v38 = vld [vmem:[%s0 + $0x88] sm:$0xf]
  %v39 = vld [vmem:[%s0 + $0x8c] sm:$0xff]
  %v40 = vld [vmem:[%s0 + $0x94] sm:$0xff]
  %v41 = vld [vmem:[%s0 + $0x9c] sm:$0xf]
  %v42 = vld [vmem:[%s1] sm:$0xf]
  %v43 = vld [vmem:[%s1 + $0x4] sm:$0xf]
  %v44 = vld [vmem:[%s1 + $0x8] sm:$0xf]
  %v45 = vld [vmem:[%s1 + $0xc] sm:$0xf]
  %v46 = vld [vmem:[%s1 + $0x10] sm:$0xf]
  %v47 = vld [vmem:[%s1 + $0x14] sm:$0xf]
  %v48 = vld [vmem:[%s1 + $0x18] sm:$0xf]
  %v49 = vld [vmem:[%s1 + $0x1c] sm:$0xf]
  %v50 = vld [vmem:[%s1 + $0x20] sm:$0xf]
  %v51 = vld [vmem:[%s1 + $0x24] sm:$0xf]
  %v52 = vld [vmem:[%s1 + $0x28] sm:$0xf]
  %v53 = vld [vmem:[%s1 + $0x2c] sm:$0xf]
  %v54 = vld [vmem:[%s1 + $0x30] sm:$0xf]
  %v55 = vld [vmem:[%s1 + $0x34] sm:$0xf]
  %v56 = vld [vmem:[%s1 + $0x38] sm:$0xf]
  %v57 = vld [vmem:[%s1 + $0x3c] sm:$0xf]
  %v58 = vld [vmem:[%s1 + $0x40] sm:$0xf]
  %v59 = vld [vmem:[%s1 + $0x44] sm:$0xf]
  %v60 = vld [vmem:[%s1 + $0x48] sm:$0xf]
  %v61 = vld [vmem:[%s1 + $0x4c] sm:$0xf]
  %v62 = vld [vmem:[%s1 + $0x50] sm:$0xf]
  %v63 = vld [vmem:[%s1 + $0x54] sm:$0xf]
  %v64 = vld [vmem:[%s1 + $0x58] sm:$0xf]
  %v65 = vld [vmem:[%s1 + $0x5c] sm:$0xf]
  %v66 = vld [vmem:[%s1 + $0x60] sm:$0xf]
  %v67 = vld [vmem:[%s1 + $0x64] sm:$0xf]
  %v68 = vld [vmem:[%s1 + $0x68] sm:$0xf]
  %v69 = vld [vmem:[%s1 + $0x6c] sm:$0xf]
  %v70 = vld [vmem:[%s1 + $0x70] sm:$0xf]
  %v71 = vld [vmem:[%s1 + $0x74] sm:$0xf]
  %v72 = vld [vmem:[%s1 + $0x78] sm:$0xf]
  %v73 = vld [vmem:[%s1 + $0x7c] sm:$0xf]
  %v74 = vld [vmem:[%s1 + $0x80] sm:$0xf]
  %v75 = vld [vmem:[%s1 + $0x84] sm:$0xf]
  %v76 = vld [vmem:[%s1 + $0x88] sm:$0xf]
  %v77 = vld [vmem:[%s1 + $0x8c] sm:$0xf]
  %v78 = vld [vmem:[%s1 + $0x90] sm:$0xf]
  %v79 = vld [vmem:[%s1 + $0x94] sm:$0xf]
  %v80 = vld [vmem:[%s1 + $0x98] sm:$0xf]
  %v81 = vld [vmem:[%s1 + $0x9c] sm:$0xf]
  %v82 = vld [vmem:[%s1 + $0xa0] sm:$0xf]
  %v83 = vld [vmem:[%s1 + $0xa4] sm:$0xf]
  %v84 = vld [vmem:[%s1 + $0xa8] sm:$0xf]
  %v85 = vld [vmem:[%s1 + $0xac] sm:$0xf]
  %v86 = vld [vmem:[%s1 + $0xb0] sm:$0xf]
  %v87 = vld [vmem:[%s1 + $0xb4] sm:$0xf]
  %v88 = vld [vmem:[%s1 + $0xb8] sm:$0xf]
  %v89 = vld [vmem:[%s1 + $0xbc] sm:$0xf]
  %v90 = vld [vmem:[%s1 + $0xc0] sm:$0xf]
  %v91 = vld [vmem:[%s1 + $0xc4] sm:$0xf]
  %v92 = vld [vmem:[%s1 + $0xc8] sm:$0xf]
  %v93 = vld [vmem:[%s1 + $0xcc] sm:$0xf]
  %v94 = vld [vmem:[%s1 + $0xd0] sm:$0xf]
  %v95 = vld [vmem:[%s1 + $0xd4] sm:$0xf]
  %v96 = vld [vmem:[%s1 + $0xd8] sm:$0xf]
  %v97 = vld [vmem:[%s1 + $0xdc] sm:$0xf]
  %v98 = vld [vmem:[%s1 + $0xe0] sm:$0xf]
  %v99 = vld [vmem:[%s1 + $0xe4] sm:$0xf]
  %v100 = vld [vmem:[%s1 + $0xe8] sm:$0xf]
  %v101 = vld [vmem:[%s1 + $0xec] sm:$0xf]
  %v102 = vld [vmem:[%s1 + $0xf0] sm:$0xf]
  %v103 = vld [vmem:[%s1 + $0xf4] sm:$0xf]
  %v104 = vld [vmem:[%s1 + $0xf8] sm:$0xf]
  %v105 = vld [vmem:[%s1 + $0xfc] sm:$0xf]
  %v106 = vld [vmem:[%s1 + $0x100] sm:$0xf]
  %v107 = vld [vmem:[%s1 + $0x104] sm:$0xf]
  %v108 = vld [vmem:[%s1 + $0x108] sm:$0xf]
  %v109 = vld [vmem:[%s1 + $0x10c] sm:$0xf]
  %v110 = vld [vmem:[%s1 + $0x110] sm:$0xf]
  %v111 = vld [vmem:[%s1 + $0x114] sm:$0xf]
  %v112 = vld [vmem:[%s1 + $0x118] sm:$0xf]
  %v113 = vld [vmem:[%s1 + $0x11c] sm:$0xf]
  %v138 = vunpack.c.l.b16 %v18
  %v139 = vunpack.c.h.b16 %v18
  %v140 = vunpack.c.l.b16 %v19
  %v141 = vunpack.c.h.b16 %v19
  %v142 = vunpack.c.l.b16 %v20
  %v143 = vunpack.c.l.b16 %v21
  %v144 = vunpack.c.h.b16 %v21
  %v145 = vunpack.c.l.b16 %v22
  %v146 = vunpack.c.h.b16 %v22
  %v147 = vunpack.c.l.b16 %v23
  %v148 = vunpack.c.l.b16 %v24
  %v149 = vunpack.c.h.b16 %v24
  %v150 = vunpack.c.l.b16 %v25
  %v151 = vunpack.c.h.b16 %v25
  %v152 = vunpack.c.l.b16 %v26
  %v153 = vunpack.c.l.b16 %v27
  %v154 = vunpack.c.h.b16 %v27
  %v155 = vunpack.c.l.b16 %v28
  %v156 = vunpack.c.h.b16 %v28
  %v157 = vunpack.c.l.b16 %v29
  %v158 = vunpack.c.l.b16 %v30
  %v159 = vunpack.c.h.b16 %v30
  %v160 = vunpack.c.l.b16 %v31
  %v161 = vunpack.c.h.b16 %v31
  %v162 = vunpack.c.l.b16 %v32
  %v163 = vunpack.c.l.b16 %v33
  %v164 = vunpack.c.h.b16 %v33
  %v165 = vunpack.c.l.b16 %v34
  %v166 = vunpack.c.h.b16 %v34
  %v167 = vunpack.c.l.b16 %v35
  %v168 = vunpack.c.l.b16 %v36
  %v169 = vunpack.c.h.b16 %v36
  %v170 = vunpack.c.l.b16 %v37
  %v171 = vunpack.c.h.b16 %v37
  %v172 = vunpack.c.l.b16 %v38
  %v173 = vunpack.c.l.b16 %v39
  %v174 = vunpack.c.h.b16 %v39
  %v175 = vunpack.c.l.b16 %v40
  %v176 = vunpack.c.h.b16 %v40
  %v177 = vunpack.c.l.b16 %v41
  %v178 = vpack.c.b16 %v143, %v138
  %v179 = vpack.c.b16 %v144, %v139
  %v180 = vpack.c.b16 %v145, %v140
  %v181 = vpack.c.b16 %v146, %v141
  %v182 = vpack.c.b16 %v147, %v142
  %v183 = vpack.c.b16 %v153, %v148
  %v184 = vpack.c.b16 %v154, %v149
  %v185 = vpack.c.b16 %v155, %v150
  %v186 = vpack.c.b16 %v156, %v151
  %v187 = vpack.c.b16 %v157, %v152
  %v188 = vpack.c.b16 %v163, %v158
  %v189 = vpack.c.b16 %v164, %v159
  %v190 = vpack.c.b16 %v165, %v160
  %v191 = vpack.c.b16 %v166, %v161
  %v192 = vpack.c.b16 %v167, %v162
  %v193 = vpack.c.b16 %v173, %v168
  %v194 = vpack.c.b16 %v174, %v169
  %v195 = vpack.c.b16 %v175, %v170
  %v196 = vpack.c.b16 %v176, %v171
  %v197 = vpack.c.b16 %v177, %v172
  %v286 = vunpack.c.l.b16 %v42
  %v287 = vunpack.c.l.b16 %v43
  %v288 = vunpack.c.l.b16 %v44
  %v289 = vunpack.c.l.b16 %v45
  %v290 = vunpack.c.l.b16 %v46
  %v291 = vunpack.c.l.b16 %v47
  %v292 = vunpack.c.l.b16 %v48
  %v293 = vunpack.c.l.b16 %v49
  %v294 = vunpack.c.l.b16 %v50
  %v295 = vunpack.c.l.b16 %v51
  %v296 = vunpack.c.l.b16 %v52
  %v297 = vunpack.c.l.b16 %v53
  %v298 = vunpack.c.l.b16 %v54
  %v299 = vunpack.c.l.b16 %v55
  %v300 = vunpack.c.l.b16 %v56
  %v301 = vunpack.c.l.b16 %v57
  %v302 = vunpack.c.l.b16 %v58
  %v303 = vunpack.c.l.b16 %v59
  %v304 = vunpack.c.l.b16 %v60
  %v305 = vunpack.c.l.b16 %v61
  %v306 = vunpack.c.l.b16 %v62
  %v307 = vunpack.c.l.b16 %v63
  %v308 = vunpack.c.l.b16 %v64
  %v309 = vunpack.c.l.b16 %v65
  %v310 = vunpack.c.l.b16 %v66
  %v311 = vunpack.c.l.b16 %v67
  %v312 = vunpack.c.l.b16 %v68
  %v313 = vunpack.c.l.b16 %v69
  %v314 = vunpack.c.l.b16 %v70
  %v315 = vunpack.c.l.b16 %v71
  %v316 = vunpack.c.l.b16 %v72
  %v317 = vunpack.c.l.b16 %v73
  %v318 = vunpack.c.l.b16 %v74
  %v319 = vunpack.c.l.b16 %v75
  %v320 = vunpack.c.l.b16 %v76
  %v321 = vunpack.c.l.b16 %v77
  %v322 = vunpack.c.l.b16 %v78
  %v323 = vunpack.c.l.b16 %v79
  %v324 = vunpack.c.l.b16 %v80
  %v325 = vunpack.c.l.b16 %v81
  %v326 = vunpack.c.l.b16 %v82
  %v327 = vunpack.c.l.b16 %v83
  %v328 = vunpack.c.l.b16 %v84
  %v329 = vunpack.c.l.b16 %v85
  %v330 = vunpack.c.l.b16 %v86
  %v331 = vunpack.c.l.b16 %v87
  %v332 = vunpack.c.l.b16 %v88
  %v333 = vunpack.c.l.b16 %v89
  %v334 = vunpack.c.l.b16 %v90
  %v335 = vunpack.c.l.b16 %v91
  %v336 = vunpack.c.l.b16 %v92
  %v337 = vunpack.c.l.b16 %v93
  %v338 = vunpack.c.l.b16 %v94
  %v339 = vunpack.c.l.b16 %v95
  %v340 = vunpack.c.l.b16 %v96
  %v341 = vunpack.c.l.b16 %v97
  %v342 = vunpack.c.l.b16 %v98
  %v343 = vunpack.c.l.b16 %v99
  %v344 = vunpack.c.l.b16 %v100
  %v345 = vunpack.c.l.b16 %v101
  %v346 = vunpack.c.l.b16 %v102
  %v347 = vunpack.c.l.b16 %v103
  %v348 = vunpack.c.l.b16 %v104
  %v349 = vunpack.c.l.b16 %v105
  %v350 = vunpack.c.l.b16 %v106
  %v351 = vunpack.c.l.b16 %v107
  %v352 = vunpack.c.l.b16 %v108
  %v353 = vunpack.c.l.b16 %v109
  %v354 = vunpack.c.l.b16 %v110
  %v355 = vunpack.c.l.b16 %v111
  %v356 = vunpack.c.l.b16 %v112
  %v357 = vunpack.c.l.b16 %v113
  %v358 = vpack.c.b16 %v287, %v286
  %v359 = vpack.c.b16 %v289, %v288
  %v360 = vpack.c.b16 %v291, %v290
  %v361 = vpack.c.b16 %v293, %v292
  %v362 = vpack.c.b16 %v295, %v294
  %v363 = vpack.c.b16 %v297, %v296
  %v364 = vpack.c.b16 %v299, %v298
  %v365 = vpack.c.b16 %v301, %v300
  %v366 = vpack.c.b16 %v303, %v302
  %v367 = vpack.c.b16 %v305, %v304
  %v368 = vpack.c.b16 %v307, %v306
  %v369 = vpack.c.b16 %v309, %v308
  %v370 = vpack.c.b16 %v311, %v310
  %v371 = vpack.c.b16 %v313, %v312
  %v372 = vpack.c.b16 %v315, %v314
  %v373 = vpack.c.b16 %v317, %v316
  %v374 = vpack.c.b16 %v319, %v318
  %v375 = vpack.c.b16 %v321, %v320
  %v376 = vpack.c.b16 %v323, %v322
  %v377 = vpack.c.b16 %v325, %v324
  %v378 = vpack.c.b16 %v327, %v326
  %v379 = vpack.c.b16 %v329, %v328
  %v380 = vpack.c.b16 %v331, %v330
  %v381 = vpack.c.b16 %v333, %v332
  %v382 = vpack.c.b16 %v335, %v334
  %v383 = vpack.c.b16 %v337, %v336
  %v384 = vpack.c.b16 %v339, %v338
  %v385 = vpack.c.b16 %v341, %v340
  %v386 = vpack.c.b16 %v343, %v342
  %v387 = vpack.c.b16 %v345, %v344
  %v388 = vpack.c.b16 %v347, %v346
  %v389 = vpack.c.b16 %v349, %v348
  %v390 = vpack.c.b16 %v351, %v350
  %v391 = vpack.c.b16 %v353, %v352
  %v392 = vpack.c.b16 %v355, %v354
  %v393 = vpack.c.b16 %v357, %v356
  %vm430 = vcmask 523264
  %v432 = vsel %vm430, %v182, 0
  %v435 = vsel %vm430, %v187, 0
  %v438 = vsel %vm430, %v192, 0
  %v441 = vsel %vm430, %v197, 0
  %443 = vmatprep.subr.bf16.mxu0 0
  %444 = vmatpush1.bf16.msra.mxu0 %v365
  %445 = vmatprep.subr.bf16.mxu0 0
  %446 = vmatpush1.bf16.msra.mxu0 %v364
  %447 = vmatprep.subr.bf16.mxu0 0
  %448 = vmatpush1.bf16.msra.mxu0 %v363
  %449 = vmatprep.subr.bf16.mxu0 0
  %450 = vmatpush1.bf16.msra.mxu0 %v362
  %451 = vmatprep.subr.bf16.mxu0 0
  %452 = vmatpush1.bf16.msra.mxu0 %v361
  %453 = vmatprep.subr.bf16.mxu0 0
  %454 = vmatpush1.bf16.msra.mxu0 %v360
  %455 = vmatprep.subr.bf16.mxu0 0
  %456 = vmatpush1.bf16.msra.mxu0 %v359
  %457 = vmatprep.subr.bf16.mxu0 0
  %458 = vmatpush1.bf16.msra.mxu0 %v358
  %459 = vmatprep.subr.bf16.mxu0 0
  %460 = vmatpush2.bf16.msra.mxu0 %v373
  %461 = vmatprep.subr.bf16.mxu0 0
  %462 = vmatpush2.bf16.msra.mxu0 %v372
  %463 = vmatprep.subr.bf16.mxu0 0
  %464 = vmatpush2.bf16.msra.mxu0 %v371
  %465 = vmatprep.subr.bf16.mxu0 0
  %466 = vmatpush2.bf16.msra.mxu0 %v370
  %467 = vmatprep.subr.bf16.mxu0 0
  %468 = vmatpush2.bf16.msra.mxu0 %v369
  %469 = vmatprep.subr.bf16.mxu0 0
  %470 = vmatpush2.bf16.msra.mxu0 %v368
  %471 = vmatprep.subr.bf16.mxu0 0
  %472 = vmatpush2.bf16.msra.mxu0 %v367
  %473 = vmatprep.subr.bf16.mxu0 0
  %474 = vmatpush2.bf16.msra.mxu0 %v366
  %475 = vmatprep.mubr.bf16.mxu0 %v179
  %476 = vmatmul.mubr.bf16.gmra.mxu0 %v178
  %v477 = vpop.f32.mrf.mxu0
  %v478 = vadd.f32 0.0, %v477
  %v479 = vpop.f32.mrf.mxu0
  %v480 = vpop.f32.mrf.mxu0
  %v481 = vadd.f32 0.0, %v480
  %v482 = vpop.f32.mrf.mxu0
  %483 = vmatprep.mubr.bf16.mxu0 %v184
  %484 = vmatmul.mubr.bf16.gmra.mxu0 %v183
  %v485 = vpop.f32.mrf.mxu0
  %v486 = vadd.f32 0.0, %v485
  %v487 = vpop.f32.mrf.mxu0
  %v488 = vpop.f32.mrf.mxu0
  %v489 = vadd.f32 0.0, %v488
  %v490 = vpop.f32.mrf.mxu0
  %491 = vmatprep.mubr.bf16.mxu0 %v189
  %492 = vmatmul.mubr.bf16.gmra.mxu0 %v188
  %v493 = vpop.f32.mrf.mxu0
  %v494 = vadd.f32 0.0, %v493
  %v495 = vpop.f32.mrf.mxu0
  %v496 = vpop.f32.mrf.mxu0
  %v497 = vadd.f32 0.0, %v496
  %v498 = vpop.f32.mrf.mxu0
  %499 = vmatprep.mubr.bf16.mxu0 %v194
  %500 = vmatmul.mubr.bf16.gmra.mxu0 %v193
  %v501 = vpop.f32.mrf.mxu0
  %v502 = vadd.f32 0.0, %v501
  %v503 = vpop.f32.mrf.mxu0
  %v504 = vpop.f32.mrf.mxu0
  %v505 = vadd.f32 0.0, %v504
  %v506 = vpop.f32.mrf.mxu0
  %507 = vdwg.mxu0
  %508 = vmatprep.subr.bf16.mxu0 0
  %509 = vmatpush1.bf16.msra.mxu0 %v381
  %510 = vmatprep.subr.bf16.mxu0 0
  %511 = vmatpush1.bf16.msra.mxu0 %v380
  %512 = vmatprep.subr.bf16.mxu0 0
  %513 = vmatpush1.bf16.msra.mxu0 %v379
  %514 = vmatprep.subr.bf16.mxu0 0
  %515 = vmatpush1.bf16.msra.mxu0 %v378
  %516 = vmatprep.subr.bf16.mxu0 0
  %517 = vmatpush1.bf16.msra.mxu0 %v377
  %518 = vmatprep.subr.bf16.mxu0 0
  %519 = vmatpush1.bf16.msra.mxu0 %v376
  %520 = vmatprep.subr.bf16.mxu0 0
  %521 = vmatpush1.bf16.msra.mxu0 %v375
  %522 = vmatprep.subr.bf16.mxu0 0
  %523 = vmatpush1.bf16.msra.mxu0 %v374
  %524 = vmatprep.subr.bf16.mxu0 0
  %525 = vmatpush2.bf16.msra.mxu0 %v389
  %526 = vmatprep.subr.bf16.mxu0 0
  %527 = vmatpush2.bf16.msra.mxu0 %v388
  %528 = vmatprep.subr.bf16.mxu0 0
  %529 = vmatpush2.bf16.msra.mxu0 %v387
  %530 = vmatprep.subr.bf16.mxu0 0
  %531 = vmatpush2.bf16.msra.mxu0 %v386
  %532 = vmatprep.subr.bf16.mxu0 0
  %533 = vmatpush2.bf16.msra.mxu0 %v385
  %534 = vmatprep.subr.bf16.mxu0 0
  %535 = vmatpush2.bf16.msra.mxu0 %v384
  %536 = vmatprep.subr.bf16.mxu0 0
  %537 = vmatpush2.bf16.msra.mxu0 %v383
  %538 = vmatprep.subr.bf16.mxu0 0
  %539 = vmatpush2.bf16.msra.mxu0 %v382
  %540 = vmatprep.mubr.bf16.mxu0 %v181
  %541 = vmatmul.mubr.bf16.gmra.mxu0 %v180
  %v542 = vpop.f32.mrf.mxu0
  %v543 = vadd.f32 %v478, %v542
  %v544 = vpop.f32.mrf.mxu0
  %v545 = vpop.f32.mrf.mxu0
  %v546 = vadd.f32 %v481, %v545
  %v547 = vpop.f32.mrf.mxu0
  %548 = vmatprep.mubr.bf16.mxu0 %v186
  %549 = vmatmul.mubr.bf16.gmra.mxu0 %v185
  %v550 = vpop.f32.mrf.mxu0
  %v551 = vadd.f32 %v486, %v550
  %v552 = vpop.f32.mrf.mxu0
  %v553 = vpop.f32.mrf.mxu0
  %v554 = vadd.f32 %v489, %v553
  %v555 = vpop.f32.mrf.mxu0
  %556 = vmatprep.mubr.bf16.mxu0 %v191
  %557 = vmatmul.mubr.bf16.gmra.mxu0 %v190
  %v558 = vpop.f32.mrf.mxu0
  %v559 = vadd.f32 %v494, %v558
  %v560 = vpop.f32.mrf.mxu0
  %v561 = vpop.f32.mrf.mxu0
  %v562 = vadd.f32 %v497, %v561
  %v563 = vpop.f32.mrf.mxu0
  %564 = vmatprep.mubr.bf16.mxu0 %v196
  %565 = vmatmul.mubr.bf16.gmra.mxu0 %v195
  %v566 = vpop.f32.mrf.mxu0
  %v567 = vadd.f32 %v502, %v566
  %v568 = vpop.f32.mrf.mxu0
  %v569 = vpop.f32.mrf.mxu0
  %v570 = vadd.f32 %v505, %v569
  %v571 = vpop.f32.mrf.mxu0
  %572 = vdwg.mxu0
  %573 = vmatprep.subr.bf16.mxu0 0
  %574 = vmatpush1.bf16.msra.mxu0 0
  %575 = vmatprep.subr.bf16.mxu0 0
  %576 = vmatpush1.bf16.msra.mxu0 0
  %577 = vmatprep.subr.bf16.mxu0 0
  %578 = vmatpush1.bf16.msra.mxu0 0
  %579 = vmatprep.subr.bf16.mxu0 0
  %580 = vmatpush1.bf16.msra.mxu0 0
  %581 = vmatprep.subr.bf16.mxu0 0
  %582 = vmatpush1.bf16.msra.mxu0 %v393
  %583 = vmatprep.subr.bf16.mxu0 0
  %584 = vmatpush1.bf16.msra.mxu0 %v392
  %585 = vmatprep.subr.bf16.mxu0 0
  %586 = vmatpush1.bf16.msra.mxu0 %v391
  %587 = vmatprep.subr.bf16.mxu0 0
  %588 = vmatpush1.bf16.msra.mxu0 %v390
  %589 = vmatprep.subr.bf16.mxu0 0
  %590 = vmatpush2.bf16.msra.mxu0 0
  %591 = vmatprep.subr.bf16.mxu0 0
  %592 = vmatpush2.bf16.msra.mxu0 0
  %593 = vmatprep.subr.bf16.mxu0 0
  %594 = vmatpush2.bf16.msra.mxu0 0
  %595 = vmatprep.subr.bf16.mxu0 0
  %596 = vmatpush2.bf16.msra.mxu0 0
  %597 = vmatprep.subr.bf16.mxu0 0
  %598 = vmatpush2.bf16.msra.mxu0 0
  %599 = vmatprep.subr.bf16.mxu0 0
  %600 = vmatpush2.bf16.msra.mxu0 0
  %601 = vmatprep.subr.bf16.mxu0 0
  %602 = vmatpush2.bf16.msra.mxu0 0
  %603 = vmatprep.subr.bf16.mxu0 0
  %604 = vmatpush2.bf16.msra.mxu0 0
  %605 = vmatprep.mubr.bf16.mxu0 0
  %606 = vmatmul.mubr.bf16.gmra.mxu0 %v432
  %v607 = vpop.f32.mrf.mxu0
  %v608 = vadd.f32 %v543, %v607
  %v609 = vpop.f32.mrf.mxu0
  %v610 = vpop.f32.mrf.mxu0
  %v611 = vadd.f32 %v546, %v610
  %v612 = vpop.f32.mrf.mxu0
  %613 = vmatprep.mubr.bf16.mxu0 0
  %614 = vmatmul.mubr.bf16.gmra.mxu0 %v435
  %v615 = vpop.f32.mrf.mxu0
  %v616 = vadd.f32 %v551, %v615
  %v617 = vpop.f32.mrf.mxu0
  %v618 = vpop.f32.mrf.mxu0
  %v619 = vadd.f32 %v554, %v618
  %v620 = vpop.f32.mrf.mxu0
  %621 = vmatprep.mubr.bf16.mxu0 0
  %622 = vmatmul.mubr.bf16.gmra.mxu0 %v438
  %v623 = vpop.f32.mrf.mxu0
  %v624 = vadd.f32 %v559, %v623
  %v625 = vpop.f32.mrf.mxu0
  %v626 = vpop.f32.mrf.mxu0
  %v627 = vadd.f32 %v562, %v626
  %v628 = vpop.f32.mrf.mxu0
  %629 = vmatprep.mubr.bf16.mxu0 0
  %630 = vmatmul.mubr.bf16.gmra.mxu0 %v441
  %v631 = vpop.f32.mrf.mxu0
  %v632 = vadd.f32 %v567, %v631
  %v633 = vpop.f32.mrf.mxu0
  %v634 = vpop.f32.mrf.mxu0
  %v635 = vadd.f32 %v570, %v634
  %v636 = vpop.f32.mrf.mxu0
  %637 = vdwg.mxu0
  %v638 = vadd.f32 %v608, %v611
  %v639 = vadd.f32 %v638, %v616
  %v640 = vadd.f32 %v639, %v619
  %v641 = vadd.f32 %v640, %v624
  %v642 = vadd.f32 %v641, %v627
  %v643 = vadd.f32 %v642, %v632
  %v644 = vadd.f32 %v643, %v635
  %v645 = vrot.slane %v644, 4
  %v646 = vadd.f32 %v644, %v645
  %v647 = vrot.slane %v646, 2
  %v648 = vadd.f32 %v646, %v647
  %v649 = vrot.slane %v648, 1
  %v650 = vadd.f32 %v648, %v649
  %651 = vrot.lane.b32.xlu0 %v650, 4
  %v652 = vpop.permute.xlu0 %651
  %v653 = vadd.f32 %v650, %v652
  %654 = vrot.lane.b32.xlu0 %v653, 8
  %v655 = vpop.permute.xlu0 %654
  %v656 = vadd.f32 %v653, %v655
  %657 = vrot.lane.b32.xlu0 %v656, 16
  %v658 = vpop.permute.xlu0 %657
  %v659 = vadd.f32 %v656, %v658
  %660 = vrot.lane.b32.xlu0 %v659, 32
  %v661 = vpop.permute.xlu0 %660
  %v662 = vadd.f32 %v659, %v661
  %663 = vrot.lane.b32.xlu0 %v662, 64
  %v664 = vpop.permute.xlu0 %663
  %v665 = vadd.f32 %v662, %v664
  %v666 = vmul.f32 %v665, 0.00048828125
  %v667 = vlaneseq
  %v668 = vshrl.u32 %v667, 7
  %v669 = vsub.s32 0, %v668
  %v670 = vrot.slane %v666, %v669
  %v671 = vsub.f32 %v608, %v670
  %v672 = vsub.f32 %v611, %v670
  %v673 = vsub.f32 %v616, %v670
  %v674 = vsub.f32 %v619, %v670
  %v675 = vsub.f32 %v624, %v670
  %v676 = vsub.f32 %v627, %v670
  %v677 = vsub.f32 %v632, %v670
  %v678 = vsub.f32 %v635, %v670
  %v679 = vmul.f32 %v671, %v671
  %v680 = vmul.f32 %v672, %v672
  %v681 = vmul.f32 %v673, %v673
  %v682 = vmul.f32 %v674, %v674
  %v683 = vmul.f32 %v675, %v675
  %v684 = vmul.f32 %v676, %v676
  %v685 = vmul.f32 %v677, %v677
  %v686 = vmul.f32 %v678, %v678
  %v687 = vadd.f32 %v679, %v680
  %v688 = vadd.f32 %v687, %v681
  %v689 = vadd.f32 %v688, %v682
  %v690 = vadd.f32 %v689, %v683
  %v691 = vadd.f32 %v690, %v684
  %v692 = vadd.f32 %v691, %v685
  %v693 = vadd.f32 %v692, %v686
  %v694 = vrot.slane %v693, 4
  %v695 = vadd.f32 %v693, %v694
  %v696 = vrot.slane %v695, 2
  %v697 = vadd.f32 %v695, %v696
  %v698 = vrot.slane %v697, 1
  %v699 = vadd.f32 %v697, %v698
  %700 = vrot.lane.b32.xlu0 %v699, 4
  %v701 = vpop.permute.xlu0 %700
  %v702 = vadd.f32 %v699, %v701
  %703 = vrot.lane.b32.xlu0 %v702, 8
  %v704 = vpop.permute.xlu0 %703
  %v705 = vadd.f32 %v702, %v704
  %706 = vrot.lane.b32.xlu0 %v705, 16
  %v707 = vpop.permute.xlu0 %706
  %v708 = vadd.f32 %v705, %v707
  %709 = vrot.lane.b32.xlu0 %v708, 32
  %v710 = vpop.permute.xlu0 %709
  %v711 = vadd.f32 %v708, %v710
  %712 = vrot.lane.b32.xlu0 %v711, 64
  %v713 = vpop.permute.xlu0 %712
  %v714 = vadd.f32 %v711, %v713
  %v715 = vmul.f32 %v714, 0.00048828125
  %v716 = vld [vmem:[%s2] sm:$0x1]
  %v717 = vadd.f32 %v715, 1e-05
  %v718 = vrsqrt.pop %v717
  %v719 = vmul.f32 %v716, %v718
  %v721 = vlaneseq
  %v722 = vshrl.u32 %v721, 7
  %v723 = vsub.s32 0, %v722
  %v724 = vrot.slane %v719, %v723
  %v726 = vmul.f32 %v671, %v724
  %v727 = vmul.f32 %v672, %v724
  %v728 = vmul.f32 %v673, %v724
  %v729 = vmul.f32 %v674, %v724
  %v730 = vmul.f32 %v675, %v724
  %v731 = vmul.f32 %v676, %v724
  %v732 = vmul.f32 %v677, %v724
  %v733 = vmul.f32 %v678, %v724
  %v734 = vld [vmem:[%s3] sm:$0x1]
  %v736 = vlaneseq
  %v737 = vshrl.u32 %v736, 7
  %v738 = vsub.s32 0, %v737
  %v739 = vrot.slane %v734, %v738
  %v741 = vadd.f32 %v726, %v739
  %v742 = vadd.f32 %v727, %v739
  %v743 = vadd.f32 %v728, %v739
  %v744 = vadd.f32 %v729, %v739
  %v745 = vadd.f32 %v730, %v739
  %v746 = vadd.f32 %v731, %v739
  %v747 = vadd.f32 %v732, %v739
  %v748 = vadd.f32 %v733, %v739
  %v749 = vmax.f32 %v741, 0.0
  %v750 = vmax.f32 %v742, 0.0
  %v751 = vmax.f32 %v743, 0.0
  %v752 = vmax.f32 %v744, 0.0
  %v753 = vmax.f32 %v745, 0.0
  %v754 = vmax.f32 %v746, 0.0
  %v755 = vmax.f32 %v747, 0.0
  %v756 = vmax.f32 %v748, 0.0
  %v757 = vpack.c.bf16 %v750, %v749
  %v758 = vpack.c.bf16 %v752, %v751
  %v759 = vpack.c.bf16 %v754, %v753
  %v760 = vpack.c.bf16 %v756, %v755
  %v765 = vunpack.c.l.b16 %v757
  %v766 = vunpack.c.h.b16 %v757
  %v767 = vunpack.c.l.b16 %v758
  %v768 = vunpack.c.h.b16 %v758
  %v769 = vunpack.c.l.b16 %v759
  %v770 = vunpack.c.h.b16 %v759
  %v771 = vunpack.c.l.b16 %v760
  %v772 = vunpack.c.h.b16 %v760
  %v773 = vpack.c.b16 %v765, %v765
  %v774 = vpack.c.b16 %v766, %v766
  %v775 = vpack.c.b16 %v767, %v767
  %v776 = vpack.c.b16 %v768, %v768
  %v777 = vpack.c.b16 %v769, %v769
  %v778 = vpack.c.b16 %v770, %v770
  %v779 = vpack.c.b16 %v771, %v771
  %v780 = vpack.c.b16 %v772, %v772
  %789 = vst [vmem:[%s4] sm:$0xf] %v773
  %790 = vst [vmem:[%s4 + $0x4] sm:$0xf] %v774
  %791 = vst [vmem:[%s4 + $0x8] sm:$0xf] %v775
  %792 = vst [vmem:[%s4 + $0xc] sm:$0xf] %v776
  %793 = vst [vmem:[%s4 + $0x10] sm:$0xf] %v777
  %794 = vst [vmem:[%s4 + $0x14] sm:$0xf] %v778
  %795 = vst [vmem:[%s4 + $0x18] sm:$0xf] %v779
  %796 = vst [vmem:[%s4 + $0x1c] sm:$0xf] %v780
  // Predicated region
  $region18: #{decoder_forward.10} parent=0 // pred_check
    _
  $region19: #{decoder_forward.10} parent=0 // pred_check_branch
    %798 = sbr.rel (0) target = $region21
  $region20: #{decoder_forward.10} parent=0 // pred_region
    _
  $region21: #{decoder_forward.10} parent=0 // pred_fallthru
    _
  // Predicated region
  $region22: #{decoder_forward.10} parent=0 // pred_check
    _
  $region23: #{decoder_forward.10} parent=0 // pred_check_branch
    %800 = sbr.rel (0) target = $region25
  $region24: #{decoder_forward.10} parent=0 // pred_region
    _
  $region25: #{decoder_forward.10} parent=0 // pred_fallthru
    _

// kernel: decoder_forward.11
$region0: #{decoder_forward.11}
  #allocation0 [shape = 'u32[]', space=smem, size = 0x4, offset = 0x4, fixed_abs, tag = 'smem constant byte address 0x4 - core index']
  #allocation1 [shape = 'u32[144,128]{1,0:T(1,128)}', space=vmem, size = 0x12000, scoped, tag = 'internal scratch']
  %s0 = inlined_call_operand.vmem [shape: bf16[16,512], index: 0, kind: input, shape index: {}]
  %s1 = inlined_call_operand.vmem [shape: bf16[512,384], index: 1, kind: input, shape index: {}]
  %s2 = inlined_call_operand.vmem [shape: f32[1,384], index: 2, kind: input, shape index: {}]
  %s3 = inlined_call_operand.vmem [shape: f32[16,384], index: 3, kind: output, shape index: {}]
  %s4 = sld [smem:[#allocation0]]
  $region22: #{decoder_forward.11} parent=0
    _
  %s6 = ssub.s32 1, %s4
  %s7 = scalar_select 0, %s6, %s4
  // Predicated region
  $region2: #{decoder_forward.11} parent=0 // pred_check
    _
  $region3: #{decoder_forward.11} parent=0 // pred_check_branch
    %9 = sbr.rel (0) target = $region5
  $region4: #{decoder_forward.11} parent=0 // pred_region
    _
  $region5: #{decoder_forward.11} parent=0 // pred_fallthru
    _
  // Predicated region
  $region6: #{decoder_forward.11} parent=0 // pred_check
    _
  $region7: #{decoder_forward.11} parent=0 // pred_check_branch
    %11 = sbr.rel (0) target = $region9
  $region8: #{decoder_forward.11} parent=0 // pred_region
    _
  $region9: #{decoder_forward.11} parent=0 // pred_fallthru
    _
  // Predicated region
  $region10: #{decoder_forward.11} parent=0 // pred_check
    _
  $region11: #{decoder_forward.11} parent=0 // pred_check_branch
    %13 = sbr.rel (0) target = $region13
  $region12: #{decoder_forward.11} parent=0 // pred_region
    _
  $region13: #{decoder_forward.11} parent=0 // pred_fallthru
    _
  %v15 = vld [vmem:[%s0] sm:$0xff]
  %v16 = vld [vmem:[%s0 + $0x8] sm:$0xff]
  %v17 = vld [vmem:[%s0 + $0x10] sm:$0xff]
  %v18 = vld [vmem:[%s0 + $0x18] sm:$0xff]
  %v19 = vld [vmem:[%s1] sm:$0xff]
  %v20 = vld [vmem:[%s1 + $0x8] sm:$0xf]
  %v21 = vld [vmem:[%s1 + $0xc] sm:$0xff]
  %v22 = vld [vmem:[%s1 + $0x14] sm:$0xf]
  %v23 = vld [vmem:[%s1 + $0x18] sm:$0xff]
  %v24 = vld [vmem:[%s1 + $0x20] sm:$0xf]
  %v25 = vld [vmem:[%s1 + $0x24] sm:$0xff]
  %v26 = vld [vmem:[%s1 + $0x2c] sm:$0xf]
  %v27 = vld [vmem:[%s1 + $0x30] sm:$0xff]
  %v28 = vld [vmem:[%s1 + $0x38] sm:$0xf]
  %v29 = vld [vmem:[%s1 + $0x3c] sm:$0xff]
  %v30 = vld [vmem:[%s1 + $0x44] sm:$0xf]
  %v31 = vld [vmem:[%s1 + $0x48] sm:$0xff]
  %v32 = vld [vmem:[%s1 + $0x50] sm:$0xf]
  %v33 = vld [vmem:[%s1 + $0x54] sm:$0xff]
  %v34 = vld [vmem:[%s1 + $0x5c] sm:$0xf]
  %v35 = vld [vmem:[%s1 + $0x60] sm:$0xff]
  %v36 = vld [vmem:[%s1 + $0x68] sm:$0xf]
  %v37 = vld [vmem:[%s1 + $0x6c] sm:$0xff]
  %v38 = vld [vmem:[%s1 + $0x74] sm:$0xf]
  %v39 = vld [vmem:[%s1 + $0x78] sm:$0xff]
  %v40 = vld [vmem:[%s1 + $0x80] sm:$0xf]
  %v41 = vld [vmem:[%s1 + $0x84] sm:$0xff]
  %v42 = vld [vmem:[%s1 + $0x8c] sm:$0xf]
  %v43 = vld [vmem:[%s1 + $0x90] sm:$0xff]
  %v44 = vld [vmem:[%s1 + $0x98] sm:$0xf]
  %v45 = vld [vmem:[%s1 + $0x9c] sm:$0xff]
  %v46 = vld [vmem:[%s1 + $0xa4] sm:$0xf]
  %v47 = vld [vmem:[%s1 + $0xa8] sm:$0xff]
  %v48 = vld [vmem:[%s1 + $0xb0] sm:$0xf]
  %v49 = vld [vmem:[%s1 + $0xb4] sm:$0xff]
  %v50 = vld [vmem:[%s1 + $0xbc] sm:$0xf]
  %v51 = vld [vmem:[%s1 + $0xc0] sm:$0xff]
  %v52 = vld [vmem:[%s1 + $0xc8] sm:$0xf]
  %v53 = vld [vmem:[%s1 + $0xcc] sm:$0xff]
  %v54 = vld [vmem:[%s1 + $0xd4] sm:$0xf]
  %v55 = vld [vmem:[%s1 + $0xd8] sm:$0xff]
  %v56 = vld [vmem:[%s1 + $0xe0] sm:$0xf]
  %v57 = vld [vmem:[%s1 + $0xe4] sm:$0xff]
  %v58 = vld [vmem:[%s1 + $0xec] sm:$0xf]
  %v59 = vld [vmem:[%s1 + $0xf0] sm:$0xff]
  %v60 = vld [vmem:[%s1 + $0xf8] sm:$0xf]
  %v61 = vld [vmem:[%s1 + $0xfc] sm:$0xff]
  %v62 = vld [vmem:[%s1 + $0x104] sm:$0xf]
  %v63 = vld [vmem:[%s1 + $0x108] sm:$0xff]
  %v64 = vld [vmem:[%s1 + $0x110] sm:$0xf]
  %v65 = vld [vmem:[%s1 + $0x114] sm:$0xff]
  %v66 = vld [vmem:[%s1 + $0x11c] sm:$0xf]
  %v67 = vld [vmem:[%s1 + $0x120] sm:$0xff]
  %v68 = vld [vmem:[%s1 + $0x128] sm:$0xf]
  %v69 = vld [vmem:[%s1 + $0x12c] sm:$0xff]
  %v70 = vld [vmem:[%s1 + $0x134] sm:$0xf]
  %v71 = vld [vmem:[%s1 + $0x138] sm:$0xff]
  %v72 = vld [vmem:[%s1 + $0x140] sm:$0xf]
  %v73 = vld [vmem:[%s1 + $0x144] sm:$0xff]
  %v74 = vld [vmem:[%s1 + $0x14c] sm:$0xf]
  %v75 = vld [vmem:[%s1 + $0x150] sm:$0xff]
  %v76 = vld [vmem:[%s1 + $0x158] sm:$0xf]
  %v77 = vld [vmem:[%s1 + $0x15c] sm:$0xff]
  %v78 = vld [vmem:[%s1 + $0x164] sm:$0xf]
  %v79 = vld [vmem:[%s1 + $0x168] sm:$0xff]
  %v80 = vld [vmem:[%s1 + $0x170] sm:$0xf]
  %v81 = vld [vmem:[%s1 + $0x174] sm:$0xff]
  %v82 = vld [vmem:[%s1 + $0x17c] sm:$0xf]
  %v83 = vld [vmem:[%s1 + $0x180] sm:$0xff]
  %v84 = vld [vmem:[%s1 + $0x188] sm:$0xf]
  %v85 = vld [vmem:[%s1 + $0x18c] sm:$0xff]
  %v86 = vld [vmem:[%s1 + $0x194] sm:$0xf]
  %v87 = vld [vmem:[%s1 + $0x198] sm:$0xff]
  %v88 = vld [vmem:[%s1 + $0x1a0] sm:$0xf]
  %v89 = vld [vmem:[%s1 + $0x1a4] sm:$0xff]
  %v90 = vld [vmem:[%s1 + $0x1ac] sm:$0xf]
  %v91 = vld [vmem:[%s1 + $0x1b0] sm:$0xff]
  %v92 = vld [vmem:[%s1 + $0x1b8] sm:$0xf]
  %v93 = vld [vmem:[%s1 + $0x1bc] sm:$0xff]
  %v94 = vld [vmem:[%s1 + $0x1c4] sm:$0xf]
  %v95 = vld [vmem:[%s1 + $0x1c8] sm:$0xff]
  %v96 = vld [vmem:[%s1 + $0x1d0] sm:$0xf]
  %v97 = vld [vmem:[%s1 + $0x1d4] sm:$0xff]
  %v98 = vld [vmem:[%s1 + $0x1dc] sm:$0xf]
  %v99 = vld [vmem:[%s1 + $0x1e0] sm:$0xff]
  %v100 = vld [vmem:[%s1 + $0x1e8] sm:$0xf]
  %v101 = vld [vmem:[%s1 + $0x1ec] sm:$0xff]
  %v102 = vld [vmem:[%s1 + $0x1f4] sm:$0xf]
  %v103 = vld [vmem:[%s1 + $0x1f8] sm:$0xff]
  %v104 = vld [vmem:[%s1 + $0x200] sm:$0xf]
  %v105 = vld [vmem:[%s1 + $0x204] sm:$0xff]
  %v106 = vld [vmem:[%s1 + $0x20c] sm:$0xf]
  %v107 = vld [vmem:[%s1 + $0x210] sm:$0xff]
  %v108 = vld [vmem:[%s1 + $0x218] sm:$0xf]
  %v109 = vld [vmem:[%s1 + $0x21c] sm:$0xff]
  %v110 = vld [vmem:[%s1 + $0x224] sm:$0xf]
  %v111 = vld [vmem:[%s1 + $0x228] sm:$0xff]
  %v112 = vld [vmem:[%s1 + $0x230] sm:$0xf]
  %v113 = vld [vmem:[%s1 + $0x234] sm:$0xff]
  %v114 = vld [vmem:[%s1 + $0x23c] sm:$0xf]
  %v115 = vld [vmem:[%s1 + $0x240] sm:$0xff]
  %v116 = vld [vmem:[%s1 + $0x248] sm:$0xf]
  %v117 = vld [vmem:[%s1 + $0x24c] sm:$0xff]
  %v118 = vld [vmem:[%s1 + $0x254] sm:$0xf]
  %v119 = vld [vmem:[%s1 + $0x258] sm:$0xff]
  %v120 = vld [vmem:[%s1 + $0x260] sm:$0xf]
  %v121 = vld [vmem:[%s1 + $0x264] sm:$0xff]
  %v122 = vld [vmem:[%s1 + $0x26c] sm:$0xf]
  %v123 = vld [vmem:[%s1 + $0x270] sm:$0xff]
  %v124 = vld [vmem:[%s1 + $0x278] sm:$0xf]
  %v125 = vld [vmem:[%s1 + $0x27c] sm:$0xff]
  %v126 = vld [vmem:[%s1 + $0x284] sm:$0xf]
  %v127 = vld [vmem:[%s1 + $0x288] sm:$0xff]
  %v128 = vld [vmem:[%s1 + $0x290] sm:$0xf]
  %v129 = vld [vmem:[%s1 + $0x294] sm:$0xff]
  %v130 = vld [vmem:[%s1 + $0x29c] sm:$0xf]
  %v131 = vld [vmem:[%s1 + $0x2a0] sm:$0xff]
  %v132 = vld [vmem:[%s1 + $0x2a8] sm:$0xf]
  %v133 = vld [vmem:[%s1 + $0x2ac] sm:$0xff]
  %v134 = vld [vmem:[%s1 + $0x2b4] sm:$0xf]
  %v135 = vld [vmem:[%s1 + $0x2b8] sm:$0xff]
  %v136 = vld [vmem:[%s1 + $0x2c0] sm:$0xf]
  %v137 = vld [vmem:[%s1 + $0x2c4] sm:$0xff]
  %v138 = vld [vmem:[%s1 + $0x2cc] sm:$0xf]
  %v139 = vld [vmem:[%s1 + $0x2d0] sm:$0xff]
  %v140 = vld [vmem:[%s1 + $0x2d8] sm:$0xf]
  %v141 = vld [vmem:[%s1 + $0x2dc] sm:$0xff]
  %v142 = vld [vmem:[%s1 + $0x2e4] sm:$0xf]
  %v143 = vld [vmem:[%s1 + $0x2e8] sm:$0xff]
  %v144 = vld [vmem:[%s1 + $0x2f0] sm:$0xf]
  %v145 = vld [vmem:[%s1 + $0x2f4] sm:$0xff]
  %v146 = vld [vmem:[%s1 + $0x2fc] sm:$0xf]
  %v147 = vld [vmem:[%s2] sm:$0x7]
  %v149 = vlaneseq
  %v150 = vshrl.u32 %v149, 7
  %v151 = vsub.s32 0, %v150
  %v152 = vrot.slane %v147, %v151
  %v153 = vlaneseq
  %v154 = vshrl.u32 %v153, 7
  %v155 = vsub.s32 1, %v154
  %v156 = vrot.slane %v147, %v155
  %v157 = vlaneseq
  %v158 = vshrl.u32 %v157, 7
  %v159 = vsub.s32 2, %v158
  %v160 = vrot.slane %v147, %v159
  %v168 = vunpack.c.l.b16 %v15
  %v169 = vunpack.c.h.b16 %v15
  %v170 = vunpack.c.l.b16 %v16
  %v171 = vunpack.c.h.b16 %v16
  %v172 = vunpack.c.l.b16 %v17
  %v173 = vunpack.c.h.b16 %v17
  %v174 = vunpack.c.l.b16 %v18
  %v175 = vunpack.c.h.b16 %v18
  %v176 = vpack.c.b16 %v172, %v168
  %v177 = vpack.c.b16 %v173, %v169
  %v178 = vpack.c.b16 %v174, %v170
  %v179 = vpack.c.b16 %v175, %v171
  %v312 = vunpack.c.l.b16 %v19
  %v313 = vunpack.c.h.b16 %v19
  %v314 = vunpack.c.l.b16 %v20
  %v315 = vunpack.c.l.b16 %v21
  %v316 = vunpack.c.h.b16 %v21
  %v317 = vunpack.c.l.b16 %v22
  %v318 = vunpack.c.l.b16 %v23
  %v319 = vunpack.c.h.b16 %v23
  %v320 = vunpack.c.l.b16 %v24
  %v321 = vunpack.c.l.b16 %v25
  %v322 = vunpack.c.h.b16 %v25
  %v323 = vunpack.c.l.b16 %v26
  %v324 = vunpack.c.l.b16 %v27
  %v325 = vunpack.c.h.b16 %v27
  %v326 = vunpack.c.l.b16 %v28
  %v327 = vunpack.c.l.b16 %v29
  %v328 = vunpack.c.h.b16 %v29
  %v329 = vunpack.c.l.b16 %v30
  %v330 = vunpack.c.l.b16 %v31
  %v331 = vunpack.c.h.b16 %v31
  %v332 = vunpack.c.l.b16 %v32
  %v333 = vunpack.c.l.b16 %v33
  %v334 = vunpack.c.h.b16 %v33
  %v335 = vunpack.c.l.b16 %v34
  %v336 = vunpack.c.l.b16 %v35
  %v337 = vunpack.c.h.b16 %v35
  %v338 = vunpack.c.l.b16 %v36
  %v339 = vunpack.c.l.b16 %v37
  %v340 = vunpack.c.h.b16 %v37
  %v341 = vunpack.c.l.b16 %v38
  %v342 = vunpack.c.l.b16 %v39
  %v343 = vunpack.c.h.b16 %v39
  %v344 = vunpack.c.l.b16 %v40
  %v345 = vunpack.c.l.b16 %v41
  %v346 = vunpack.c.h.b16 %v41
  %v347 = vunpack.c.l.b16 %v42
  %v348 = vunpack.c.l.b16 %v43
  %v349 = vunpack.c.h.b16 %v43
  %v350 = vunpack.c.l.b16 %v44
  %v351 = vunpack.c.l.b16 %v45
  %v352 = vunpack.c.h.b16 %v45
  %v353 = vunpack.c.l.b16 %v46
  %v354 = vunpack.c.l.b16 %v47
  %v355 = vunpack.c.h.b16 %v47
  %v356 = vunpack.c.l.b16 %v48
  %v357 = vunpack.c.l.b16 %v49
  %v358 = vunpack.c.h.b16 %v49
  %v359 = vunpack.c.l.b16 %v50
  %v360 = vunpack.c.l.b16 %v51
  %v361 = vunpack.c.h.b16 %v51
  %v362 = vunpack.c.l.b16 %v52
  %v363 = vunpack.c.l.b16 %v53
  %v364 = vunpack.c.h.b16 %v53
  %v365 = vunpack.c.l.b16 %v54
  %v366 = vunpack.c.l.b16 %v55
  %v367 = vunpack.c.h.b16 %v55
  %v368 = vunpack.c.l.b16 %v56
  %v369 = vunpack.c.l.b16 %v57
  %v370 = vunpack.c.h.b16 %v57
  %v371 = vunpack.c.l.b16 %v58
  %v372 = vunpack.c.l.b16 %v59
  %v373 = vunpack.c.h.b16 %v59
  %v374 = vunpack.c.l.b16 %v60
  %v375 = vunpack.c.l.b16 %v61
  %v376 = vunpack.c.h.b16 %v61
  %v377 = vunpack.c.l.b16 %v62
  %v378 = vunpack.c.l.b16 %v63
  %v379 = vunpack.c.h.b16 %v63
  %v380 = vunpack.c.l.b16 %v64
  %v381 = vunpack.c.l.b16 %v65
  %v382 = vunpack.c.h.b16 %v65
  %v383 = vunpack.c.l.b16 %v66
  %v384 = vunpack.c.l.b16 %v67
  %v385 = vunpack.c.h.b16 %v67
  %v386 = vunpack.c.l.b16 %v68
  %v387 = vunpack.c.l.b16 %v69
  %v388 = vunpack.c.h.b16 %v69
  %v389 = vunpack.c.l.b16 %v70
  %v390 = vunpack.c.l.b16 %v71
  %v391 = vunpack.c.h.b16 %v71
  %v392 = vunpack.c.l.b16 %v72
  %v393 = vunpack.c.l.b16 %v73
  %v394 = vunpack.c.h.b16 %v73
  %v395 = vunpack.c.l.b16 %v74
  %v396 = vunpack.c.l.b16 %v75
  %v397 = vunpack.c.h.b16 %v75
  %v398 = vunpack.c.l.b16 %v76
  %v399 = vunpack.c.l.b16 %v77
  %v400 = vunpack.c.h.b16 %v77
  %v401 = vunpack.c.l.b16 %v78
  %v402 = vunpack.c.l.b16 %v79
  %v403 = vunpack.c.h.b16 %v79
  %v404 = vunpack.c.l.b16 %v80
  %v405 = vunpack.c.l.b16 %v81
  %v406 = vunpack.c.h.b16 %v81
  %v407 = vunpack.c.l.b16 %v82
  %v408 = vunpack.c.l.b16 %v83
  %v409 = vunpack.c.h.b16 %v83
  %v410 = vunpack.c.l.b16 %v84
  %v411 = vunpack.c.l.b16 %v85
  %v412 = vunpack.c.h.b16 %v85
  %v413 = vunpack.c.l.b16 %v86
  %v414 = vunpack.c.l.b16 %v87
  %v415 = vunpack.c.h.b16 %v87
  %v416 = vunpack.c.l.b16 %v88
  %v417 = vunpack.c.l.b16 %v89
  %v418 = vunpack.c.h.b16 %v89
  %v419 = vunpack.c.l.b16 %v90
  %v420 = vunpack.c.l.b16 %v91
  %v421 = vunpack.c.h.b16 %v91
  %v422 = vunpack.c.l.b16 %v92
  %v423 = vunpack.c.l.b16 %v93
  %v424 = vunpack.c.h.b16 %v93
  %v425 = vunpack.c.l.b16 %v94
  %v426 = vunpack.c.l.b16 %v95
  %v427 = vunpack.c.h.b16 %v95
  %v428 = vunpack.c.l.b16 %v96
  %v429 = vunpack.c.l.b16 %v97
  %v430 = vunpack.c.h.b16 %v97
  %v431 = vunpack.c.l.b16 %v98
  %v432 = vunpack.c.l.b16 %v99
  %v433 = vunpack.c.h.b16 %v99
  %v434 = vunpack.c.l.b16 %v100
  %v435 = vunpack.c.l.b16 %v101
  %v436 = vunpack.c.h.b16 %v101
  %v437 = vunpack.c.l.b16 %v102
  %v438 = vunpack.c.l.b16 %v103
  %v439 = vunpack.c.h.b16 %v103
  %v440 = vunpack.c.l.b16 %v104
  %v441 = vunpack.c.l.b16 %v105
  %v442 = vunpack.c.h.b16 %v105
  %v443 = vunpack.c.l.b16 %v106
  %v444 = vunpack.c.l.b16 %v107
  %v445 = vunpack.c.h.b16 %v107
  %v446 = vunpack.c.l.b16 %v108
  %v447 = vunpack.c.l.b16 %v109
  %v448 = vunpack.c.h.b16 %v109
  %v449 = vunpack.c.l.b16 %v110
  %v450 = vunpack.c.l.b16 %v111
  %v451 = vunpack.c.h.b16 %v111
  %v452 = vunpack.c.l.b16 %v112
  %v453 = vunpack.c.l.b16 %v113
  %v454 = vunpack.c.h.b16 %v113
  %v455 = vunpack.c.l.b16 %v114
  %v456 = vunpack.c.l.b16 %v115
  %v457 = vunpack.c.h.b16 %v115
  %v458 = vunpack.c.l.b16 %v116
  %v459 = vunpack.c.l.b16 %v117
  %v460 = vunpack.c.h.b16 %v117
  %v461 = vunpack.c.l.b16 %v118
  %v462 = vunpack.c.l.b16 %v119
  %v463 = vunpack.c.h.b16 %v119
  %v464 = vunpack.c.l.b16 %v120
  %v465 = vunpack.c.l.b16 %v121
  %v466 = vunpack.c.h.b16 %v121
  %v467 = vunpack.c.l.b16 %v122
  %v468 = vunpack.c.l.b16 %v123
  %v469 = vunpack.c.h.b16 %v123
  %v470 = vunpack.c.l.b16 %v124
  %v471 = vunpack.c.l.b16 %v125
  %v472 = vunpack.c.h.b16 %v125
  %v473 = vunpack.c.l.b16 %v126
  %v474 = vunpack.c.l.b16 %v127
  %v475 = vunpack.c.h.b16 %v127
  %v476 = vunpack.c.l.b16 %v128
  %v477 = vunpack.c.l.b16 %v129
  %v478 = vunpack.c.h.b16 %v129
  %v479 = vunpack.c.l.b16 %v130
  %v480 = vunpack.c.l.b16 %v131
  %v481 = vunpack.c.h.b16 %v131
  %v482 = vunpack.c.l.b16 %v132
  %v483 = vunpack.c.l.b16 %v133
  %v484 = vunpack.c.h.b16 %v133
  %v485 = vunpack.c.l.b16 %v134
  %v486 = vunpack.c.l.b16 %v135
  %v487 = vunpack.c.h.b16 %v135
  %v488 = vunpack.c.l.b16 %v136
  %v489 = vunpack.c.l.b16 %v137
  %v490 = vunpack.c.h.b16 %v137
  %v491 = vunpack.c.l.b16 %v138
  %v492 = vunpack.c.l.b16 %v139
  %v493 = vunpack.c.h.b16 %v139
  %v494 = vunpack.c.l.b16 %v140
  %v495 = vunpack.c.l.b16 %v141
  %v496 = vunpack.c.h.b16 %v141
  %v497 = vunpack.c.l.b16 %v142
  %v498 = vunpack.c.l.b16 %v143
  %v499 = vunpack.c.h.b16 %v143
  %v500 = vunpack.c.l.b16 %v144
  %v501 = vunpack.c.l.b16 %v145
  %v502 = vunpack.c.h.b16 %v145
  %v503 = vunpack.c.l.b16 %v146
  %v504 = vpack.c.b16 %v315, %v312
  %v505 = vpack.c.b16 %v316, %v313
  %v506 = vpack.c.b16 %v317, %v314
  %v507 = vpack.c.b16 %v321, %v318
  %v508 = vpack.c.b16 %v322, %v319
  %v509 = vpack.c.b16 %v323, %v320
  %v510 = vpack.c.b16 %v327, %v324
  %v511 = vpack.c.b16 %v328, %v325
  %v512 = vpack.c.b16 %v329, %v326
  %v513 = vpack.c.b16 %v333, %v330
  %v514 = vpack.c.b16 %v334, %v331
  %v515 = vpack.c.b16 %v335, %v332
  %v516 = vpack.c.b16 %v339, %v336
  %v517 = vpack.c.b16 %v340, %v337
  %v518 = vpack.c.b16 %v341, %v338
  %v519 = vpack.c.b16 %v345, %v342
  %v520 = vpack.c.b16 %v346, %v343
  %v521 = vpack.c.b16 %v347, %v344
  %v522 = vpack.c.b16 %v351, %v348
  %v523 = vpack.c.b16 %v352, %v349
  %v524 = vpack.c.b16 %v353, %v350
  %v525 = vpack.c.b16 %v357, %v354
  %v526 = vpack.c.b16 %v358, %v355
  %v527 = vpack.c.b16 %v359, %v356
  %v528 = vpack.c.b16 %v363, %v360
  %v529 = vpack.c.b16 %v364, %v361
  %v530 = vpack.c.b16 %v365, %v362
  %v531 = vpack.c.b16 %v369, %v366
  %v532 = vpack.c.b16 %v370, %v367
  %v533 = vpack.c.b16 %v371, %v368
  %v534 = vpack.c.b16 %v375, %v372
  %v535 = vpack.c.b16 %v376, %v373
  %v536 = vpack.c.b16 %v377, %v374
  %v537 = vpack.c.b16 %v381, %v378
  %v538 = vpack.c.b16 %v382, %v379
  %v539 = vpack.c.b16 %v383, %v380
  %v540 = vpack.c.b16 %v387, %v384
  %v541 = vpack.c.b16 %v388, %v385
  %v542 = vpack.c.b16 %v389, %v386
  %v543 = vpack.c.b16 %v393, %v390
  %v544 = vpack.c.b16 %v394, %v391
  %v545 = vpack.c.b16 %v395, %v392
  %v546 = vpack.c.b16 %v399, %v396
  %v547 = vpack.c.b16 %v400, %v397
  %v548 = vpack.c.b16 %v401, %v398
  %v549 = vpack.c.b16 %v405, %v402
  %v550 = vpack.c.b16 %v406, %v403
  %v551 = vpack.c.b16 %v407, %v404
  %v552 = vpack.c.b16 %v411, %v408
  %v553 = vpack.c.b16 %v412, %v409
  %v554 = vpack.c.b16 %v413, %v410
  %v555 = vpack.c.b16 %v417, %v414
  %v556 = vpack.c.b16 %v418, %v415
  %v557 = vpack.c.b16 %v419, %v416
  %v558 = vpack.c.b16 %v423, %v420
  %v559 = vpack.c.b16 %v424, %v421
  %v560 = vpack.c.b16 %v425, %v422
  %v561 = vpack.c.b16 %v429, %v426
  %v562 = vpack.c.b16 %v430, %v427
  %v563 = vpack.c.b16 %v431, %v428
  %v564 = vpack.c.b16 %v435, %v432
  %v565 = vpack.c.b16 %v436, %v433
  %v566 = vpack.c.b16 %v437, %v434
  %v567 = vpack.c.b16 %v441, %v438
  %v568 = vpack.c.b16 %v442, %v439
  %v569 = vpack.c.b16 %v443, %v440
  %v570 = vpack.c.b16 %v447, %v444
  %v571 = vpack.c.b16 %v448, %v445
  %v572 = vpack.c.b16 %v449, %v446
  %v573 = vpack.c.b16 %v453, %v450
  %v574 = vpack.c.b16 %v454, %v451
  %v575 = vpack.c.b16 %v455, %v452
  %v576 = vpack.c.b16 %v459, %v456
  %v577 = vpack.c.b16 %v460, %v457
  %v578 = vpack.c.b16 %v461, %v458
  %v579 = vpack.c.b16 %v465, %v462
  %v580 = vpack.c.b16 %v466, %v463
  %v581 = vpack.c.b16 %v467, %v464
  %v582 = vpack.c.b16 %v471, %v468
  %v583 = vpack.c.b16 %v472, %v469
  %v584 = vpack.c.b16 %v473, %v470
  %v585 = vpack.c.b16 %v477, %v474
  %v586 = vpack.c.b16 %v478, %v475
  %v587 = vpack.c.b16 %v479, %v476
  %v588 = vpack.c.b16 %v483, %v480
  %v589 = vpack.c.b16 %v484, %v481
  %v590 = vpack.c.b16 %v485, %v482
  %v591 = vpack.c.b16 %v489, %v486
  %v592 = vpack.c.b16 %v490, %v487
  %v593 = vpack.c.b16 %v491, %v488
  %v594 = vpack.c.b16 %v495, %v492
  %v595 = vpack.c.b16 %v496, %v493
  %v596 = vpack.c.b16 %v497, %v494
  %v597 = vpack.c.b16 %v501, %v498
  %v598 = vpack.c.b16 %v502, %v499
  %v599 = vpack.c.b16 %v503, %v500
  %696 = vmatprep.subr.bf16.mxu0 %v526
  %697 = vmatpush1.bf16.msra.mxu0 %v525
  %698 = vmatprep.subr.bf16.mxu0 %v523
  %699 = vmatpush1.bf16.msra.mxu0 %v522
  %700 = vmatprep.subr.bf16.mxu0 %v520
  %701 = vmatpush1.bf16.msra.mxu0 %v519
  %702 = vmatprep.subr.bf16.mxu0 %v517
  %703 = vmatpush1.bf16.msra.mxu0 %v516
  %704 = vmatprep.subr.bf16.mxu0 %v514
  %705 = vmatpush1.bf16.msra.mxu0 %v513
  %706 = vmatprep.subr.bf16.mxu0 %v511
  %707 = vmatpush1.bf16.msra.mxu0 %v510
  %708 = vmatprep.subr.bf16.mxu0 %v508
  %709 = vmatpush1.bf16.msra.mxu0 %v507
  %710 = vmatprep.subr.bf16.mxu0 %v505
  %711 = vmatpush1.bf16.msra.mxu0 %v504
  %712 = vmatprep.subr.bf16.mxu0 %v550
  %713 = vmatpush2.bf16.msra.mxu0 %v549
  %714 = vmatprep.subr.bf16.mxu0 %v547
  %715 = vmatpush2.bf16.msra.mxu0 %v546
  %716 = vmatprep.subr.bf16.mxu0 %v544
  %717 = vmatpush2.bf16.msra.mxu0 %v543
  %718 = vmatprep.subr.bf16.mxu0 %v541
  %719 = vmatpush2.bf16.msra.mxu0 %v540
  %720 = vmatprep.subr.bf16.mxu0 %v538
  %721 = vmatpush2.bf16.msra.mxu0 %v537
  %722 = vmatprep.subr.bf16.mxu0 %v535
  %723 = vmatpush2.bf16.msra.mxu0 %v534
  %724 = vmatprep.subr.bf16.mxu0 %v532
  %725 = vmatpush2.bf16.msra.mxu0 %v531
  %726 = vmatprep.subr.bf16.mxu0 %v529
  %727 = vmatpush2.bf16.msra.mxu0 %v528
  %728 = vmatprep.mubr.bf16.mxu0 %v177
  %729 = vmatmul.mubr.bf16.gmra.mxu0 %v176
  %v730 = vpop.f32.mrf.mxu0
  %v731 = vadd.f32 %v152, %v730
  %v732 = vpop.f32.mrf.mxu0
  %v733 = vadd.f32 %v156, %v732
  %v734 = vpop.f32.mrf.mxu0
  %v735 = vadd.f32 %v152, %v734
  %v736 = vpop.f32.mrf.mxu0
  %v737 = vadd.f32 %v156, %v736
  %738 = vdwg.mxu0
  %739 = vmatprep.subr.bf16.mxu0 %v574
  %740 = vmatpush1.bf16.msra.mxu0 %v573
  %741 = vmatprep.subr.bf16.mxu0 %v571
  %742 = vmatpush1.bf16.msra.mxu0 %v570
  %743 = vmatprep.subr.bf16.mxu0 %v568
  %744 = vmatpush1.bf16.msra.mxu0 %v567
  %745 = vmatprep.subr.bf16.mxu0 %v565
  %746 = vmatpush1.bf16.msra.mxu0 %v564
  %747 = vmatprep.subr.bf16.mxu0 %v562
  %748 = vmatpush1.bf16.msra.mxu0 %v561
  %749 = vmatprep.subr.bf16.mxu0 %v559
  %750 = vmatpush1.bf16.msra.mxu0 %v558
  %751 = vmatprep.subr.bf16.mxu0 %v556
  %752 = vmatpush1.bf16.msra.mxu0 %v555
  %753 = vmatprep.subr.bf16.mxu0 %v553
  %754 = vmatpush1.bf16.msra.mxu0 %v552
  %755 = vmatprep.subr.bf16.mxu0 %v598
  %756 = vmatpush2.bf16.msra.mxu0 %v597
  %757 = vmatprep.subr.bf16.mxu0 %v595
  %758 = vmatpush2.bf16.msra.mxu0 %v594
  %759 = vmatprep.subr.bf16.mxu0 %v592
  %760 = vmatpush2.bf16.msra.mxu0 %v591
  %761 = vmatprep.subr.bf16.mxu0 %v589
  %762 = vmatpush2.bf16.msra.mxu0 %v588
  %763 = vmatprep.subr.bf16.mxu0 %v586
  %764 = vmatpush2.bf16.msra.mxu0 %v585
  %765 = vmatprep.subr.bf16.mxu0 %v583
  %766 = vmatpush2.bf16.msra.mxu0 %v582
  %767 = vmatprep.subr.bf16.mxu0 %v580
  %768 = vmatpush2.bf16.msra.mxu0 %v579
  %769 = vmatprep.subr.bf16.mxu0 %v577
  %770 = vmatpush2.bf16.msra.mxu0 %v576
  %771 = vmatprep.mubr.bf16.mxu0 %v179
  %772 = vmatmul.mubr.bf16.gmra.mxu0 %v178
  %v773 = vpop.f32.mrf.mxu0
  %v774 = vadd.f32 %v731, %v773
  %v775 = vpop.f32.mrf.mxu0
  %v776 = vadd.f32 %v733, %v775
  %v777 = vpop.f32.mrf.mxu0
  %v778 = vadd.f32 %v735, %v777
  %v779 = vpop.f32.mrf.mxu0
  %v780 = vadd.f32 %v737, %v779
  %781 = vdwg.mxu0
  %782 = vmatprep.subr.bf16.mxu0 0
  %783 = vmatpush1.bf16.msra.mxu0 %v527
  %784 = vmatprep.subr.bf16.mxu0 0
  %785 = vmatpush1.bf16.msra.mxu0 %v524
  %786 = vmatprep.subr.bf16.mxu0 0
  %787 = vmatpush1.bf16.msra.mxu0 %v521
  %788 = vmatprep.subr.bf16.mxu0 0
  %789 = vmatpush1.bf16.msra.mxu0 %v518
  %790 = vmatprep.subr.bf16.mxu0 0
  %791 = vmatpush1.bf16.msra.mxu0 %v515
  %792 = vmatprep.subr.bf16.mxu0 0
  %793 = vmatpush1.bf16.msra.mxu0 %v512
  %794 = vmatprep.subr.bf16.mxu0 0
  %795 = vmatpush1.bf16.msra.mxu0 %v509
  %796 = vmatprep.subr.bf16.mxu0 0
  %797 = vmatpush1.bf16.msra.mxu0 %v506
  %798 = vmatprep.subr.bf16.mxu0 0
  %799 = vmatpush2.bf16.msra.mxu0 %v551
  %800 = vmatprep.subr.bf16.mxu0 0
  %801 = vmatpush2.bf16.msra.mxu0 %v548
  %802 = vmatprep.subr.bf16.mxu0 0
  %803 = vmatpush2.bf16.msra.mxu0 %v545
  %804 = vmatprep.subr.bf16.mxu0 0
  %805 = vmatpush2.bf16.msra.mxu0 %v542
  %806 = vmatprep.subr.bf16.mxu0 0
  %807 = vmatpush2.bf16.msra.mxu0 %v539
  %808 = vmatprep.subr.bf16.mxu0 0
  %809 = vmatpush2.bf16.msra.mxu0 %v536
  %810 = vmatprep.subr.bf16.mxu0 0
  %811 = vmatpush2.bf16.msra.mxu0 %v533
  %812 = vmatprep.subr.bf16.mxu0 0
  %813 = vmatpush2.bf16.msra.mxu0 %v530
  %814 = vmatprep.mubr.bf16.mxu0 %v177
  %815 = vmatmul.mubr.bf16.gmra.mxu0 %v176
  %v816 = vpop.f32.mrf.mxu0
  %v817 = vadd.f32 %v160, %v816
  %v818 = vpop.f32.mrf.mxu0
  %v819 = vpop.f32.mrf.mxu0
  %v820 = vadd.f32 %v160, %v819
  %v821 = vpop.f32.mrf.mxu0
  %822 = vdwg.mxu0
  %823 = vmatprep.subr.bf16.mxu0 0
  %824 = vmatpush1.bf16.msra.mxu0 %v575
  %825 = vmatprep.subr.bf16.mxu0 0
  %826 = vmatpush1.bf16.msra.mxu0 %v572
  %827 = vmatprep.subr.bf16.mxu0 0
  %828 = vmatpush1.bf16.msra.mxu0 %v569
  %829 = vmatprep.subr.bf16.mxu0 0
  %830 = vmatpush1.bf16.msra.mxu0 %v566
  %831 = vmatprep.subr.bf16.mxu0 0
  %832 = vmatpush1.bf16.msra.mxu0 %v563
  %833 = vmatprep.subr.bf16.mxu0 0
  %834 = vmatpush1.bf16.msra.mxu0 %v560
  %835 = vmatprep.subr.bf16.mxu0 0
  %836 = vmatpush1.bf16.msra.mxu0 %v557
  %837 = vmatprep.subr.bf16.mxu0 0
  %838 = vmatpush1.bf16.msra.mxu0 %v554
  %839 = vmatprep.subr.bf16.mxu0 0
  %840 = vmatpush2.bf16.msra.mxu0 %v599
  %841 = vmatprep.subr.bf16.mxu0 0
  %842 = vmatpush2.bf16.msra.mxu0 %v596
  %843 = vmatprep.subr.bf16.mxu0 0
  %844 = vmatpush2.bf16.msra.mxu0 %v593
  %845 = vmatprep.subr.bf16.mxu0 0
  %846 = vmatpush2.bf16.msra.mxu0 %v590
  %847 = vmatprep.subr.bf16.mxu0 0
  %848 = vmatpush2.bf16.msra.mxu0 %v587
  %849 = vmatprep.subr.bf16.mxu0 0
  %850 = vmatpush2.bf16.msra.mxu0 %v584
  %851 = vmatprep.subr.bf16.mxu0 0
  %852 = vmatpush2.bf16.msra.mxu0 %v581
  %853 = vmatprep.subr.bf16.mxu0 0
  %854 = vmatpush2.bf16.msra.mxu0 %v578
  %855 = vmatprep.mubr.bf16.mxu0 %v179
  %856 = vmatmul.mubr.bf16.gmra.mxu0 %v178
  %v857 = vpop.f32.mrf.mxu0
  %v858 = vadd.f32 %v817, %v857
  %v859 = vpop.f32.mrf.mxu0
  %v860 = vpop.f32.mrf.mxu0
  %v861 = vadd.f32 %v820, %v860
  %v862 = vpop.f32.mrf.mxu0
  %863 = vdwg.mxu0
  %v864 = vtanh.pop %v774
  %v865 = vtanh.pop %v776
  %v866 = vtanh.pop %v858
  %v867 = vtanh.pop %v778
  %v868 = vtanh.pop %v780
  %v869 = vtanh.pop %v861
  %870 = vst [vmem:[%s3] sm:$0xff] %v864
  %871 = vst [vmem:[%s3 + $0x8] sm:$0xff] %v865
  %872 = vst [vmem:[%s3 + $0x10] sm:$0xff] %v866
  %873 = vst [vmem:[%s3 + $0x18] sm:$0xff] %v867
  %874 = vst [vmem:[%s3 + $0x20] sm:$0xff] %v868
  %875 = vst [vmem:[%s3 + $0x28] sm:$0xff] %v869
  // Predicated region
  $region14: #{decoder_forward.11} parent=0 // pred_check
    _
  $region15: #{decoder_forward.11} parent=0 // pred_check_branch
    %877 = sbr.rel (0) target = $region17
  $region16: #{decoder_forward.11} parent=0 // pred_region
    _
  $region17: #{decoder_forward.11} parent=0 // pred_fallthru
    _
  // Predicated region
  $region18: #{decoder_forward.11} parent=0 // pred_check
    _
  $region19: #{decoder_forward.11} parent=0 // pred_check_branch
    %879 = sbr.rel (0) target = $region21
  $region20: #{decoder_forward.11} parent=0 // pred_region
    _
  $region21: #{decoder_forward.11} parent=0 // pred_fallthru
    _

</llo_original>
